<compile_context>
chip_gen: v5e
topology: v5e:2x2
jax: 0.10.0
libtpu: 0.0.40
codegen_flags: <defaults>
</compile_context>

<pallas_src>
import math

import jax
import jax.numpy as jnp
from jax.experimental import pallas as pl
from jax.experimental.pallas import tpu as pltpu


def _ceil_to(x, m):
    return ((x + m - 1) // m) * m


def _vmem_limit_bytes():
    """~96 MiB on 128-MiB chips (v5e/v6e), ~48 MiB on v7x's 64-MiB part."""
    try:
        cap = int(pltpu.get_tpu_info().vmem_capacity_bytes)
    except Exception:
        cap = 64 * 1024 * 1024
    return int(min(max(cap - 32 * 1024 * 1024, (3 * cap) // 4),
                   100 * 1024 * 1024))


def _pick_k_group(C, HW, HW_pad, limit_bytes):
    """Largest taps-per-matmul group (9 -> 3 -> 1) whose VMEM footprint fits."""
    budget = int(limit_bytes * 0.7)
    for kg in (9, 3, 1):
        est = 2 * C * HW_pad * 2            # x block (bf16, double buffered)
        est += 2 * C * HW * 4               # out block (f32, double buffered)
        est += 2 * 2 * (C * 9 * C) * 2      # both weight mats (bf16, double buffered)
        est += 2 * (C * 6 + 2 * HW) * 4     # param pack + masks
        est += kg * C * HW * 2              # stacked-taps scratch (bf16)
        est += C * HW_pad * 2               # padded intermediate h scratch (bf16)
        est += 4 * C * HW * 4               # f32 temporaries headroom
        if est <= budget:
            return kg
    # TODO(synk): add an HW-tiled path (halo'd conv + two-pass streaming
    # InstanceNorm) for images too large for a single per-image VMEM slab.
    raise ValueError(
        f"image too large for the fused ResidualLayer kernel "
        f"(C={C}, H*W={HW}, vmem_limit={limit_bytes})")


# ---------------------------------------------------------------------------
# Fused per-image kernel: conv1 + IN1 + ReLU + conv2 + IN2, channels-first.
# ---------------------------------------------------------------------------

def _make_residual_kernel(C, H, W, HW, HW_pad, k_group, eps):
    n_groups = 9 // k_group
    Kg = k_group * C
    inv_cnt1 = 1.0 / float((H - 2) * (W - 2))
    inv_cnt2 = 1.0 / float((H - 4) * (W - 4))

    def conv3x3(src_ref, w_ref, stack_ref):
        # out(C, HW) = sum_g  W[:, g-block] @ stack_g; stack rows = (tap, ci).
        acc = jnp.zeros((C, HW), jnp.float32)
        for g in range(n_groups):
            for j in range(k_group):
                s = g * k_group + j            # tap index, s = dy*3 + dx
                off = (s // 3) * W + (s % 3)   # flat shift dy*W + dx
                stack_ref[j * C:(j + 1) * C, :] = src_ref[:, off:off + HW]
            wg = w_ref[:, g * Kg:(g + 1) * Kg]
            acc = acc + jnp.dot(wg, stack_ref[...],
                                preferred_element_type=jnp.float32)
        return acc

    def masked_instance_norm(y, mask, inv_cnt, gamma, beta):
        # One-pass stats over the valid window (mask is 1.0 inside, 0.0 outside).
        ym = y * mask
        mean = jnp.sum(ym, axis=1, keepdims=True) * inv_cnt
        ex2 = jnp.sum(ym * y, axis=1, keepdims=True) * inv_cnt
        var = jnp.maximum(ex2 - mean * mean, 0.0)
        rstd = jax.lax.rsqrt(var + eps)
        return (y - mean) * (rstd * gamma) + beta

    def kernel(x_ref, w1_ref, w2_ref, pp_ref, mk_ref, o_ref,
               stack_ref, hpad_ref):
        pp = pp_ref[...]
        b1, g1, be1 = pp[:, 0:1], pp[:, 1:2], pp[:, 2:3]
        b2, g2, be2 = pp[:, 3:4], pp[:, 4:5], pp[:, 5:6]
        mk = mk_ref[...]
        mask1, mask2 = mk[0:1, :], mk[1:2, :]

        # conv1 + bias + InstanceNorm1 + ReLU (valid window (H-2) x (W-2)).
        y1 = conv3x3(x_ref, w1_ref, stack_ref) + b1
        h = jnp.maximum(masked_instance_norm(y1, mask1, inv_cnt1, g1, be1), 0.0)

        # Stage h (bf16) in a padded scratch so conv2 can read shifted taps.
        hpad_ref[:, :HW] = h.astype(hpad_ref.dtype)
        hpad_ref[:, HW:] = jnp.zeros((C, HW_pad - HW), hpad_ref.dtype)

        # conv2 + bias + InstanceNorm2 (valid window (H-4) x (W-4)).
        y2 = conv3x3(hpad_ref, w2_ref, stack_ref) + b2
        o_ref[...] = masked_instance_norm(
            y2, mask2, inv_cnt2, g2, be2).astype(o_ref.dtype)

    return kernel


# ---------------------------------------------------------------------------
# ResidualLayer forward (NCHW in / NCHW out, matching the PyTorch module)
# ---------------------------------------------------------------------------

def prepare_params(params):
    """Pre-transpose conv weights to (C_out, 9*C_in) bf16 (tap-major, ci-minor)."""
    c = params["w1"].shape[0]
    p = dict(params)
    p["wmat1"] = (jnp.asarray(params["w1"]).transpose(0, 2, 3, 1)
                  .reshape(c, 9 * c).astype(jnp.bfloat16))
    p["wmat2"] = (jnp.asarray(params["w2"]).transpose(0, 2, 3, 1)
                  .reshape(c, 9 * c).astype(jnp.bfloat16))
    return p


def residual_layer_forward(x_nchw, params):
    N, C, H, W = x_nchw.shape
    assert H >= 5 and W >= 5, "two valid 3x3 convs need spatial dims >= 5"
    HW = H * W
    HW_pad = _ceil_to(HW + 2 * W + 2, 128)   # room for the largest tap shift
    Ho, Wo = H - 4, W - 4

    limit = _vmem_limit_bytes()
    k_group = _pick_k_group(C, HW, HW_pad, limit)

    wmat1 = params.get("wmat1")
    if wmat1 is None:
        wmat1 = (params["w1"].transpose(0, 2, 3, 1)
                 .reshape(C, 9 * C).astype(jnp.bfloat16))
    wmat2 = params.get("wmat2")
    if wmat2 is None:
        wmat2 = (params["w2"].transpose(0, 2, 3, 1)
                 .reshape(C, 9 * C).astype(jnp.bfloat16))

    # Channels-first flat input, zero-padded past H*W so the in-kernel tap
    # slices always stay in bounds.
    x_flat = x_nchw.reshape(N, C, HW).astype(jnp.bfloat16)
    x_pad = jnp.pad(x_flat, ((0, 0), (0, 0), (0, HW_pad - HW)))

    # Per-channel affine params packed into one (C, 6) array.
    ppack = jnp.stack([params["b1"], params["g1"], params["be1"],
                       params["b2"], params["g2"], params["be2"]],
                      axis=1).astype(jnp.float32)

    # Valid-window masks for the two InstanceNorms (shared by all images).
    pos = jnp.arange(HW, dtype=jnp.int32)
    row, col = pos // W, pos % W
    m1 = ((row < H - 2) & (col < W - 2)).astype(jnp.float32)
    m2 = ((row < Ho) & (col < Wo)).astype(jnp.float32)
    masks = jnp.stack([m1, m2], axis=0)

    kernel = _make_residual_kernel(C, H, W, HW, HW_pad, k_group, eps=1e-5)
    out_full = pl.pallas_call(
        kernel,
        out_shape=jax.ShapeDtypeStruct((N, C, HW), jnp.float32),
        grid_spec=pltpu.PrefetchScalarGridSpec(
            num_scalar_prefetch=0,
            grid=(N,),
            in_specs=[
                pl.BlockSpec((None, C, HW_pad), lambda n: (n, 0, 0)),  # x (per image)
                pl.BlockSpec((C, 9 * C), lambda n: (0, 0)),            # conv1 weights
                pl.BlockSpec((C, 9 * C), lambda n: (0, 0)),            # conv2 weights
                pl.BlockSpec((C, 6), lambda n: (0, 0)),                # bias/gamma/beta
                pl.BlockSpec((2, HW), lambda n: (0, 0)),               # IN masks
            ],
            out_specs=pl.BlockSpec((None, C, HW), lambda n: (n, 0, 0)),
            scratch_shapes=[
                pltpu.VMEM((k_group * C, HW), jnp.bfloat16),   # stacked conv taps
                pltpu.VMEM((C, HW_pad), jnp.bfloat16),         # padded intermediate h
            ]),
        compiler_params=pltpu.CompilerParams(
            # TODO(synk): for N==1 on v7x, add a second "parallel" axis over
            # conv2 output-channel blocks so both TensorCores stay busy.
            dimension_semantics=("parallel",),
            vmem_limit_bytes=limit),
    )(x_pad, wmat1, wmat2, ppack, masks)

    # Crop the valid (H-4, W-4) window and add the nearest-resized residual
    # (one fused XLA pass; matches F.interpolate(mode='nearest')).
    out = out_full.reshape(N, C, H, W)[:, :, :Ho, :Wo]
    idx_h = (jnp.arange(Ho) * H) // Ho
    idx_w = (jnp.arange(Wo) * W) // Wo
    res = x_nchw[:, :, idx_h][:, :, :, idx_w]
    return out + res


# ---------------------------------------------------------------------------
# Pure-JAX f32 reference (matches the PyTorch module) + deterministic init
# ---------------------------------------------------------------------------

def reference_forward(x, p, eps=1e-5):
    def conv(x, w, b):
        y = jax.lax.conv_general_dilated(
            x, w, window_strides=(1, 1), padding="VALID",
            dimension_numbers=("NCHW", "OIHW", "NCHW"))
        return y + b[None, :, None, None]

    def inorm(x, g, be):
        m = jnp.mean(x, axis=(2, 3), keepdims=True)
        v = jnp.mean((x - m) ** 2, axis=(2, 3), keepdims=True)
        return (x - m) * jax.lax.rsqrt(v + eps) * g[None, :, None, None] \
            + be[None, :, None, None]

    h = jnp.maximum(inorm(conv(x, p["w1"], p["b1"]), p["g1"], p["be1"]), 0.0)
    o = inorm(conv(h, p["w2"], p["b2"]), p["g2"], p["be2"])
    Ho, Wo = o.shape[2], o.shape[3]
    Hi, Wi = x.shape[2], x.shape[3]
    ih = (jnp.arange(Ho) * Hi) // Ho
    iw = (jnp.arange(Wo) * Wi) // Wo
    return o + x[:, :, ih][:, :, :, iw]


def init_params(key, channels):
    def conv_init(k, c):
        k1, k2 = jax.random.split(k)
        scale = 1.0 / math.sqrt(c * 9)
        w = jax.random.normal(k1, (c, c, 3, 3), jnp.float32) * scale
        b = jax.random.normal(k2, (c,), jnp.float32) * 0.01
        return w, b

    def norm_init(k, c):
        k1, k2 = jax.random.split(k)
        return (1.0 + 0.1 * jax.random.normal(k1, (c,), jnp.float32),
                0.1 * jax.random.normal(k2, (c,), jnp.float32))

    k1, k2, k3, k4 = jax.random.split(key, 4)
    w1, b1 = conv_init(k1, channels)
    g1, be1 = norm_init(k2, channels)
    w2, b2 = conv_init(k3, channels)
    g2, be2 = norm_init(k4, channels)
    return {"w1": w1, "b1": b1, "g1": g1, "be1": be1,
            "w2": w2, "b2": b2, "g2": g2, "be2": be2}


if __name__ == "__main__":
    key = jax.random.PRNGKey(0)
    fwd = jax.jit(residual_layer_forward)
    ref_fn = jax.jit(reference_forward)

    for (N, C, H, W) in [(2, 32, 24, 24), (1, 16, 20, 28)]:
        key, kx, kp = jax.random.split(key, 3)
        x = jax.random.uniform(kx, (N, C, H, W), jnp.float32)
        params = prepare_params(init_params(kp, C))

        out = jax.block_until_ready(fwd(x, params))
        ref = jax.block_until_ready(ref_fn(x, params))

        assert out.shape == (N, C, H - 4, W - 4), out.shape
        assert bool(jnp.all(jnp.isfinite(out)))
        # bf16 MXU inputs (f32 accumulate) + InstanceNorm renormalization keep
        # the error small vs. the f32 reference.
        err = float(jnp.max(jnp.abs(out - ref)))
        assert err < 0.3, f"shape {(N, C, H, W)}: max abs err {err}"

    print("KERNEL_OK")
</pallas_src>

<mosaic_0001>
module attributes {stable_mosaic.version = 11 : i64} {
  func.func @kernel(%arg0: i32, %arg1: memref<1x32x640xbf16, #tpu.memory_space<vmem>>, %arg2: memref<32x288xbf16, #tpu.memory_space<vmem>>, %arg3: memref<32x288xbf16, #tpu.memory_space<vmem>>, %arg4: memref<32x6xf32, #tpu.memory_space<vmem>>, %arg5: memref<2x576xf32, #tpu.memory_space<vmem>>, %arg6: memref<1x32x576xf32, #tpu.memory_space<vmem>>, %arg7: memref<288x576xbf16, #tpu.memory_space<vmem>>, %arg8: memref<32x640xbf16, #tpu.memory_space<vmem>>) attributes {dimension_semantics = [#tpu.dimension_semantics<parallel>], iteration_bounds = array<i64: 2>, scalar_prefetch = 0 : i64, scratch_operands = 2 : i64, tpu.core_type = #tpu.core_type<tc>, window_params = [{transform_indices = @transform_0, window_bounds = array<i64: 1, 32, 640>}, {pipeline_mode = #tpu.pipeline_mode<synchronous>, transform_indices = @transform_1, window_bounds = array<i64: 32, 288>}, {pipeline_mode = #tpu.pipeline_mode<synchronous>, transform_indices = @transform_2, window_bounds = array<i64: 32, 288>}, {pipeline_mode = #tpu.pipeline_mode<synchronous>, transform_indices = @transform_3, window_bounds = array<i64: 32, 6>}, {pipeline_mode = #tpu.pipeline_mode<synchronous>, transform_indices = @transform_4, window_bounds = array<i64: 2, 576>}, {transform_indices = @transform_5, window_bounds = array<i64: 1, 32, 576>}]} {
    %c0 = arith.constant 0 : index
    %c0_0 = arith.constant 0 : index
    %0 = vector.load %arg4[%c0, %c0_0] : memref<32x6xf32, #tpu.memory_space<vmem>>, vector<32x6xf32>
    %1 = vector.extract_strided_slice %0 {offsets = [0, 0], sizes = [32, 1], strides = [1, 1]} : vector<32x6xf32> to vector<32x1xf32>
    %2 = vector.extract_strided_slice %0 {offsets = [0, 1], sizes = [32, 1], strides = [1, 1]} : vector<32x6xf32> to vector<32x1xf32>
    %3 = vector.extract_strided_slice %0 {offsets = [0, 2], sizes = [32, 1], strides = [1, 1]} : vector<32x6xf32> to vector<32x1xf32>
    %4 = vector.extract_strided_slice %0 {offsets = [0, 3], sizes = [32, 1], strides = [1, 1]} : vector<32x6xf32> to vector<32x1xf32>
    %5 = vector.extract_strided_slice %0 {offsets = [0, 4], sizes = [32, 1], strides = [1, 1]} : vector<32x6xf32> to vector<32x1xf32>
    %6 = vector.extract_strided_slice %0 {offsets = [0, 5], sizes = [32, 1], strides = [1, 1]} : vector<32x6xf32> to vector<32x1xf32>
    %c0_1 = arith.constant 0 : index
    %c0_2 = arith.constant 0 : index
    %7 = vector.load %arg5[%c0_1, %c0_2] : memref<2x576xf32, #tpu.memory_space<vmem>>, vector<2x576xf32>
    %8 = vector.extract_strided_slice %7 {offsets = [0, 0], sizes = [1, 576], strides = [1, 1]} : vector<2x576xf32> to vector<1x576xf32>
    %9 = vector.extract_strided_slice %7 {offsets = [1, 0], sizes = [1, 576], strides = [1, 1]} : vector<2x576xf32> to vector<1x576xf32>
    %cst = arith.constant 0.000000e+00 : f32
    %10 = vector.broadcast %cst : f32 to vector<32x576xf32>
    %c0_3 = arith.constant 0 : index
    %c0_4 = arith.constant 0 : index
    %c0_5 = arith.constant 0 : index
    %11 = vector.load %arg1[%c0_3, %c0_4, %c0_5] : memref<1x32x640xbf16, #tpu.memory_space<vmem>>, vector<1x32x576xbf16>
    %12 = vector.shape_cast %11 : vector<1x32x576xbf16> to vector<32x576xbf16>
    %c0_6 = arith.constant 0 : index
    %c0_7 = arith.constant 0 : index
    %13 = vector.load %arg7[%c0_6, %c0_7] : memref<288x576xbf16, #tpu.memory_space<vmem>>, vector<32x576xbf16>
    tpu.vector_store %arg7[%c0_6, %c0_7], %12 {strides = array<i32>} : memref<288x576xbf16, #tpu.memory_space<vmem>>, vector<32x576xbf16>,
    %c0_8 = arith.constant 0 : index
    %c0_9 = arith.constant 0 : index
    %c1 = arith.constant 1 : index
    %14 = vector.load %arg1[%c0_8, %c0_9, %c1] : memref<1x32x640xbf16, #tpu.memory_space<vmem>>, vector<1x32x576xbf16>
    %15 = vector.shape_cast %14 : vector<1x32x576xbf16> to vector<32x576xbf16>
    %c32 = arith.constant 32 : index
    %c0_10 = arith.constant 0 : index
    %16 = vector.load %arg7[%c32, %c0_10] : memref<288x576xbf16, #tpu.memory_space<vmem>>, vector<32x576xbf16>
    tpu.vector_store %arg7[%c32, %c0_10], %15 {strides = array<i32>} : memref<288x576xbf16, #tpu.memory_space<vmem>>, vector<32x576xbf16>,
    %c0_11 = arith.constant 0 : index
    %c0_12 = arith.constant 0 : index
    %c2 = arith.constant 2 : index
    %17 = vector.load %arg1[%c0_11, %c0_12, %c2] : memref<1x32x640xbf16, #tpu.memory_space<vmem>>, vector<1x32x576xbf16>
    %18 = vector.shape_cast %17 : vector<1x32x576xbf16> to vector<32x576xbf16>
    %c64 = arith.constant 64 : index
    %c0_13 = arith.constant 0 : index
    %19 = vector.load %arg7[%c64, %c0_13] : memref<288x576xbf16, #tpu.memory_space<vmem>>, vector<32x576xbf16>
    tpu.vector_store %arg7[%c64, %c0_13], %18 {strides = array<i32>} : memref<288x576xbf16, #tpu.memory_space<vmem>>, vector<32x576xbf16>,
    %c0_14 = arith.constant 0 : index
    %c0_15 = arith.constant 0 : index
    %c24 = arith.constant 24 : index
    %20 = vector.load %arg1[%c0_14, %c0_15, %c24] : memref<1x32x640xbf16, #tpu.memory_space<vmem>>, vector<1x32x576xbf16>
    %21 = vector.shape_cast %20 : vector<1x32x576xbf16> to vector<32x576xbf16>
    %c96 = arith.constant 96 : index
    %c0_16 = arith.constant 0 : index
    %22 = vector.load %arg7[%c96, %c0_16] : memref<288x576xbf16, #tpu.memory_space<vmem>>, vector<32x576xbf16>
    tpu.vector_store %arg7[%c96, %c0_16], %21 {strides = array<i32>} : memref<288x576xbf16, #tpu.memory_space<vmem>>, vector<32x576xbf16>,
    %c0_17 = arith.constant 0 : index
    %c0_18 = arith.constant 0 : index
    %c25 = arith.constant 25 : index
    %23 = vector.load %arg1[%c0_17, %c0_18, %c25] : memref<1x32x640xbf16, #tpu.memory_space<vmem>>, vector<1x32x576xbf16>
    %24 = vector.shape_cast %23 : vector<1x32x576xbf16> to vector<32x576xbf16>
    %c128 = arith.constant 128 : index
    %c0_19 = arith.constant 0 : index
    %25 = vector.load %arg7[%c128, %c0_19] : memref<288x576xbf16, #tpu.memory_space<vmem>>, vector<32x576xbf16>
    tpu.vector_store %arg7[%c128, %c0_19], %24 {strides = array<i32>} : memref<288x576xbf16, #tpu.memory_space<vmem>>, vector<32x576xbf16>,
    %c0_20 = arith.constant 0 : index
    %c0_21 = arith.constant 0 : index
    %c26 = arith.constant 26 : index
    %26 = vector.load %arg1[%c0_20, %c0_21, %c26] : memref<1x32x640xbf16, #tpu.memory_space<vmem>>, vector<1x32x576xbf16>
    %27 = vector.shape_cast %26 : vector<1x32x576xbf16> to vector<32x576xbf16>
    %c160 = arith.constant 160 : index
    %c0_22 = arith.constant 0 : index
    %28 = vector.load %arg7[%c160, %c0_22] : memref<288x576xbf16, #tpu.memory_space<vmem>>, vector<32x576xbf16>
    tpu.vector_store %arg7[%c160, %c0_22], %27 {strides = array<i32>} : memref<288x576xbf16, #tpu.memory_space<vmem>>, vector<32x576xbf16>,
    %c0_23 = arith.constant 0 : index
    %c0_24 = arith.constant 0 : index
    %c48 = arith.constant 48 : index
    %29 = vector.load %arg1[%c0_23, %c0_24, %c48] : memref<1x32x640xbf16, #tpu.memory_space<vmem>>, vector<1x32x576xbf16>
    %30 = vector.shape_cast %29 : vector<1x32x576xbf16> to vector<32x576xbf16>
    %c192 = arith.constant 192 : index
    %c0_25 = arith.constant 0 : index
    %31 = vector.load %arg7[%c192, %c0_25] : memref<288x576xbf16, #tpu.memory_space<vmem>>, vector<32x576xbf16>
    tpu.vector_store %arg7[%c192, %c0_25], %30 {strides = array<i32>} : memref<288x576xbf16, #tpu.memory_space<vmem>>, vector<32x576xbf16>,
    %c0_26 = arith.constant 0 : index
    %c0_27 = arith.constant 0 : index
    %c49 = arith.constant 49 : index
    %32 = vector.load %arg1[%c0_26, %c0_27, %c49] : memref<1x32x640xbf16, #tpu.memory_space<vmem>>, vector<1x32x576xbf16>
    %33 = vector.shape_cast %32 : vector<1x32x576xbf16> to vector<32x576xbf16>
    %c224 = arith.constant 224 : index
    %c0_28 = arith.constant 0 : index
    %34 = vector.load %arg7[%c224, %c0_28] : memref<288x576xbf16, #tpu.memory_space<vmem>>, vector<32x576xbf16>
    tpu.vector_store %arg7[%c224, %c0_28], %33 {strides = array<i32>} : memref<288x576xbf16, #tpu.memory_space<vmem>>, vector<32x576xbf16>,
    %c0_29 = arith.constant 0 : index
    %c0_30 = arith.constant 0 : index
    %c50 = arith.constant 50 : index
    %35 = vector.load %arg1[%c0_29, %c0_30, %c50] : memref<1x32x640xbf16, #tpu.memory_space<vmem>>, vector<1x32x576xbf16>
    %36 = vector.shape_cast %35 : vector<1x32x576xbf16> to vector<32x576xbf16>
    %c256 = arith.constant 256 : index
    %c0_31 = arith.constant 0 : index
    %37 = vector.load %arg7[%c256, %c0_31] : memref<288x576xbf16, #tpu.memory_space<vmem>>, vector<32x576xbf16>
    tpu.vector_store %arg7[%c256, %c0_31], %36 {strides = array<i32>} : memref<288x576xbf16, #tpu.memory_space<vmem>>, vector<32x576xbf16>,
    %c0_32 = arith.constant 0 : index
    %c0_33 = arith.constant 0 : index
    %38 = vector.load %arg2[%c0_32, %c0_33] : memref<32x288xbf16, #tpu.memory_space<vmem>>, vector<32x288xbf16>
    %c0_34 = arith.constant 0 : index
    %c0_35 = arith.constant 0 : index
    %39 = vector.load %arg7[%c0_34, %c0_35] : memref<288x576xbf16, #tpu.memory_space<vmem>>, vector<288x576xbf16>
    %cst_36 = arith.constant dense<0.000000e+00> : vector<32x576xf32>
    %40 = tpu.matmul %38, %39, %cst_36 {dimension_numbers = #tpu.dot_dimension_numbers<[1], [0], [0], [1], [0, 0, 1, 1], [], []>} : vector<32x288xbf16>, vector<288x576xbf16>, vector<32x576xf32> -> vector<32x576xf32>
    %41 = arith.addf %10, %40 : vector<32x576xf32>
    %42 = vector.broadcast %1 : vector<32x1xf32> to vector<32x576xf32>
    %43 = arith.addf %41, %42 : vector<32x576xf32>
    %44 = vector.broadcast %8 : vector<1x576xf32> to vector<32x576xf32>
    %45 = arith.mulf %43, %44 : vector<32x576xf32>
    %cst_37 = arith.constant dense<0.000000e+00> : vector<32xf32>
    %46 = vector.multi_reduction <add>, %45, %cst_37 [1] : vector<32x576xf32> to vector<32xf32>
    %47 = vector.shape_cast %46 : vector<32xf32> to vector<32x1xf32>
    %cst_38 = arith.constant 0.00206611562 : f32
    %48 = vector.broadcast %cst_38 : f32 to vector<32x1xf32>
    %49 = arith.mulf %47, %48 : vector<32x1xf32>
    %50 = arith.mulf %45, %43 : vector<32x576xf32>
    %cst_39 = arith.constant dense<0.000000e+00> : vector<32xf32>
    %51 = vector.multi_reduction <add>, %50, %cst_39 [1] : vector<32x576xf32> to vector<32xf32>
    %52 = vector.shape_cast %51 : vector<32xf32> to vector<32x1xf32>
    %cst_40 = arith.constant 0.00206611562 : f32
    %53 = vector.broadcast %cst_40 : f32 to vector<32x1xf32>
    %54 = arith.mulf %52, %53 : vector<32x1xf32>
    %55 = arith.mulf %49, %49 : vector<32x1xf32>
    %56 = arith.subf %54, %55 : vector<32x1xf32>
    %cst_41 = arith.constant 0.000000e+00 : f32
    %57 = vector.broadcast %cst_41 : f32 to vector<32x1xf32>
    %58 = arith.maximumf %56, %57 : vector<32x1xf32>
    %cst_42 = arith.constant 9.99999974E-6 : f32
    %59 = vector.broadcast %cst_42 : f32 to vector<32x1xf32>
    %60 = arith.addf %58, %59 : vector<32x1xf32>
    %61 = math.rsqrt %60 : vector<32x1xf32>
    %62 = vector.broadcast %49 : vector<32x1xf32> to vector<32x576xf32>
    %63 = arith.subf %43, %62 : vector<32x576xf32>
    %64 = arith.mulf %61, %2 : vector<32x1xf32>
    %65 = vector.broadcast %64 : vector<32x1xf32> to vector<32x576xf32>
    %66 = arith.mulf %63, %65 : vector<32x576xf32>
    %67 = vector.broadcast %3 : vector<32x1xf32> to vector<32x576xf32>
    %68 = arith.addf %66, %67 : vector<32x576xf32>
    %cst_43 = arith.constant 0.000000e+00 : f32
    %69 = vector.broadcast %cst_43 : f32 to vector<32x576xf32>
    %70 = arith.maximumf %68, %69 : vector<32x576xf32>
    %71 = arith.truncf %70 : vector<32x576xf32> to vector<32x576xbf16>
    %c0_44 = arith.constant 0 : index
    %c0_45 = arith.constant 0 : index
    %72 = vector.load %arg8[%c0_44, %c0_45] : memref<32x640xbf16, #tpu.memory_space<vmem>>, vector<32x576xbf16>
    tpu.vector_store %arg8[%c0_44, %c0_45], %71 {strides = array<i32>} : memref<32x640xbf16, #tpu.memory_space<vmem>>, vector<32x576xbf16>,
    %cst_46 = arith.constant 0.000000e+00 : bf16
    %73 = vector.broadcast %cst_46 : bf16 to vector<32x64xbf16>
    %c0_47 = arith.constant 0 : index
    %c576 = arith.constant 576 : index
    %74 = vector.load %arg8[%c0_47, %c576] : memref<32x640xbf16, #tpu.memory_space<vmem>>, vector<32x64xbf16>
    tpu.vector_store %arg8[%c0_47, %c576], %73 {strides = array<i32>} : memref<32x640xbf16, #tpu.memory_space<vmem>>, vector<32x64xbf16>,
    %cst_48 = arith.constant 0.000000e+00 : f32
    %75 = vector.broadcast %cst_48 : f32 to vector<32x576xf32>
    %c0_49 = arith.constant 0 : index
    %c0_50 = arith.constant 0 : index
    %76 = vector.load %arg8[%c0_49, %c0_50] : memref<32x640xbf16, #tpu.memory_space<vmem>>, vector<32x576xbf16>
    %c0_51 = arith.constant 0 : index
    %c0_52 = arith.constant 0 : index
    %77 = vector.load %arg7[%c0_51, %c0_52] : memref<288x576xbf16, #tpu.memory_space<vmem>>, vector<32x576xbf16>
    tpu.vector_store %arg7[%c0_51, %c0_52], %76 {strides = array<i32>} : memref<288x576xbf16, #tpu.memory_space<vmem>>, vector<32x576xbf16>,
    %c0_53 = arith.constant 0 : index
    %c1_54 = arith.constant 1 : index
    %78 = vector.load %arg8[%c0_53, %c1_54] : memref<32x640xbf16, #tpu.memory_space<vmem>>, vector<32x576xbf16>
    %c32_55 = arith.constant 32 : index
    %c0_56 = arith.constant 0 : index
    %79 = vector.load %arg7[%c32_55, %c0_56] : memref<288x576xbf16, #tpu.memory_space<vmem>>, vector<32x576xbf16>
    tpu.vector_store %arg7[%c32_55, %c0_56], %78 {strides = array<i32>} : memref<288x576xbf16, #tpu.memory_space<vmem>>, vector<32x576xbf16>,
    %c0_57 = arith.constant 0 : index
    %c2_58 = arith.constant 2 : index
    %80 = vector.load %arg8[%c0_57, %c2_58] : memref<32x640xbf16, #tpu.memory_space<vmem>>, vector<32x576xbf16>
    %c64_59 = arith.constant 64 : index
    %c0_60 = arith.constant 0 : index
    %81 = vector.load %arg7[%c64_59, %c0_60] : memref<288x576xbf16, #tpu.memory_space<vmem>>, vector<32x576xbf16>
    tpu.vector_store %arg7[%c64_59, %c0_60], %80 {strides = array<i32>} : memref<288x576xbf16, #tpu.memory_space<vmem>>, vector<32x576xbf16>,
    %c0_61 = arith.constant 0 : index
    %c24_62 = arith.constant 24 : index
    %82 = vector.load %arg8[%c0_61, %c24_62] : memref<32x640xbf16, #tpu.memory_space<vmem>>, vector<32x576xbf16>
    %c96_63 = arith.constant 96 : index
    %c0_64 = arith.constant 0 : index
    %83 = vector.load %arg7[%c96_63, %c0_64] : memref<288x576xbf16, #tpu.memory_space<vmem>>, vector<32x576xbf16>
    tpu.vector_store %arg7[%c96_63, %c0_64], %82 {strides = array<i32>} : memref<288x576xbf16, #tpu.memory_space<vmem>>, vector<32x576xbf16>,
    %c0_65 = arith.constant 0 : index
    %c25_66 = arith.constant 25 : index
    %84 = vector.load %arg8[%c0_65, %c25_66] : memref<32x640xbf16, #tpu.memory_space<vmem>>, vector<32x576xbf16>
    %c128_67 = arith.constant 128 : index
    %c0_68 = arith.constant 0 : index
    %85 = vector.load %arg7[%c128_67, %c0_68] : memref<288x576xbf16, #tpu.memory_space<vmem>>, vector<32x576xbf16>
    tpu.vector_store %arg7[%c128_67, %c0_68], %84 {strides = array<i32>} : memref<288x576xbf16, #tpu.memory_space<vmem>>, vector<32x576xbf16>,
    %c0_69 = arith.constant 0 : index
    %c26_70 = arith.constant 26 : index
    %86 = vector.load %arg8[%c0_69, %c26_70] : memref<32x640xbf16, #tpu.memory_space<vmem>>, vector<32x576xbf16>
    %c160_71 = arith.constant 160 : index
    %c0_72 = arith.constant 0 : index
    %87 = vector.load %arg7[%c160_71, %c0_72] : memref<288x576xbf16, #tpu.memory_space<vmem>>, vector<32x576xbf16>
    tpu.vector_store %arg7[%c160_71, %c0_72], %86 {strides = array<i32>} : memref<288x576xbf16, #tpu.memory_space<vmem>>, vector<32x576xbf16>,
    %c0_73 = arith.constant 0 : index
    %c48_74 = arith.constant 48 : index
    %88 = vector.load %arg8[%c0_73, %c48_74] : memref<32x640xbf16, #tpu.memory_space<vmem>>, vector<32x576xbf16>
    %c192_75 = arith.constant 192 : index
    %c0_76 = arith.constant 0 : index
    %89 = vector.load %arg7[%c192_75, %c0_76] : memref<288x576xbf16, #tpu.memory_space<vmem>>, vector<32x576xbf16>
    tpu.vector_store %arg7[%c192_75, %c0_76], %88 {strides = array<i32>} : memref<288x576xbf16, #tpu.memory_space<vmem>>, vector<32x576xbf16>,
    %c0_77 = arith.constant 0 : index
    %c49_78 = arith.constant 49 : index
    %90 = vector.load %arg8[%c0_77, %c49_78] : memref<32x640xbf16, #tpu.memory_space<vmem>>, vector<32x576xbf16>
    %c224_79 = arith.constant 224 : index
    %c0_80 = arith.constant 0 : index
    %91 = vector.load %arg7[%c224_79, %c0_80] : memref<288x576xbf16, #tpu.memory_space<vmem>>, vector<32x576xbf16>
    tpu.vector_store %arg7[%c224_79, %c0_80], %90 {strides = array<i32>} : memref<288x576xbf16, #tpu.memory_space<vmem>>, vector<32x576xbf16>,
    %c0_81 = arith.constant 0 : index
    %c50_82 = arith.constant 50 : index
    %92 = vector.load %arg8[%c0_81, %c50_82] : memref<32x640xbf16, #tpu.memory_space<vmem>>, vector<32x576xbf16>
    %c256_83 = arith.constant 256 : index
    %c0_84 = arith.constant 0 : index
    %93 = vector.load %arg7[%c256_83, %c0_84] : memref<288x576xbf16, #tpu.memory_space<vmem>>, vector<32x576xbf16>
    tpu.vector_store %arg7[%c256_83, %c0_84], %92 {strides = array<i32>} : memref<288x576xbf16, #tpu.memory_space<vmem>>, vector<32x576xbf16>,
    %c0_85 = arith.constant 0 : index
    %c0_86 = arith.constant 0 : index
    %94 = vector.load %arg3[%c0_85, %c0_86] : memref<32x288xbf16, #tpu.memory_space<vmem>>, vector<32x288xbf16>
    %c0_87 = arith.constant 0 : index
    %c0_88 = arith.constant 0 : index
    %95 = vector.load %arg7[%c0_87, %c0_88] : memref<288x576xbf16, #tpu.memory_space<vmem>>, vector<288x576xbf16>
    %cst_89 = arith.constant dense<0.000000e+00> : vector<32x576xf32>
    %96 = tpu.matmul %94, %95, %cst_89 {dimension_numbers = #tpu.dot_dimension_numbers<[1], [0], [0], [1], [0, 0, 1, 1], [], []>} : vector<32x288xbf16>, vector<288x576xbf16>, vector<32x576xf32> -> vector<32x576xf32>
    %97 = arith.addf %75, %96 : vector<32x576xf32>
    %98 = vector.broadcast %4 : vector<32x1xf32> to vector<32x576xf32>
    %99 = arith.addf %97, %98 : vector<32x576xf32>
    %100 = vector.broadcast %9 : vector<1x576xf32> to vector<32x576xf32>
    %101 = arith.mulf %99, %100 : vector<32x576xf32>
    %cst_90 = arith.constant dense<0.000000e+00> : vector<32xf32>
    %102 = vector.multi_reduction <add>, %101, %cst_90 [1] : vector<32x576xf32> to vector<32xf32>
    %103 = vector.shape_cast %102 : vector<32xf32> to vector<32x1xf32>
    %cst_91 = arith.constant 2.500000e-03 : f32
    %104 = vector.broadcast %cst_91 : f32 to vector<32x1xf32>
    %105 = arith.mulf %103, %104 : vector<32x1xf32>
    %106 = arith.mulf %101, %99 : vector<32x576xf32>
    %cst_92 = arith.constant dense<0.000000e+00> : vector<32xf32>
    %107 = vector.multi_reduction <add>, %106, %cst_92 [1] : vector<32x576xf32> to vector<32xf32>
    %108 = vector.shape_cast %107 : vector<32xf32> to vector<32x1xf32>
    %cst_93 = arith.constant 2.500000e-03 : f32
    %109 = vector.broadcast %cst_93 : f32 to vector<32x1xf32>
    %110 = arith.mulf %108, %109 : vector<32x1xf32>
    %111 = arith.mulf %105, %105 : vector<32x1xf32>
    %112 = arith.subf %110, %111 : vector<32x1xf32>
    %cst_94 = arith.constant 0.000000e+00 : f32
    %113 = vector.broadcast %cst_94 : f32 to vector<32x1xf32>
    %114 = arith.maximumf %112, %113 : vector<32x1xf32>
    %cst_95 = arith.constant 9.99999974E-6 : f32
    %115 = vector.broadcast %cst_95 : f32 to vector<32x1xf32>
    %116 = arith.addf %114, %115 : vector<32x1xf32>
    %117 = math.rsqrt %116 : vector<32x1xf32>
    %118 = vector.broadcast %105 : vector<32x1xf32> to vector<32x576xf32>
    %119 = arith.subf %99, %118 : vector<32x576xf32>
    %120 = arith.mulf %117, %5 : vector<32x1xf32>
    %121 = vector.broadcast %120 : vector<32x1xf32> to vector<32x576xf32>
    %122 = arith.mulf %119, %121 : vector<32x576xf32>
    %123 = vector.broadcast %6 : vector<32x1xf32> to vector<32x576xf32>
    %124 = arith.addf %122, %123 : vector<32x576xf32>
    %c0_96 = arith.constant 0 : index
    %c0_97 = arith.constant 0 : index
    %c0_98 = arith.constant 0 : index
    %125 = vector.load %arg6[%c0_96, %c0_97, %c0_98] : memref<1x32x576xf32, #tpu.memory_space<vmem>>, vector<1x32x576xf32>
    %126 = vector.shape_cast %125 : vector<1x32x576xf32> to vector<32x576xf32>
    %127 = vector.shape_cast %124 : vector<32x576xf32> to vector<1x32x576xf32>
    tpu.vector_store %arg6[%c0_96, %c0_97, %c0_98], %127 {strides = array<i32>} : memref<1x32x576xf32, #tpu.memory_space<vmem>>, vector<1x32x576xf32>,
    return
  }
  func.func @transform_0(%arg0: i32) -> (i32, i32, i32) {
    %c0_i32 = arith.constant 0 : i32
    %c0_i32_0 = arith.constant 0 : i32
    %c0_i32_1 = arith.constant 0 : i32
    return %arg0, %c0_i32, %c0_i32_0 : i32, i32, i32
  }
  func.func @transform_1(%arg0: i32) -> (i32, i32) {
    %c0_i32 = arith.constant 0 : i32
    %c0_i32_0 = arith.constant 0 : i32
    %c0_i32_1 = arith.constant 0 : i32
    return %c0_i32, %c0_i32_0 : i32, i32
  }
  func.func @transform_2(%arg0: i32) -> (i32, i32) {
    %c0_i32 = arith.constant 0 : i32
    %c0_i32_0 = arith.constant 0 : i32
    %c0_i32_1 = arith.constant 0 : i32
    return %c0_i32, %c0_i32_0 : i32, i32
  }
  func.func @transform_3(%arg0: i32) -> (i32, i32) {
    %c0_i32 = arith.constant 0 : i32
    %c0_i32_0 = arith.constant 0 : i32
    %c0_i32_1 = arith.constant 0 : i32
    return %c0_i32, %c0_i32_0 : i32, i32
  }
  func.func @transform_4(%arg0: i32) -> (i32, i32) {
    %c0_i32 = arith.constant 0 : i32
    %c0_i32_0 = arith.constant 0 : i32
    %c0_i32_1 = arith.constant 0 : i32
    return %c0_i32, %c0_i32_0 : i32, i32
  }
  func.func @transform_5(%arg0: i32) -> (i32, i32, i32) {
    %c0_i32 = arith.constant 0 : i32
    %c0_i32_0 = arith.constant 0 : i32
    %c0_i32_1 = arith.constant 0 : i32
    return %arg0, %c0_i32, %c0_i32_0 : i32, i32, i32
  }
}

</mosaic_0001>

<llo_original>
// kernel: residual_layer_forward.1
$region0: #{residual_layer_forward.1}
  #allocation0 [shape = 'u32[]', space=smem, size = 0x4, offset = 0x4, fixed_abs, tag = 'smem constant byte address 0x4 - core index']
  #allocation1 [shape = 'u32[72,128]{1,0:T(1,128)}', space=vmem, size = 0x9000, scoped, tag = 'internal scratch']
  #allocation2 [shape = 'bf16[288,576]{1,0:T(8,128)(2,1)}', space=vmem, size = 0x5a000, scoped, tag = 'scratch operand']
  #allocation3 [shape = 'bf16[32,640]{1,0:T(8,128)(2,1)}', space=vmem, size = 0xa000, scoped, tag = 'scratch operand']
  %s0 = inlined_call_operand.vmem [shape: bf16[2,32,640], index: 0, kind: input, shape index: {}]
  %s1 = inlined_call_operand.vmem [shape: bf16[32,288], index: 1, kind: input, shape index: {}]
  %s2 = inlined_call_operand.vmem [shape: bf16[32,288], index: 2, kind: input, shape index: {}]
  %s3 = inlined_call_operand.vmem [shape: f32[32,6], index: 3, kind: input, shape index: {}]
  %s4 = inlined_call_operand.vmem [shape: f32[2,576], index: 4, kind: input, shape index: {}]
  %s5 = inlined_call_operand.vmem [shape: f32[2,32,576], index: 5, kind: output, shape index: {}]
  %s6 = sld [smem:[#allocation0]]
  $region53: #{residual_layer_forward.1} parent=0
    _
  %s8 = ssub.s32 1, %s6
  %s9 = scalar_select 0, %s8, %s6
  loop: start=0, step=1, limit=4
  $region2: #{residual_layer_forward.1} parent=0 // loop_pre_header
    _
  $region3: #{residual_layer_forward.1} parent=0 // loop_header
    %s11 = sphi 0, %s15
    %p12 = scmp.ge.s32.totalorder %s11, 4
    %s21 = sphi 0, %s23
    %s24 = sphi 0, %s21
    %s25 = sphi 0, %s24
    %s41 = sphi 0, %s25
    %s45 = sphi 0, %s45
    %s47 = sphi 0, %s45
    %s48 = sphi 0, %s47
    %s62 = sphi 0, %s48
    %s66 = sphi 0, %s66
    %s68 = sphi 0, %s66
    %s69 = sphi 0, %s68
    %s83 = sphi 0, %s69
    %s87 = sphi 0, %s87
    %s89 = sphi 0, %s87
    %s90 = sphi 0, %s89
    %s104 = sphi 0, %s90
    %s108 = sphi 0, %s108
    %s110 = sphi 0, %s108
    %s111 = sphi 0, %s110
    %s125 = sphi 0, %s111
    %s131 = sphi 0, %s133
    %s134 = sphi 0, %s131
    %s135 = sphi 0, %s134
    %s151 = sphi 0, %s135
  $region4: #{residual_layer_forward.1} parent=0 // loop_header_branch
    %14 = sbr.rel (%p12) target = $region8
  $region5: #{residual_layer_forward.1} parent=0 // loop_body
    %s16 = ssub.s32 %s11, 1
    %s17 = ssub.s32 %s11, 2
    %s18 = sadd.s32 %s11, 1
    %s19 = ssub.s32 %s11, %s18
    %p20 = scmp.eq.s32.totalorder %s19, 0
    %s22 = sadd.s32 %s21, 1
    %s23 = scalar_select %p20, %s21, %s22
    %p26 = pneg %p20
    %p27 = scmp.eq.s32.totalorder %s11, 1
    %p28 = por %p26, %p27
    %p29 = scmp.ne.s32.totalorder %s21, %s24
    %p30 = scmp.eq.s32.totalorder %s11, 0
    %p31 = por %p29, %p30
    %p32 = scmp.ne.s32.totalorder %s21, %s24
    %p33 = scmp.eq.s32.totalorder %s16, 1
    %p34 = por %p32, %p33
    %p35 = scmp.ne.s32.totalorder %s24, %s25
    %p36 = scmp.eq.s32.totalorder %s16, 0
    %p37 = por %p35, %p36
    %p38 = scmp.ne.s32.totalorder %s24, %s25
    %p39 = scmp.eq.s32.totalorder %s17, 1
    %p40 = por %p38, %p39
    %p42 = scmp.ne.s32.totalorder %s25, %s41
    %p43 = scmp.eq.s32.totalorder %s17, 0
    %p44 = por %p42, %p43
    %s46 = sadd.s32 %s45, 1
    %p49 = scmp.eq.s32.totalorder %s11, 1
    %p50 = scmp.ne.s32.totalorder %s45, %s47
    %p51 = scmp.eq.s32.totalorder %s11, 0
    %p52 = por %p50, %p51
    %p53 = scmp.ne.s32.totalorder %s45, %s47
    %p54 = scmp.eq.s32.totalorder %s16, 1
    %p55 = por %p53, %p54
    %p56 = scmp.ne.s32.totalorder %s47, %s48
    %p57 = scmp.eq.s32.totalorder %s16, 0
    %p58 = por %p56, %p57
    %p59 = scmp.ne.s32.totalorder %s47, %s48
    %p60 = scmp.eq.s32.totalorder %s17, 1
    %p61 = por %p59, %p60
    %p63 = scmp.ne.s32.totalorder %s48, %s62
    %p64 = scmp.eq.s32.totalorder %s17, 0
    %p65 = por %p63, %p64
    %s67 = sadd.s32 %s66, 1
    %p70 = scmp.eq.s32.totalorder %s11, 1
    %p71 = scmp.ne.s32.totalorder %s66, %s68
    %p72 = scmp.eq.s32.totalorder %s11, 0
    %p73 = por %p71, %p72
    %p74 = scmp.ne.s32.totalorder %s66, %s68
    %p75 = scmp.eq.s32.totalorder %s16, 1
    %p76 = por %p74, %p75
    %p77 = scmp.ne.s32.totalorder %s68, %s69
    %p78 = scmp.eq.s32.totalorder %s16, 0
    %p79 = por %p77, %p78
    %p80 = scmp.ne.s32.totalorder %s68, %s69
    %p81 = scmp.eq.s32.totalorder %s17, 1
    %p82 = por %p80, %p81
    %p84 = scmp.ne.s32.totalorder %s69, %s83
    %p85 = scmp.eq.s32.totalorder %s17, 0
    %p86 = por %p84, %p85
    %s88 = sadd.s32 %s87, 1
    %p91 = scmp.eq.s32.totalorder %s11, 1
    %p92 = scmp.ne.s32.totalorder %s87, %s89
    %p93 = scmp.eq.s32.totalorder %s11, 0
    %p94 = por %p92, %p93
    %p95 = scmp.ne.s32.totalorder %s87, %s89
    %p96 = scmp.eq.s32.totalorder %s16, 1
    %p97 = por %p95, %p96
    %p98 = scmp.ne.s32.totalorder %s89, %s90
    %p99 = scmp.eq.s32.totalorder %s16, 0
    %p100 = por %p98, %p99
    %p101 = scmp.ne.s32.totalorder %s89, %s90
    %p102 = scmp.eq.s32.totalorder %s17, 1
    %p103 = por %p101, %p102
    %p105 = scmp.ne.s32.totalorder %s90, %s104
    %p106 = scmp.eq.s32.totalorder %s17, 0
    %p107 = por %p105, %p106
    %s109 = sadd.s32 %s108, 1
    %p112 = scmp.eq.s32.totalorder %s11, 1
    %p113 = scmp.ne.s32.totalorder %s108, %s110
    %p114 = scmp.eq.s32.totalorder %s11, 0
    %p115 = por %p113, %p114
    %p116 = scmp.ne.s32.totalorder %s108, %s110
    %p117 = scmp.eq.s32.totalorder %s16, 1
    %p118 = por %p116, %p117
    %p119 = scmp.ne.s32.totalorder %s110, %s111
    %p120 = scmp.eq.s32.totalorder %s16, 0
    %p121 = por %p119, %p120
    %p122 = scmp.ne.s32.totalorder %s110, %s111
    %p123 = scmp.eq.s32.totalorder %s17, 1
    %p124 = por %p122, %p123
    %p126 = scmp.ne.s32.totalorder %s111, %s125
    %p127 = scmp.eq.s32.totalorder %s17, 0
    %p128 = por %p126, %p127
    %s129 = ssub.s32 %s11, %s18
    %p130 = scmp.eq.s32.totalorder %s129, 0
    %s132 = sadd.s32 %s131, 1
    %s133 = scalar_select %p130, %s131, %s132
    %p136 = pneg %p130
    %p137 = scmp.eq.s32.totalorder %s11, 1
    %p138 = por %p136, %p137
    %p139 = scmp.ne.s32.totalorder %s131, %s134
    %p140 = scmp.eq.s32.totalorder %s11, 0
    %p141 = por %p139, %p140
    %p142 = scmp.ne.s32.totalorder %s131, %s134
    %p143 = scmp.eq.s32.totalorder %s16, 1
    %p144 = por %p142, %p143
    %p145 = scmp.ne.s32.totalorder %s134, %s135
    %p146 = scmp.eq.s32.totalorder %s16, 0
    %p147 = por %p145, %p146
    %p148 = scmp.ne.s32.totalorder %s134, %s135
    %p149 = scmp.eq.s32.totalorder %s17, 1
    %p150 = por %p148, %p149
    %p152 = scmp.ne.s32.totalorder %s135, %s151
    %p153 = scmp.eq.s32.totalorder %s17, 0
    %p154 = por %p152, %p153
    %p155 = scmp.le.s32.totalorder 1, %s11
    %p156 = scmp.lt.s32.totalorder %s11, 3
    %p157 = pnand %p155, %p156
    %p158 = pneg %p157
    // Predicated region
    $region9: #{residual_layer_forward.1} parent=5 // pred_check
      _
    $region10: #{residual_layer_forward.1} parent=5 // pred_check_branch
      %160 = sbr.rel (%p157) target = $region12
    $region11: #{residual_layer_forward.1} parent=5 // pred_region
      %s161 = ssub.s32 %s11, 1
      // Predicated region
      $region13: #{residual_layer_forward.1} parent=11 // pred_check
        %p162 = pneg %p58
      $region14: #{residual_layer_forward.1} parent=11 // pred_check_branch
        %164 = sbr.rel (%p162) target = $region16
      $region15: #{residual_layer_forward.1} parent=11 // pred_region
        _
      $region16: #{residual_layer_forward.1} parent=11 // pred_fallthru
        _
      // Predicated region
      $region17: #{residual_layer_forward.1} parent=11 // pred_check
        %p165 = pneg %p79
      $region18: #{residual_layer_forward.1} parent=11 // pred_check_branch
        %167 = sbr.rel (%p165) target = $region20
      $region19: #{residual_layer_forward.1} parent=11 // pred_region
        _
      $region20: #{residual_layer_forward.1} parent=11 // pred_fallthru
        _
      // Predicated region
      $region21: #{residual_layer_forward.1} parent=11 // pred_check
        %p168 = pneg %p100
      $region22: #{residual_layer_forward.1} parent=11 // pred_check_branch
        %170 = sbr.rel (%p168) target = $region24
      $region23: #{residual_layer_forward.1} parent=11 // pred_region
        _
      $region24: #{residual_layer_forward.1} parent=11 // pred_fallthru
        _
      // Predicated region
      $region25: #{residual_layer_forward.1} parent=11 // pred_check
        %p171 = pneg %p121
      $region26: #{residual_layer_forward.1} parent=11 // pred_check_branch
        %173 = sbr.rel (%p171) target = $region28
      $region27: #{residual_layer_forward.1} parent=11 // pred_region
        _
      $region28: #{residual_layer_forward.1} parent=11 // pred_fallthru
        _
    $region12: #{residual_layer_forward.1} parent=5 // pred_fallthru
      _
    %p174 = scmp.lt.s32.totalorder %s11, 2
    // Predicated region
    $region29: #{residual_layer_forward.1} parent=5 // pred_check
      %p175 = pneg %p174
    $region30: #{residual_layer_forward.1} parent=5 // pred_check_branch
      %177 = sbr.rel (%p175) target = $region32
    $region31: #{residual_layer_forward.1} parent=5 // pred_region
      // Predicated region
      $region33: #{residual_layer_forward.1} parent=31 // pred_check
        %p178 = pneg %p31
      $region34: #{residual_layer_forward.1} parent=31 // pred_check_branch
        %180 = sbr.rel (%p178) target = $region36
      $region35: #{residual_layer_forward.1} parent=31 // pred_region
        %p181 = scmp.lt.s32.totalorder %s11, 1
        %s182 = scalar_select %p181, %s11, 1
        %s183 = smul.addr %s182, 20
        %s184 = smul.addr %s183, 4
        %s185 = scalar_lea.vmem %s0, %s184
      $region36: #{residual_layer_forward.1} parent=31 // pred_fallthru
        _
    $region32: #{residual_layer_forward.1} parent=5 // pred_fallthru
      _
    %p186 = scmp.le.s32.totalorder 1, %s11
    %p187 = scmp.lt.s32.totalorder %s11, 3
    %p188 = pnand %p186, %p187
    %p189 = pneg %p188
    // Predicated region
    $region37: #{residual_layer_forward.1} parent=5 // pred_check
      _
    $region38: #{residual_layer_forward.1} parent=5 // pred_check_branch
      %191 = sbr.rel (%p188) target = $region40
    $region39: #{residual_layer_forward.1} parent=5 // pred_region
      %s192 = ssub.s32 %s11, 1
      %p193 = scmp.lt.s32.totalorder %s16, 1
      %s194 = scalar_select %p193, %s16, 1
      %s195 = smul.addr %s194, 20
      %s196 = smul.addr %s195, 4
      %s197 = scalar_lea.vmem %s0, %s196
      %p198 = pneg %p37
      %p199 = pneg %p34
      %p200 = pneg %p58
      %p201 = pneg %p55
      %p202 = pneg %p79
      %p203 = pneg %p76
      %p204 = pneg %p100
      %p205 = pneg %p97
      %p206 = pneg %p121
      %p207 = pneg %p118
      %p208 = pneg %p147
      %p209 = pneg %p144
      %p210 = scmp.lt.s32.totalorder %s16, 1
      %s211 = scalar_select %p210, %s16, 1
      %s212 = smul.addr %s211, 20
      %s213 = smul.addr %s212, 8
      %s214 = scalar_lea.vmem %s5, %s213
      %p215 = scmp.lt.s32.totalorder %s16, 1
      %s216 = scalar_select %p215, %s16, 1
      %s217 = smul.addr %s216, 20
      %s218 = smul.addr %s217, 4
      %s219 = scalar_lea.vmem %s0, %s218
      %p220 = scmp.lt.s32.totalorder %s16, 1
      %s221 = scalar_select %p220, %s16, 1
      %s222 = smul.addr %s221, 20
      %s223 = smul.addr %s222, 8
      %s224 = scalar_lea.vmem %s5, %s223
      %v226 = vld [vmem:[%s3] sm:$0xff]
      %v227 = vld [vmem:[%s3 + $0x8] sm:$0xff]
      %v228 = vld [vmem:[%s3 + $0x10] sm:$0xff]
      %v229 = vld [vmem:[%s3 + $0x18] sm:$0xff]
      %v230 = vld [vmem:[%s4] sm:$0xff]
      %v231 = vld [vmem:[%s4 + $0x8] sm:$0x3]
      %v232 = vld [vmem:[%s219] sm:$0xff]
      %v233 = vld [vmem:[%s219 + $0x8] sm:$0xff]
      %v234 = vld [vmem:[%s219 + $0x10] sm:$0xf]
      %v235 = vld [vmem:[%s219 + $0x14] sm:$0xff]
      %v236 = vld [vmem:[%s219 + $0x1c] sm:$0xff]
      %v237 = vld [vmem:[%s219 + $0x24] sm:$0xf]
      %v238 = vld [vmem:[%s219 + $0x28] sm:$0xff]
      %v239 = vld [vmem:[%s219 + $0x30] sm:$0xff]
      %v240 = vld [vmem:[%s219 + $0x38] sm:$0xf]
      %v241 = vld [vmem:[%s219 + $0x3c] sm:$0xff]
      %v242 = vld [vmem:[%s219 + $0x44] sm:$0xff]
      %v243 = vld [vmem:[%s219 + $0x4c] sm:$0xf]
      %244 = vst [vmem:[#allocation2] sm:$0xff] %v232
      %245 = vst [vmem:[#allocation2 + $0x8] sm:$0xff] %v233
      %vm246 = vcmask 519168
      %247 = vst.msk [vmem:[#allocation2 + $0x10] sm:$0xf] %vm246, %v234
      %248 = vst [vmem:[#allocation2 + $0x14] sm:$0xff] %v235
      %249 = vst [vmem:[#allocation2 + $0x1c] sm:$0xff] %v236
      %250 = vst.msk [vmem:[#allocation2 + $0x24] sm:$0xf] %vm246, %v237
      %251 = vst [vmem:[#allocation2 + $0x28] sm:$0xff] %v238
      %252 = vst [vmem:[#allocation2 + $0x30] sm:$0xff] %v239
      %253 = vst.msk [vmem:[#allocation2 + $0x38] sm:$0xf] %vm246, %v240
      %254 = vst [vmem:[#allocation2 + $0x3c] sm:$0xff] %v241
      %255 = vst [vmem:[#allocation2 + $0x44] sm:$0xff] %v242
      %256 = vst.msk [vmem:[#allocation2 + $0x4c] sm:$0xf] %vm246, %v243
      %v257 = vld [vmem:[%s219] sm:$0xff]
      %v258 = vld [vmem:[%s219 + $0x8] sm:$0xff]
      %v259 = vld [vmem:[%s219 + $0x10] sm:$0xf]
      %v260 = vld [vmem:[%s219 + $0x14] sm:$0xff]
      %v261 = vld [vmem:[%s219 + $0x1c] sm:$0xff]
      %v262 = vld [vmem:[%s219 + $0x24] sm:$0xf]
      %v263 = vld [vmem:[%s219 + $0x28] sm:$0xff]
      %v264 = vld [vmem:[%s219 + $0x30] sm:$0xff]
      %v265 = vld [vmem:[%s219 + $0x38] sm:$0xf]
      %v266 = vld [vmem:[%s219 + $0x3c] sm:$0xff]
      %v267 = vld [vmem:[%s219 + $0x44] sm:$0xff]
      %v268 = vld [vmem:[%s219 + $0x4c] sm:$0xf]
      %281 = vrot.lane.b32.xlu0 %v257, 127
      %v282 = vpop.permute.xlu0 %281
      %283 = vrot.lane.b32.xlu0 %v258, 127
      %v284 = vpop.permute.xlu0 %283
      %285 = vrot.lane.b32.xlu0 %v259, 127
      %v286 = vpop.permute.xlu0 %285
      %287 = vrot.lane.b32.xlu0 %v260, 127
      %v288 = vpop.permute.xlu0 %287
      %289 = vrot.lane.b32.xlu0 %v261, 127
      %v290 = vpop.permute.xlu0 %289
      %291 = vrot.lane.b32.xlu0 %v262, 127
      %v292 = vpop.permute.xlu0 %291
      %293 = vrot.lane.b32.xlu0 %v263, 127
      %v294 = vpop.permute.xlu0 %293
      %295 = vrot.lane.b32.xlu0 %v264, 127
      %v296 = vpop.permute.xlu0 %295
      %297 = vrot.lane.b32.xlu0 %v265, 127
      %v298 = vpop.permute.xlu0 %297
      %299 = vrot.lane.b32.xlu0 %v266, 127
      %v300 = vpop.permute.xlu0 %299
      %301 = vrot.lane.b32.xlu0 %v267, 127
      %v302 = vpop.permute.xlu0 %301
      %303 = vrot.lane.b32.xlu0 %v268, 127
      %v304 = vpop.permute.xlu0 %303
      %v305 = vrot.slane %v282, 4
      %v306 = vrot.slane %v284, 4
      %v307 = vrot.slane %v286, 4
      %v308 = vrot.slane %v288, 4
      %v309 = vrot.slane %v290, 4
      %v310 = vrot.slane %v292, 4
      %v311 = vrot.slane %v294, 4
      %v312 = vrot.slane %v296, 4
      %v313 = vrot.slane %v298, 4
      %v314 = vrot.slane %v300, 4
      %v315 = vrot.slane %v302, 4
      %v316 = vrot.slane %v304, 4
      %vm317 = vcmask 1043456
      %v318 = vsel %vm317, %v305, %v306
      %vm319 = vcmask 1039360
      %v320 = vsel %vm319, %v282, %v318
      %v321 = vsel %vm317, %v306, %v307
      %v322 = vsel %vm319, %v284, %v321
      %v323 = vsel %vm317, %v308, %v309
      %v324 = vsel %vm319, %v288, %v323
      %v325 = vsel %vm317, %v309, %v310
      %v326 = vsel %vm319, %v290, %v325
      %v327 = vsel %vm317, %v311, %v312
      %v328 = vsel %vm319, %v294, %v327
      %v329 = vsel %vm317, %v312, %v313
      %v330 = vsel %vm319, %v296, %v329
      %v331 = vsel %vm317, %v314, %v315
      %v332 = vsel %vm319, %v300, %v331
      %v333 = vsel %vm317, %v315, %v316
      %v334 = vsel %vm319, %v302, %v333
      %347 = vst [vmem:[#allocation2 + $0x50] sm:$0xff] %v320
      %348 = vst [vmem:[#allocation2 + $0x58] sm:$0xff] %v322
      %349 = vst.msk [vmem:[#allocation2 + $0x60] sm:$0xf] %vm246, %v286
      %350 = vst [vmem:[#allocation2 + $0x64] sm:$0xff] %v324
      %351 = vst [vmem:[#allocation2 + $0x6c] sm:$0xff] %v326
      %352 = vst.msk [vmem:[#allocation2 + $0x74] sm:$0xf] %vm246, %v292
      %353 = vst [vmem:[#allocation2 + $0x78] sm:$0xff] %v328
      %354 = vst [vmem:[#allocation2 + $0x80] sm:$0xff] %v330
      %355 = vst.msk [vmem:[#allocation2 + $0x88] sm:$0xf] %vm246, %v298
      %356 = vst [vmem:[#allocation2 + $0x8c] sm:$0xff] %v332
      %357 = vst [vmem:[#allocation2 + $0x94] sm:$0xff] %v334
      %358 = vst.msk [vmem:[#allocation2 + $0x9c] sm:$0xf] %vm246, %v304
      %v359 = vld [vmem:[%s219] sm:$0xff]
      %v360 = vld [vmem:[%s219 + $0x8] sm:$0xff]
      %v361 = vld [vmem:[%s219 + $0x10] sm:$0xf]
      %v362 = vld [vmem:[%s219 + $0x14] sm:$0xff]
      %v363 = vld [vmem:[%s219 + $0x1c] sm:$0xff]
      %v364 = vld [vmem:[%s219 + $0x24] sm:$0xf]
      %v365 = vld [vmem:[%s219 + $0x28] sm:$0xff]
      %v366 = vld [vmem:[%s219 + $0x30] sm:$0xff]
      %v367 = vld [vmem:[%s219 + $0x38] sm:$0xf]
      %v368 = vld [vmem:[%s219 + $0x3c] sm:$0xff]
      %v369 = vld [vmem:[%s219 + $0x44] sm:$0xff]
      %v370 = vld [vmem:[%s219 + $0x4c] sm:$0xf]
      %383 = vrot.lane.b32.xlu0 %v359, 126
      %v384 = vpop.permute.xlu0 %383
      %385 = vrot.lane.b32.xlu0 %v360, 126
      %v386 = vpop.permute.xlu0 %385
      %387 = vrot.lane.b32.xlu0 %v361, 126
      %v388 = vpop.permute.xlu0 %387
      %389 = vrot.lane.b32.xlu0 %v362, 126
      %v390 = vpop.permute.xlu0 %389
      %391 = vrot.lane.b32.xlu0 %v363, 126
      %v392 = vpop.permute.xlu0 %391
      %393 = vrot.lane.b32.xlu0 %v364, 126
      %v394 = vpop.permute.xlu0 %393
      %395 = vrot.lane.b32.xlu0 %v365, 126
      %v396 = vpop.permute.xlu0 %395
      %397 = vrot.lane.b32.xlu0 %v366, 126
      %v398 = vpop.permute.xlu0 %397
      %399 = vrot.lane.b32.xlu0 %v367, 126
      %v400 = vpop.permute.xlu0 %399
      %401 = vrot.lane.b32.xlu0 %v368, 126
      %v402 = vpop.permute.xlu0 %401
      %403 = vrot.lane.b32.xlu0 %v369, 126
      %v404 = vpop.permute.xlu0 %403
      %405 = vrot.lane.b32.xlu0 %v370, 126
      %v406 = vpop.permute.xlu0 %405
      %v407 = vrot.slane %v384, 4
      %v408 = vrot.slane %v386, 4
      %v409 = vrot.slane %v388, 4
      %v410 = vrot.slane %v390, 4
      %v411 = vrot.slane %v392, 4
      %v412 = vrot.slane %v394, 4
      %v413 = vrot.slane %v396, 4
      %v414 = vrot.slane %v398, 4
      %v415 = vrot.slane %v400, 4
      %v416 = vrot.slane %v402, 4
      %v417 = vrot.slane %v404, 4
      %v418 = vrot.slane %v406, 4
      %v419 = vsel %vm317, %v407, %v408
      %vm420 = vcmask 1031168
      %v421 = vsel %vm420, %v384, %v419
      %v422 = vsel %vm317, %v408, %v409
      %v423 = vsel %vm420, %v386, %v422
      %v424 = vsel %vm317, %v410, %v411
      %v425 = vsel %vm420, %v390, %v424
      %v426 = vsel %vm317, %v411, %v412
      %v427 = vsel %vm420, %v392, %v426
      %v428 = vsel %vm317, %v413, %v414
      %v429 = vsel %vm420, %v396, %v428
      %v430 = vsel %vm317, %v414, %v415
      %v431 = vsel %vm420, %v398, %v430
      %v432 = vsel %vm317, %v416, %v417
      %v433 = vsel %vm420, %v402, %v432
      %v434 = vsel %vm317, %v417, %v418
      %v435 = vsel %vm420, %v404, %v434
      %448 = vst [vmem:[#allocation2 + $0xa0] sm:$0xff] %v421
      %449 = vst [vmem:[#allocation2 + $0xa8] sm:$0xff] %v423
      %450 = vst.msk [vmem:[#allocation2 + $0xb0] sm:$0xf] %vm246, %v388
      %451 = vst [vmem:[#allocation2 + $0xb4] sm:$0xff] %v425
      %452 = vst [vmem:[#allocation2 + $0xbc] sm:$0xff] %v427
      %453 = vst.msk [vmem:[#allocation2 + $0xc4] sm:$0xf] %vm246, %v394
      %454 = vst [vmem:[#allocation2 + $0xc8] sm:$0xff] %v429
      %455 = vst [vmem:[#allocation2 + $0xd0] sm:$0xff] %v431
      %456 = vst.msk [vmem:[#allocation2 + $0xd8] sm:$0xf] %vm246, %v400
      %457 = vst [vmem:[#allocation2 + $0xdc] sm:$0xff] %v433
      %458 = vst [vmem:[#allocation2 + $0xe4] sm:$0xff] %v435
      %459 = vst.msk [vmem:[#allocation2 + $0xec] sm:$0xf] %vm246, %v406
      %v460 = vld [vmem:[%s219] sm:$0xff]
      %v461 = vld [vmem:[%s219 + $0x8] sm:$0xff]
      %v462 = vld [vmem:[%s219 + $0x10] sm:$0xf]
      %v463 = vld [vmem:[%s219 + $0x14] sm:$0xff]
      %v464 = vld [vmem:[%s219 + $0x1c] sm:$0xff]
      %v465 = vld [vmem:[%s219 + $0x24] sm:$0xf]
      %v466 = vld [vmem:[%s219 + $0x28] sm:$0xff]
      %v467 = vld [vmem:[%s219 + $0x30] sm:$0xff]
      %v468 = vld [vmem:[%s219 + $0x38] sm:$0xf]
      %v469 = vld [vmem:[%s219 + $0x3c] sm:$0xff]
      %v470 = vld [vmem:[%s219 + $0x44] sm:$0xff]
      %v471 = vld [vmem:[%s219 + $0x4c] sm:$0xf]
      %484 = vrot.lane.b32.xlu0 %v460, 104
      %v485 = vpop.permute.xlu0 %484
      %486 = vrot.lane.b32.xlu0 %v461, 104
      %v487 = vpop.permute.xlu0 %486
      %488 = vrot.lane.b32.xlu0 %v462, 104
      %v489 = vpop.permute.xlu0 %488
      %490 = vrot.lane.b32.xlu0 %v463, 104
      %v491 = vpop.permute.xlu0 %490
      %492 = vrot.lane.b32.xlu0 %v464, 104
      %v493 = vpop.permute.xlu0 %492
      %494 = vrot.lane.b32.xlu0 %v465, 104
      %v495 = vpop.permute.xlu0 %494
      %496 = vrot.lane.b32.xlu0 %v466, 104
      %v497 = vpop.permute.xlu0 %496
      %498 = vrot.lane.b32.xlu0 %v467, 104
      %v499 = vpop.permute.xlu0 %498
      %500 = vrot.lane.b32.xlu0 %v468, 104
      %v501 = vpop.permute.xlu0 %500
      %502 = vrot.lane.b32.xlu0 %v469, 104
      %v503 = vpop.permute.xlu0 %502
      %504 = vrot.lane.b32.xlu0 %v470, 104
      %v505 = vpop.permute.xlu0 %504
      %506 = vrot.lane.b32.xlu0 %v471, 104
      %v507 = vpop.permute.xlu0 %506
      %v508 = vrot.slane %v485, 4
      %v509 = vrot.slane %v487, 4
      %v510 = vrot.slane %v489, 4
      %v511 = vrot.slane %v491, 4
      %v512 = vrot.slane %v493, 4
      %v513 = vrot.slane %v495, 4
      %v514 = vrot.slane %v497, 4
      %v515 = vrot.slane %v499, 4
      %v516 = vrot.slane %v501, 4
      %v517 = vrot.slane %v503, 4
      %v518 = vrot.slane %v505, 4
      %v519 = vrot.slane %v507, 4
      %v520 = vsel %vm317, %v508, %v509
      %vm521 = vcmask 850944
      %v522 = vsel %vm521, %v485, %v520
      %v523 = vsel %vm317, %v509, %v510
      %v524 = vsel %vm521, %v487, %v523
      %v525 = vsel %vm317, %v511, %v512
      %v526 = vsel %vm521, %v491, %v525
      %v527 = vsel %vm317, %v512, %v513
      %v528 = vsel %vm521, %v493, %v527
      %v529 = vsel %vm317, %v514, %v515
      %v530 = vsel %vm521, %v497, %v529
      %v531 = vsel %vm317, %v515, %v516
      %v532 = vsel %vm521, %v499, %v531
      %v533 = vsel %vm317, %v517, %v518
      %v534 = vsel %vm521, %v503, %v533
      %v535 = vsel %vm317, %v518, %v519
      %v536 = vsel %vm521, %v505, %v535
      %549 = vst [vmem:[#allocation2 + $0xf0] sm:$0xff] %v522
      %550 = vst [vmem:[#allocation2 + $0xf8] sm:$0xff] %v524
      %551 = vst.msk [vmem:[#allocation2 + $0x100] sm:$0xf] %vm246, %v489
      %552 = vst [vmem:[#allocation2 + $0x104] sm:$0xff] %v526
      %553 = vst [vmem:[#allocation2 + $0x10c] sm:$0xff] %v528
      %554 = vst.msk [vmem:[#allocation2 + $0x114] sm:$0xf] %vm246, %v495
      %555 = vst [vmem:[#allocation2 + $0x118] sm:$0xff] %v530
      %556 = vst [vmem:[#allocation2 + $0x120] sm:$0xff] %v532
      %557 = vst.msk [vmem:[#allocation2 + $0x128] sm:$0xf] %vm246, %v501
      %558 = vst [vmem:[#allocation2 + $0x12c] sm:$0xff] %v534
      %559 = vst [vmem:[#allocation2 + $0x134] sm:$0xff] %v536
      %560 = vst.msk [vmem:[#allocation2 + $0x13c] sm:$0xf] %vm246, %v507
      %v561 = vld [vmem:[%s219] sm:$0xff]
      %v562 = vld [vmem:[%s219 + $0x8] sm:$0xff]
      %v563 = vld [vmem:[%s219 + $0x10] sm:$0xf]
      %v564 = vld [vmem:[%s219 + $0x14] sm:$0xff]
      %v565 = vld [vmem:[%s219 + $0x1c] sm:$0xff]
      %v566 = vld [vmem:[%s219 + $0x24] sm:$0xf]
      %v567 = vld [vmem:[%s219 + $0x28] sm:$0xff]
      %v568 = vld [vmem:[%s219 + $0x30] sm:$0xff]
      %v569 = vld [vmem:[%s219 + $0x38] sm:$0xf]
      %v570 = vld [vmem:[%s219 + $0x3c] sm:$0xff]
      %v571 = vld [vmem:[%s219 + $0x44] sm:$0xff]
      %v572 = vld [vmem:[%s219 + $0x4c] sm:$0xf]
      %585 = vrot.lane.b32.xlu0 %v561, 103
      %v586 = vpop.permute.xlu0 %585
      %587 = vrot.lane.b32.xlu0 %v562, 103
      %v588 = vpop.permute.xlu0 %587
      %589 = vrot.lane.b32.xlu0 %v563, 103
      %v590 = vpop.permute.xlu0 %589
      %591 = vrot.lane.b32.xlu0 %v564, 103
      %v592 = vpop.permute.xlu0 %591
      %593 = vrot.lane.b32.xlu0 %v565, 103
      %v594 = vpop.permute.xlu0 %593
      %595 = vrot.lane.b32.xlu0 %v566, 103
      %v596 = vpop.permute.xlu0 %595
      %597 = vrot.lane.b32.xlu0 %v567, 103
      %v598 = vpop.permute.xlu0 %597
      %599 = vrot.lane.b32.xlu0 %v568, 103
      %v600 = vpop.permute.xlu0 %599
      %601 = vrot.lane.b32.xlu0 %v569, 103
      %v602 = vpop.permute.xlu0 %601
      %603 = vrot.lane.b32.xlu0 %v570, 103
      %v604 = vpop.permute.xlu0 %603
      %605 = vrot.lane.b32.xlu0 %v571, 103
      %v606 = vpop.permute.xlu0 %605
      %607 = vrot.lane.b32.xlu0 %v572, 103
      %v608 = vpop.permute.xlu0 %607
      %v609 = vrot.slane %v586, 4
      %v610 = vrot.slane %v588, 4
      %v611 = vrot.slane %v590, 4
      %v612 = vrot.slane %v592, 4
      %v613 = vrot.slane %v594, 4
      %v614 = vrot.slane %v596, 4
      %v615 = vrot.slane %v598, 4
      %v616 = vrot.slane %v600, 4
      %v617 = vrot.slane %v602, 4
      %v618 = vrot.slane %v604, 4
      %v619 = vrot.slane %v606, 4
      %v620 = vrot.slane %v608, 4
      %v621 = vsel %vm317, %v609, %v610
      %vm622 = vcmask 842752
      %v623 = vsel %vm622, %v586, %v621
      %v624 = vsel %vm317, %v610, %v611
      %v625 = vsel %vm622, %v588, %v624
      %v626 = vsel %vm317, %v612, %v613
      %v627 = vsel %vm622, %v592, %v626
      %v628 = vsel %vm317, %v613, %v614
      %v629 = vsel %vm622, %v594, %v628
      %v630 = vsel %vm317, %v615, %v616
      %v631 = vsel %vm622, %v598, %v630
      %v632 = vsel %vm317, %v616, %v617
      %v633 = vsel %vm622, %v600, %v632
      %v634 = vsel %vm317, %v618, %v619
      %v635 = vsel %vm622, %v604, %v634
      %v636 = vsel %vm317, %v619, %v620
      %v637 = vsel %vm622, %v606, %v636
      %650 = vst [vmem:[#allocation2 + $0x140] sm:$0xff] %v623
      %651 = vst [vmem:[#allocation2 + $0x148] sm:$0xff] %v625
      %652 = vst.msk [vmem:[#allocation2 + $0x150] sm:$0xf] %vm246, %v590
      %653 = vst [vmem:[#allocation2 + $0x154] sm:$0xff] %v627
      %654 = vst [vmem:[#allocation2 + $0x15c] sm:$0xff] %v629
      %655 = vst.msk [vmem:[#allocation2 + $0x164] sm:$0xf] %vm246, %v596
      %656 = vst [vmem:[#allocation2 + $0x168] sm:$0xff] %v631
      %657 = vst [vmem:[#allocation2 + $0x170] sm:$0xff] %v633
      %658 = vst.msk [vmem:[#allocation2 + $0x178] sm:$0xf] %vm246, %v602
      %659 = vst [vmem:[#allocation2 + $0x17c] sm:$0xff] %v635
      %660 = vst [vmem:[#allocation2 + $0x184] sm:$0xff] %v637
      %661 = vst.msk [vmem:[#allocation2 + $0x18c] sm:$0xf] %vm246, %v608
      %v662 = vld [vmem:[%s219] sm:$0xff]
      %v663 = vld [vmem:[%s219 + $0x8] sm:$0xff]
      %v664 = vld [vmem:[%s219 + $0x10] sm:$0xf]
      %v665 = vld [vmem:[%s219 + $0x14] sm:$0xff]
      %v666 = vld [vmem:[%s219 + $0x1c] sm:$0xff]
      %v667 = vld [vmem:[%s219 + $0x24] sm:$0xf]
      %v668 = vld [vmem:[%s219 + $0x28] sm:$0xff]
      %v669 = vld [vmem:[%s219 + $0x30] sm:$0xff]
      %v670 = vld [vmem:[%s219 + $0x38] sm:$0xf]
      %v671 = vld [vmem:[%s219 + $0x3c] sm:$0xff]
      %v672 = vld [vmem:[%s219 + $0x44] sm:$0xff]
      %v673 = vld [vmem:[%s219 + $0x4c] sm:$0xf]
      %686 = vrot.lane.b32.xlu0 %v662, 102
      %v687 = vpop.permute.xlu0 %686
      %688 = vrot.lane.b32.xlu0 %v663, 102
      %v689 = vpop.permute.xlu0 %688
      %690 = vrot.lane.b32.xlu0 %v664, 102
      %v691 = vpop.permute.xlu0 %690
      %692 = vrot.lane.b32.xlu0 %v665, 102
      %v693 = vpop.permute.xlu0 %692
      %694 = vrot.lane.b32.xlu0 %v666, 102
      %v695 = vpop.permute.xlu0 %694
      %696 = vrot.lane.b32.xlu0 %v667, 102
      %v697 = vpop.permute.xlu0 %696
      %698 = vrot.lane.b32.xlu0 %v668, 102
      %v699 = vpop.permute.xlu0 %698
      %700 = vrot.lane.b32.xlu0 %v669, 102
      %v701 = vpop.permute.xlu0 %700
      %702 = vrot.lane.b32.xlu0 %v670, 102
      %v703 = vpop.permute.xlu0 %702
      %704 = vrot.lane.b32.xlu0 %v671, 102
      %v705 = vpop.permute.xlu0 %704
      %706 = vrot.lane.b32.xlu0 %v672, 102
      %v707 = vpop.permute.xlu0 %706
      %708 = vrot.lane.b32.xlu0 %v673, 102
      %v709 = vpop.permute.xlu0 %708
      %v710 = vrot.slane %v687, 4
      %v711 = vrot.slane %v689, 4
      %v712 = vrot.slane %v691, 4
      %v713 = vrot.slane %v693, 4
      %v714 = vrot.slane %v695, 4
      %v715 = vrot.slane %v697, 4
      %v716 = vrot.slane %v699, 4
      %v717 = vrot.slane %v701, 4
      %v718 = vrot.slane %v703, 4
      %v719 = vrot.slane %v705, 4
      %v720 = vrot.slane %v707, 4
      %v721 = vrot.slane %v709, 4
      %v722 = vsel %vm317, %v710, %v711
      %vm723 = vcmask 834560
      %v724 = vsel %vm723, %v687, %v722
      %v725 = vsel %vm317, %v711, %v712
      %v726 = vsel %vm723, %v689, %v725
      %v727 = vsel %vm317, %v713, %v714
      %v728 = vsel %vm723, %v693, %v727
      %v729 = vsel %vm317, %v714, %v715
      %v730 = vsel %vm723, %v695, %v729
      %v731 = vsel %vm317, %v716, %v717
      %v732 = vsel %vm723, %v699, %v731
      %v733 = vsel %vm317, %v717, %v718
      %v734 = vsel %vm723, %v701, %v733
      %v735 = vsel %vm317, %v719, %v720
      %v736 = vsel %vm723, %v705, %v735
      %v737 = vsel %vm317, %v720, %v721
      %v738 = vsel %vm723, %v707, %v737
      %751 = vst [vmem:[#allocation2 + $0x190] sm:$0xff] %v724
      %752 = vst [vmem:[#allocation2 + $0x198] sm:$0xff] %v726
      %753 = vst.msk [vmem:[#allocation2 + $0x1a0] sm:$0xf] %vm246, %v691
      %754 = vst [vmem:[#allocation2 + $0x1a4] sm:$0xff] %v728
      %755 = vst [vmem:[#allocation2 + $0x1ac] sm:$0xff] %v730
      %756 = vst.msk [vmem:[#allocation2 + $0x1b4] sm:$0xf] %vm246, %v697
      %757 = vst [vmem:[#allocation2 + $0x1b8] sm:$0xff] %v732
      %758 = vst [vmem:[#allocation2 + $0x1c0] sm:$0xff] %v734
      %759 = vst.msk [vmem:[#allocation2 + $0x1c8] sm:$0xf] %vm246, %v703
      %760 = vst [vmem:[#allocation2 + $0x1cc] sm:$0xff] %v736
      %761 = vst [vmem:[#allocation2 + $0x1d4] sm:$0xff] %v738
      %762 = vst.msk [vmem:[#allocation2 + $0x1dc] sm:$0xf] %vm246, %v709
      %v763 = vld [vmem:[%s219] sm:$0xff]
      %v764 = vld [vmem:[%s219 + $0x8] sm:$0xff]
      %v765 = vld [vmem:[%s219 + $0x10] sm:$0xf]
      %v766 = vld [vmem:[%s219 + $0x14] sm:$0xff]
      %v767 = vld [vmem:[%s219 + $0x1c] sm:$0xff]
      %v768 = vld [vmem:[%s219 + $0x24] sm:$0xf]
      %v769 = vld [vmem:[%s219 + $0x28] sm:$0xff]
      %v770 = vld [vmem:[%s219 + $0x30] sm:$0xff]
      %v771 = vld [vmem:[%s219 + $0x38] sm:$0xf]
      %v772 = vld [vmem:[%s219 + $0x3c] sm:$0xff]
      %v773 = vld [vmem:[%s219 + $0x44] sm:$0xff]
      %v774 = vld [vmem:[%s219 + $0x4c] sm:$0xf]
      %787 = vrot.lane.b32.xlu0 %v763, 80
      %v788 = vpop.permute.xlu0 %787
      %789 = vrot.lane.b32.xlu0 %v764, 80
      %v790 = vpop.permute.xlu0 %789
      %791 = vrot.lane.b32.xlu0 %v765, 80
      %v792 = vpop.permute.xlu0 %791
      %793 = vrot.lane.b32.xlu0 %v766, 80
      %v794 = vpop.permute.xlu0 %793
      %795 = vrot.lane.b32.xlu0 %v767, 80
      %v796 = vpop.permute.xlu0 %795
      %797 = vrot.lane.b32.xlu0 %v768, 80
      %v798 = vpop.permute.xlu0 %797
      %799 = vrot.lane.b32.xlu0 %v769, 80
      %v800 = vpop.permute.xlu0 %799
      %801 = vrot.lane.b32.xlu0 %v770, 80
      %v802 = vpop.permute.xlu0 %801
      %803 = vrot.lane.b32.xlu0 %v771, 80
      %v804 = vpop.permute.xlu0 %803
      %805 = vrot.lane.b32.xlu0 %v772, 80
      %v806 = vpop.permute.xlu0 %805
      %807 = vrot.lane.b32.xlu0 %v773, 80
      %v808 = vpop.permute.xlu0 %807
      %809 = vrot.lane.b32.xlu0 %v774, 80
      %v810 = vpop.permute.xlu0 %809
      %v811 = vrot.slane %v788, 4
      %v812 = vrot.slane %v790, 4
      %v813 = vrot.slane %v792, 4
      %v814 = vrot.slane %v794, 4
      %v815 = vrot.slane %v796, 4
      %v816 = vrot.slane %v798, 4
      %v817 = vrot.slane %v800, 4
      %v818 = vrot.slane %v802, 4
      %v819 = vrot.slane %v804, 4
      %v820 = vrot.slane %v806, 4
      %v821 = vrot.slane %v808, 4
      %v822 = vrot.slane %v810, 4
      %v823 = vsel %vm317, %v811, %v812
      %vm824 = vcmask 654336
      %v825 = vsel %vm824, %v788, %v823
      %v826 = vsel %vm317, %v812, %v813
      %v827 = vsel %vm824, %v790, %v826
      %v828 = vsel %vm317, %v814, %v815
      %v829 = vsel %vm824, %v794, %v828
      %v830 = vsel %vm317, %v815, %v816
      %v831 = vsel %vm824, %v796, %v830
      %v832 = vsel %vm317, %v817, %v818
      %v833 = vsel %vm824, %v800, %v832
      %v834 = vsel %vm317, %v818, %v819
      %v835 = vsel %vm824, %v802, %v834
      %v836 = vsel %vm317, %v820, %v821
      %v837 = vsel %vm824, %v806, %v836
      %v838 = vsel %vm317, %v821, %v822
      %v839 = vsel %vm824, %v808, %v838
      %852 = vst [vmem:[#allocation2 + $0x1e0] sm:$0xff] %v825
      %853 = vst [vmem:[#allocation2 + $0x1e8] sm:$0xff] %v827
      %854 = vst.msk [vmem:[#allocation2 + $0x1f0] sm:$0xf] %vm246, %v792
      %855 = vst [vmem:[#allocation2 + $0x1f4] sm:$0xff] %v829
      %856 = vst [vmem:[#allocation2 + $0x1fc] sm:$0xff] %v831
      %857 = vst.msk [vmem:[#allocation2 + $0x204] sm:$0xf] %vm246, %v798
      %858 = vst [vmem:[#allocation2 + $0x208] sm:$0xff] %v833
      %859 = vst [vmem:[#allocation2 + $0x210] sm:$0xff] %v835
      %860 = vst.msk [vmem:[#allocation2 + $0x218] sm:$0xf] %vm246, %v804
      %861 = vst [vmem:[#allocation2 + $0x21c] sm:$0xff] %v837
      %862 = vst [vmem:[#allocation2 + $0x224] sm:$0xff] %v839
      %863 = vst.msk [vmem:[#allocation2 + $0x22c] sm:$0xf] %vm246, %v810
      %v864 = vld [vmem:[%s219] sm:$0xff]
      %v865 = vld [vmem:[%s219 + $0x8] sm:$0xff]
      %v866 = vld [vmem:[%s219 + $0x10] sm:$0xf]
      %v867 = vld [vmem:[%s219 + $0x14] sm:$0xff]
      %v868 = vld [vmem:[%s219 + $0x1c] sm:$0xff]
      %v869 = vld [vmem:[%s219 + $0x24] sm:$0xf]
      %v870 = vld [vmem:[%s219 + $0x28] sm:$0xff]
      %v871 = vld [vmem:[%s219 + $0x30] sm:$0xff]
      %v872 = vld [vmem:[%s219 + $0x38] sm:$0xf]
      %v873 = vld [vmem:[%s219 + $0x3c] sm:$0xff]
      %v874 = vld [vmem:[%s219 + $0x44] sm:$0xff]
      %v875 = vld [vmem:[%s219 + $0x4c] sm:$0xf]
      %888 = vrot.lane.b32.xlu0 %v864, 79
      %v889 = vpop.permute.xlu0 %888
      %890 = vrot.lane.b32.xlu0 %v865, 79
      %v891 = vpop.permute.xlu0 %890
      %892 = vrot.lane.b32.xlu0 %v866, 79
      %v893 = vpop.permute.xlu0 %892
      %894 = vrot.lane.b32.xlu0 %v867, 79
      %v895 = vpop.permute.xlu0 %894
      %896 = vrot.lane.b32.xlu0 %v868, 79
      %v897 = vpop.permute.xlu0 %896
      %898 = vrot.lane.b32.xlu0 %v869, 79
      %v899 = vpop.permute.xlu0 %898
      %900 = vrot.lane.b32.xlu0 %v870, 79
      %v901 = vpop.permute.xlu0 %900
      %902 = vrot.lane.b32.xlu0 %v871, 79
      %v903 = vpop.permute.xlu0 %902
      %904 = vrot.lane.b32.xlu0 %v872, 79
      %v905 = vpop.permute.xlu0 %904
      %906 = vrot.lane.b32.xlu0 %v873, 79
      %v907 = vpop.permute.xlu0 %906
      %908 = vrot.lane.b32.xlu0 %v874, 79
      %v909 = vpop.permute.xlu0 %908
      %910 = vrot.lane.b32.xlu0 %v875, 79
      %v911 = vpop.permute.xlu0 %910
      %v912 = vrot.slane %v889, 4
      %v913 = vrot.slane %v891, 4
      %v914 = vrot.slane %v893, 4
      %v915 = vrot.slane %v895, 4
      %v916 = vrot.slane %v897, 4
      %v917 = vrot.slane %v899, 4
      %v918 = vrot.slane %v901, 4
      %v919 = vrot.slane %v903, 4
      %v920 = vrot.slane %v905, 4
      %v921 = vrot.slane %v907, 4
      %v922 = vrot.slane %v909, 4
      %v923 = vrot.slane %v911, 4
      %v924 = vsel %vm317, %v912, %v913
      %vm925 = vcmask 646144
      %v926 = vsel %vm925, %v889, %v924
      %v927 = vsel %vm317, %v913, %v914
      %v928 = vsel %vm925, %v891, %v927
      %v929 = vsel %vm317, %v915, %v916
      %v930 = vsel %vm925, %v895, %v929
      %v931 = vsel %vm317, %v916, %v917
      %v932 = vsel %vm925, %v897, %v931
      %v933 = vsel %vm317, %v918, %v919
      %v934 = vsel %vm925, %v901, %v933
      %v935 = vsel %vm317, %v919, %v920
      %v936 = vsel %vm925, %v903, %v935
      %v937 = vsel %vm317, %v921, %v922
      %v938 = vsel %vm925, %v907, %v937
      %v939 = vsel %vm317, %v922, %v923
      %v940 = vsel %vm925, %v909, %v939
      %953 = vst [vmem:[#allocation2 + $0x230] sm:$0xff] %v926
      %954 = vst [vmem:[#allocation2 + $0x238] sm:$0xff] %v928
      %955 = vst.msk [vmem:[#allocation2 + $0x240] sm:$0xf] %vm246, %v893
      %956 = vst [vmem:[#allocation2 + $0x244] sm:$0xff] %v930
      %957 = vst [vmem:[#allocation2 + $0x24c] sm:$0xff] %v932
      %958 = vst.msk [vmem:[#allocation2 + $0x254] sm:$0xf] %vm246, %v899
      %959 = vst [vmem:[#allocation2 + $0x258] sm:$0xff] %v934
      %960 = vst [vmem:[#allocation2 + $0x260] sm:$0xff] %v936
      %961 = vst.msk [vmem:[#allocation2 + $0x268] sm:$0xf] %vm246, %v905
      %962 = vst [vmem:[#allocation2 + $0x26c] sm:$0xff] %v938
      %963 = vst [vmem:[#allocation2 + $0x274] sm:$0xff] %v940
      %964 = vst.msk [vmem:[#allocation2 + $0x27c] sm:$0xf] %vm246, %v911
      %v965 = vld [vmem:[%s219] sm:$0xff]
      %v966 = vld [vmem:[%s219 + $0x8] sm:$0xff]
      %v967 = vld [vmem:[%s219 + $0x10] sm:$0xf]
      %v968 = vld [vmem:[%s219 + $0x14] sm:$0xff]
      %v969 = vld [vmem:[%s219 + $0x1c] sm:$0xff]
      %v970 = vld [vmem:[%s219 + $0x24] sm:$0xf]
      %v971 = vld [vmem:[%s219 + $0x28] sm:$0xff]
      %v972 = vld [vmem:[%s219 + $0x30] sm:$0xff]
      %v973 = vld [vmem:[%s219 + $0x38] sm:$0xf]
      %v974 = vld [vmem:[%s219 + $0x3c] sm:$0xff]
      %v975 = vld [vmem:[%s219 + $0x44] sm:$0xff]
      %v976 = vld [vmem:[%s219 + $0x4c] sm:$0xf]
      %989 = vrot.lane.b32.xlu0 %v965, 78
      %v990 = vpop.permute.xlu0 %989
      %991 = vrot.lane.b32.xlu0 %v966, 78
      %v992 = vpop.permute.xlu0 %991
      %993 = vrot.lane.b32.xlu0 %v967, 78
      %v994 = vpop.permute.xlu0 %993
      %995 = vrot.lane.b32.xlu0 %v968, 78
      %v996 = vpop.permute.xlu0 %995
      %997 = vrot.lane.b32.xlu0 %v969, 78
      %v998 = vpop.permute.xlu0 %997
      %999 = vrot.lane.b32.xlu0 %v970, 78
      %v1000 = vpop.permute.xlu0 %999
      %1001 = vrot.lane.b32.xlu0 %v971, 78
      %v1002 = vpop.permute.xlu0 %1001
      %1003 = vrot.lane.b32.xlu0 %v972, 78
      %v1004 = vpop.permute.xlu0 %1003
      %1005 = vrot.lane.b32.xlu0 %v973, 78
      %v1006 = vpop.permute.xlu0 %1005
      %1007 = vrot.lane.b32.xlu0 %v974, 78
      %v1008 = vpop.permute.xlu0 %1007
      %1009 = vrot.lane.b32.xlu0 %v975, 78
      %v1010 = vpop.permute.xlu0 %1009
      %1011 = vrot.lane.b32.xlu0 %v976, 78
      %v1012 = vpop.permute.xlu0 %1011
      %v1013 = vrot.slane %v990, 4
      %v1014 = vrot.slane %v992, 4
      %v1015 = vrot.slane %v994, 4
      %v1016 = vrot.slane %v996, 4
      %v1017 = vrot.slane %v998, 4
      %v1018 = vrot.slane %v1000, 4
      %v1019 = vrot.slane %v1002, 4
      %v1020 = vrot.slane %v1004, 4
      %v1021 = vrot.slane %v1006, 4
      %v1022 = vrot.slane %v1008, 4
      %v1023 = vrot.slane %v1010, 4
      %v1024 = vrot.slane %v1012, 4
      %v1025 = vsel %vm317, %v1013, %v1014
      %vm1026 = vcmask 637952
      %v1027 = vsel %vm1026, %v990, %v1025
      %v1028 = vsel %vm317, %v1014, %v1015
      %v1029 = vsel %vm1026, %v992, %v1028
      %v1030 = vsel %vm317, %v1016, %v1017
      %v1031 = vsel %vm1026, %v996, %v1030
      %v1032 = vsel %vm317, %v1017, %v1018
      %v1033 = vsel %vm1026, %v998, %v1032
      %v1034 = vsel %vm317, %v1019, %v1020
      %v1035 = vsel %vm1026, %v1002, %v1034
      %v1036 = vsel %vm317, %v1020, %v1021
      %v1037 = vsel %vm1026, %v1004, %v1036
      %v1038 = vsel %vm317, %v1022, %v1023
      %v1039 = vsel %vm1026, %v1008, %v1038
      %v1040 = vsel %vm317, %v1023, %v1024
      %v1041 = vsel %vm1026, %v1010, %v1040
      %1054 = vst [vmem:[#allocation2 + $0x280] sm:$0xff] %v1027
      %1055 = vst [vmem:[#allocation2 + $0x288] sm:$0xff] %v1029
      %1056 = vst.msk [vmem:[#allocation2 + $0x290] sm:$0xf] %vm246, %v994
      %1057 = vst [vmem:[#allocation2 + $0x294] sm:$0xff] %v1031
      %1058 = vst [vmem:[#allocation2 + $0x29c] sm:$0xff] %v1033
      %1059 = vst.msk [vmem:[#allocation2 + $0x2a4] sm:$0xf] %vm246, %v1000
      %1060 = vst [vmem:[#allocation2 + $0x2a8] sm:$0xff] %v1035
      %1061 = vst [vmem:[#allocation2 + $0x2b0] sm:$0xff] %v1037
      %1062 = vst.msk [vmem:[#allocation2 + $0x2b8] sm:$0xf] %vm246, %v1006
      %1063 = vst [vmem:[#allocation2 + $0x2bc] sm:$0xff] %v1039
      %1064 = vst [vmem:[#allocation2 + $0x2c4] sm:$0xff] %v1041
      %1065 = vst.msk [vmem:[#allocation2 + $0x2cc] sm:$0xf] %vm246, %v1012
      %v1066 = vld [vmem:[%s1] sm:$0xff]
      %v1067 = vld [vmem:[%s1 + $0x8] sm:$0xf]
      %v1068 = vld [vmem:[%s1 + $0xc] sm:$0xff]
      %v1069 = vld [vmem:[%s1 + $0x14] sm:$0xf]
      %v1070 = vld [vmem:[%s1 + $0x18] sm:$0xff]
      %v1071 = vld [vmem:[%s1 + $0x20] sm:$0xf]
      %v1072 = vld [vmem:[%s1 + $0x24] sm:$0xff]
      %v1073 = vld [vmem:[%s1 + $0x2c] sm:$0xf]
      %v1074 = vld [vmem:[#allocation2] sm:$0xff]
      %v1075 = vld [vmem:[#allocation2 + $0x8] sm:$0xff]
      %v1076 = vld [vmem:[#allocation2 + $0x10] sm:$0xf]
      %v1077 = vld [vmem:[#allocation2 + $0x14] sm:$0xff]
      %v1078 = vld [vmem:[#allocation2 + $0x1c] sm:$0xff]
      %v1079 = vld [vmem:[#allocation2 + $0x24] sm:$0xf]
      %v1080 = vld [vmem:[#allocation2 + $0x28] sm:$0xff]
      %v1081 = vld [vmem:[#allocation2 + $0x30] sm:$0xff]
      %v1082 = vld [vmem:[#allocation2 + $0x38] sm:$0xf]
      %v1083 = vld [vmem:[#allocation2 + $0x3c] sm:$0xff]
      %v1084 = vld [vmem:[#allocation2 + $0x44] sm:$0xff]
      %v1085 = vld [vmem:[#allocation2 + $0x4c] sm:$0xf]
      %v1086 = vld [vmem:[#allocation2 + $0x50] sm:$0xff]
      %v1087 = vld [vmem:[#allocation2 + $0x58] sm:$0xff]
      %v1088 = vld [vmem:[#allocation2 + $0x60] sm:$0xf]
      %v1089 = vld [vmem:[#allocation2 + $0x64] sm:$0xff]
      %v1090 = vld [vmem:[#allocation2 + $0x6c] sm:$0xff]
      %v1091 = vld [vmem:[#allocation2 + $0x74] sm:$0xf]
      %v1092 = vld [vmem:[#allocation2 + $0x78] sm:$0xff]
      %v1093 = vld [vmem:[#allocation2 + $0x80] sm:$0xff]
      %v1094 = vld [vmem:[#allocation2 + $0x88] sm:$0xf]
      %v1095 = vld [vmem:[#allocation2 + $0x8c] sm:$0xff]
      %v1096 = vld [vmem:[#allocation2 + $0x94] sm:$0xff]
      %v1097 = vld [vmem:[#allocation2 + $0x9c] sm:$0xf]
      %v1098 = vld [vmem:[#allocation2 + $0xa0] sm:$0xff]
      %v1099 = vld [vmem:[#allocation2 + $0xa8] sm:$0xff]
      %v1100 = vld [vmem:[#allocation2 + $0xb0] sm:$0xf]
      %v1101 = vld [vmem:[#allocation2 + $0xb4] sm:$0xff]
      %v1102 = vld [vmem:[#allocation2 + $0xbc] sm:$0xff]
      %v1103 = vld [vmem:[#allocation2 + $0xc4] sm:$0xf]
      %v1104 = vld [vmem:[#allocation2 + $0xc8] sm:$0xff]
      %v1105 = vld [vmem:[#allocation2 + $0xd0] sm:$0xff]
      %v1106 = vld [vmem:[#allocation2 + $0xd8] sm:$0xf]
      %v1107 = vld [vmem:[#allocation2 + $0xdc] sm:$0xff]
      %v1108 = vld [vmem:[#allocation2 + $0xe4] sm:$0xff]
      %v1109 = vld [vmem:[#allocation2 + $0xec] sm:$0xf]
      %v1110 = vld [vmem:[#allocation2 + $0xf0] sm:$0xff]
      %v1111 = vld [vmem:[#allocation2 + $0xf8] sm:$0xff]
      %v1112 = vld [vmem:[#allocation2 + $0x100] sm:$0xf]
      %v1113 = vld [vmem:[#allocation2 + $0x104] sm:$0xff]
      %v1114 = vld [vmem:[#allocation2 + $0x10c] sm:$0xff]
      %v1115 = vld [vmem:[#allocation2 + $0x114] sm:$0xf]
      %v1116 = vld [vmem:[#allocation2 + $0x118] sm:$0xff]
      %v1117 = vld [vmem:[#allocation2 + $0x120] sm:$0xff]
      %v1118 = vld [vmem:[#allocation2 + $0x128] sm:$0xf]
      %v1119 = vld [vmem:[#allocation2 + $0x12c] sm:$0xff]
      %v1120 = vld [vmem:[#allocation2 + $0x134] sm:$0xff]
      %v1121 = vld [vmem:[#allocation2 + $0x13c] sm:$0xf]
      %v1122 = vld [vmem:[#allocation2 + $0x140] sm:$0xff]
      %v1123 = vld [vmem:[#allocation2 + $0x148] sm:$0xff]
      %v1124 = vld [vmem:[#allocation2 + $0x150] sm:$0xf]
      %v1125 = vld [vmem:[#allocation2 + $0x154] sm:$0xff]
      %v1126 = vld [vmem:[#allocation2 + $0x15c] sm:$0xff]
      %v1127 = vld [vmem:[#allocation2 + $0x164] sm:$0xf]
      %v1128 = vld [vmem:[#allocation2 + $0x168] sm:$0xff]
      %v1129 = vld [vmem:[#allocation2 + $0x170] sm:$0xff]
      %v1130 = vld [vmem:[#allocation2 + $0x178] sm:$0xf]
      %v1131 = vld [vmem:[#allocation2 + $0x17c] sm:$0xff]
      %v1132 = vld [vmem:[#allocation2 + $0x184] sm:$0xff]
      %v1133 = vld [vmem:[#allocation2 + $0x18c] sm:$0xf]
      %v1134 = vld [vmem:[#allocation2 + $0x190] sm:$0xff]
      %v1135 = vld [vmem:[#allocation2 + $0x198] sm:$0xff]
      %v1136 = vld [vmem:[#allocation2 + $0x1a0] sm:$0xf]
      %v1137 = vld [vmem:[#allocation2 + $0x1a4] sm:$0xff]
      %v1138 = vld [vmem:[#allocation2 + $0x1ac] sm:$0xff]
      %v1139 = vld [vmem:[#allocation2 + $0x1b4] sm:$0xf]
      %v1140 = vld [vmem:[#allocation2 + $0x1b8] sm:$0xff]
      %v1141 = vld [vmem:[#allocation2 + $0x1c0] sm:$0xff]
      %v1142 = vld [vmem:[#allocation2 + $0x1c8] sm:$0xf]
      %v1143 = vld [vmem:[#allocation2 + $0x1cc] sm:$0xff]
      %v1144 = vld [vmem:[#allocation2 + $0x1d4] sm:$0xff]
      %v1145 = vld [vmem:[#allocation2 + $0x1dc] sm:$0xf]
      %v1146 = vld [vmem:[#allocation2 + $0x1e0] sm:$0xff]
      %v1147 = vld [vmem:[#allocation2 + $0x1e8] sm:$0xff]
      %v1148 = vld [vmem:[#allocation2 + $0x1f0] sm:$0xf]
      %v1149 = vld [vmem:[#allocation2 + $0x1f4] sm:$0xff]
      %v1150 = vld [vmem:[#allocation2 + $0x1fc] sm:$0xff]
      %v1151 = vld [vmem:[#allocation2 + $0x204] sm:$0xf]
      %v1152 = vld [vmem:[#allocation2 + $0x208] sm:$0xff]
      %v1153 = vld [vmem:[#allocation2 + $0x210] sm:$0xff]
      %v1154 = vld [vmem:[#allocation2 + $0x218] sm:$0xf]
      %v1155 = vld [vmem:[#allocation2 + $0x21c] sm:$0xff]
      %v1156 = vld [vmem:[#allocation2 + $0x224] sm:$0xff]
      %v1157 = vld [vmem:[#allocation2 + $0x22c] sm:$0xf]
      %v1158 = vld [vmem:[#allocation2 + $0x230] sm:$0xff]
      %v1159 = vld [vmem:[#allocation2 + $0x238] sm:$0xff]
      %v1160 = vld [vmem:[#allocation2 + $0x240] sm:$0xf]
      %v1161 = vld [vmem:[#allocation2 + $0x244] sm:$0xff]
      %v1162 = vld [vmem:[#allocation2 + $0x24c] sm:$0xff]
      %v1163 = vld [vmem:[#allocation2 + $0x254] sm:$0xf]
      %v1164 = vld [vmem:[#allocation2 + $0x258] sm:$0xff]
      %v1165 = vld [vmem:[#allocation2 + $0x260] sm:$0xff]
      %v1166 = vld [vmem:[#allocation2 + $0x268] sm:$0xf]
      %v1167 = vld [vmem:[#allocation2 + $0x26c] sm:$0xff]
      %v1168 = vld [vmem:[#allocation2 + $0x274] sm:$0xff]
      %v1169 = vld [vmem:[#allocation2 + $0x27c] sm:$0xf]
      %v1170 = vld [vmem:[#allocation2 + $0x280] sm:$0xff]
      %v1171 = vld [vmem:[#allocation2 + $0x288] sm:$0xff]
      %v1172 = vld [vmem:[#allocation2 + $0x290] sm:$0xf]
      %v1173 = vld [vmem:[#allocation2 + $0x294] sm:$0xff]
      %v1174 = vld [vmem:[#allocation2 + $0x29c] sm:$0xff]
      %v1175 = vld [vmem:[#allocation2 + $0x2a4] sm:$0xf]
      %v1176 = vld [vmem:[#allocation2 + $0x2a8] sm:$0xff]
      %v1177 = vld [vmem:[#allocation2 + $0x2b0] sm:$0xff]
      %v1178 = vld [vmem:[#allocation2 + $0x2b8] sm:$0xf]
      %v1179 = vld [vmem:[#allocation2 + $0x2bc] sm:$0xff]
      %v1180 = vld [vmem:[#allocation2 + $0x2c4] sm:$0xff]
      %v1181 = vld [vmem:[#allocation2 + $0x2cc] sm:$0xf]
      %1183 = vset.pattern.permute.xlu0 0
      %1184 = vperm.xlu0 %1183, %v226
      %v1185 = vpop.permute.xlu0 %1184
      %1188 = vset.pattern.permute.xlu0 0
      %1189 = vperm.xlu0 %1188, %v227
      %v1190 = vpop.permute.xlu0 %1189
      %1193 = vset.pattern.permute.xlu0 0
      %1194 = vperm.xlu0 %1193, %v228
      %v1195 = vpop.permute.xlu0 %1194
      %1198 = vset.pattern.permute.xlu0 0
      %1199 = vperm.xlu0 %1198, %v229
      %v1200 = vpop.permute.xlu0 %1199
      %v1210 = vunpack.c.l.b16 %v1066
      %v1211 = vunpack.c.h.b16 %v1066
      %v1212 = vunpack.c.l.b16 %v1067
      %v1213 = vunpack.c.l.b16 %v1068
      %v1214 = vunpack.c.h.b16 %v1068
      %v1215 = vunpack.c.l.b16 %v1069
      %v1216 = vunpack.c.l.b16 %v1070
      %v1217 = vunpack.c.h.b16 %v1070
      %v1218 = vunpack.c.l.b16 %v1071
      %v1219 = vunpack.c.l.b16 %v1072
      %v1220 = vunpack.c.h.b16 %v1072
      %v1221 = vunpack.c.l.b16 %v1073
      %v1222 = vpack.c.b16 %v1213, %v1210
      %v1223 = vpack.c.b16 %v1214, %v1211
      %v1224 = vpack.c.b16 %v1215, %v1212
      %v1225 = vpack.c.b16 %v1219, %v1216
      %v1226 = vpack.c.b16 %v1220, %v1217
      %v1227 = vpack.c.b16 %v1221, %v1218
      %v1340 = vunpack.c.l.b16 %v1074
      %v1341 = vunpack.c.h.b16 %v1074
      %v1342 = vunpack.c.l.b16 %v1075
      %v1343 = vunpack.c.h.b16 %v1075
      %v1344 = vunpack.c.l.b16 %v1076
      %v1345 = vunpack.c.l.b16 %v1077
      %v1346 = vunpack.c.h.b16 %v1077
      %v1347 = vunpack.c.l.b16 %v1078
      %v1348 = vunpack.c.h.b16 %v1078
      %v1349 = vunpack.c.l.b16 %v1079
      %v1350 = vunpack.c.l.b16 %v1080
      %v1351 = vunpack.c.h.b16 %v1080
      %v1352 = vunpack.c.l.b16 %v1081
      %v1353 = vunpack.c.h.b16 %v1081
      %v1354 = vunpack.c.l.b16 %v1082
      %v1355 = vunpack.c.l.b16 %v1083
      %v1356 = vunpack.c.h.b16 %v1083
      %v1357 = vunpack.c.l.b16 %v1084
      %v1358 = vunpack.c.h.b16 %v1084
      %v1359 = vunpack.c.l.b16 %v1085
      %v1360 = vunpack.c.l.b16 %v1086
      %v1361 = vunpack.c.h.b16 %v1086
      %v1362 = vunpack.c.l.b16 %v1087
      %v1363 = vunpack.c.h.b16 %v1087
      %v1364 = vunpack.c.l.b16 %v1088
      %v1365 = vunpack.c.l.b16 %v1089
      %v1366 = vunpack.c.h.b16 %v1089
      %v1367 = vunpack.c.l.b16 %v1090
      %v1368 = vunpack.c.h.b16 %v1090
      %v1369 = vunpack.c.l.b16 %v1091
      %v1370 = vunpack.c.l.b16 %v1092
      %v1371 = vunpack.c.h.b16 %v1092
      %v1372 = vunpack.c.l.b16 %v1093
      %v1373 = vunpack.c.h.b16 %v1093
      %v1374 = vunpack.c.l.b16 %v1094
      %v1375 = vunpack.c.l.b16 %v1095
      %v1376 = vunpack.c.h.b16 %v1095
      %v1377 = vunpack.c.l.b16 %v1096
      %v1378 = vunpack.c.h.b16 %v1096
      %v1379 = vunpack.c.l.b16 %v1097
      %v1380 = vunpack.c.l.b16 %v1098
      %v1381 = vunpack.c.h.b16 %v1098
      %v1382 = vunpack.c.l.b16 %v1099
      %v1383 = vunpack.c.h.b16 %v1099
      %v1384 = vunpack.c.l.b16 %v1100
      %v1385 = vunpack.c.l.b16 %v1101
      %v1386 = vunpack.c.h.b16 %v1101
      %v1387 = vunpack.c.l.b16 %v1102
      %v1388 = vunpack.c.h.b16 %v1102
      %v1389 = vunpack.c.l.b16 %v1103
      %v1390 = vunpack.c.l.b16 %v1104
      %v1391 = vunpack.c.h.b16 %v1104
      %v1392 = vunpack.c.l.b16 %v1105
      %v1393 = vunpack.c.h.b16 %v1105
      %v1394 = vunpack.c.l.b16 %v1106
      %v1395 = vunpack.c.l.b16 %v1107
      %v1396 = vunpack.c.h.b16 %v1107
      %v1397 = vunpack.c.l.b16 %v1108
      %v1398 = vunpack.c.h.b16 %v1108
      %v1399 = vunpack.c.l.b16 %v1109
      %v1400 = vunpack.c.l.b16 %v1110
      %v1401 = vunpack.c.h.b16 %v1110
      %v1402 = vunpack.c.l.b16 %v1111
      %v1403 = vunpack.c.h.b16 %v1111
      %v1404 = vunpack.c.l.b16 %v1112
      %v1405 = vunpack.c.l.b16 %v1113
      %v1406 = vunpack.c.h.b16 %v1113
      %v1407 = vunpack.c.l.b16 %v1114
      %v1408 = vunpack.c.h.b16 %v1114
      %v1409 = vunpack.c.l.b16 %v1115
      %v1410 = vunpack.c.l.b16 %v1116
      %v1411 = vunpack.c.h.b16 %v1116
      %v1412 = vunpack.c.l.b16 %v1117
      %v1413 = vunpack.c.h.b16 %v1117
      %v1414 = vunpack.c.l.b16 %v1118
      %v1415 = vunpack.c.l.b16 %v1119
      %v1416 = vunpack.c.h.b16 %v1119
      %v1417 = vunpack.c.l.b16 %v1120
      %v1418 = vunpack.c.h.b16 %v1120
      %v1419 = vunpack.c.l.b16 %v1121
      %v1420 = vunpack.c.l.b16 %v1122
      %v1421 = vunpack.c.h.b16 %v1122
      %v1422 = vunpack.c.l.b16 %v1123
      %v1423 = vunpack.c.h.b16 %v1123
      %v1424 = vunpack.c.l.b16 %v1124
      %v1425 = vunpack.c.l.b16 %v1125
      %v1426 = vunpack.c.h.b16 %v1125
      %v1427 = vunpack.c.l.b16 %v1126
      %v1428 = vunpack.c.h.b16 %v1126
      %v1429 = vunpack.c.l.b16 %v1127
      %v1430 = vunpack.c.l.b16 %v1128
      %v1431 = vunpack.c.h.b16 %v1128
      %v1432 = vunpack.c.l.b16 %v1129
      %v1433 = vunpack.c.h.b16 %v1129
      %v1434 = vunpack.c.l.b16 %v1130
      %v1435 = vunpack.c.l.b16 %v1131
      %v1436 = vunpack.c.h.b16 %v1131
      %v1437 = vunpack.c.l.b16 %v1132
      %v1438 = vunpack.c.h.b16 %v1132
      %v1439 = vunpack.c.l.b16 %v1133
      %v1440 = vunpack.c.l.b16 %v1134
      %v1441 = vunpack.c.h.b16 %v1134
      %v1442 = vunpack.c.l.b16 %v1135
      %v1443 = vunpack.c.h.b16 %v1135
      %v1444 = vunpack.c.l.b16 %v1136
      %v1445 = vunpack.c.l.b16 %v1137
      %v1446 = vunpack.c.h.b16 %v1137
      %v1447 = vunpack.c.l.b16 %v1138
      %v1448 = vunpack.c.h.b16 %v1138
      %v1449 = vunpack.c.l.b16 %v1139
      %v1450 = vunpack.c.l.b16 %v1140
      %v1451 = vunpack.c.h.b16 %v1140
      %v1452 = vunpack.c.l.b16 %v1141
      %v1453 = vunpack.c.h.b16 %v1141
      %v1454 = vunpack.c.l.b16 %v1142
      %v1455 = vunpack.c.l.b16 %v1143
      %v1456 = vunpack.c.h.b16 %v1143
      %v1457 = vunpack.c.l.b16 %v1144
      %v1458 = vunpack.c.h.b16 %v1144
      %v1459 = vunpack.c.l.b16 %v1145
      %v1460 = vunpack.c.l.b16 %v1146
      %v1461 = vunpack.c.h.b16 %v1146
      %v1462 = vunpack.c.l.b16 %v1147
      %v1463 = vunpack.c.h.b16 %v1147
      %v1464 = vunpack.c.l.b16 %v1148
      %v1465 = vunpack.c.l.b16 %v1149
      %v1466 = vunpack.c.h.b16 %v1149
      %v1467 = vunpack.c.l.b16 %v1150
      %v1468 = vunpack.c.h.b16 %v1150
      %v1469 = vunpack.c.l.b16 %v1151
      %v1470 = vunpack.c.l.b16 %v1152
      %v1471 = vunpack.c.h.b16 %v1152
      %v1472 = vunpack.c.l.b16 %v1153
      %v1473 = vunpack.c.h.b16 %v1153
      %v1474 = vunpack.c.l.b16 %v1154
      %v1475 = vunpack.c.l.b16 %v1155
      %v1476 = vunpack.c.h.b16 %v1155
      %v1477 = vunpack.c.l.b16 %v1156
      %v1478 = vunpack.c.h.b16 %v1156
      %v1479 = vunpack.c.l.b16 %v1157
      %v1480 = vunpack.c.l.b16 %v1158
      %v1481 = vunpack.c.h.b16 %v1158
      %v1482 = vunpack.c.l.b16 %v1159
      %v1483 = vunpack.c.h.b16 %v1159
      %v1484 = vunpack.c.l.b16 %v1160
      %v1485 = vunpack.c.l.b16 %v1161
      %v1486 = vunpack.c.h.b16 %v1161
      %v1487 = vunpack.c.l.b16 %v1162
      %v1488 = vunpack.c.h.b16 %v1162
      %v1489 = vunpack.c.l.b16 %v1163
      %v1490 = vunpack.c.l.b16 %v1164
      %v1491 = vunpack.c.h.b16 %v1164
      %v1492 = vunpack.c.l.b16 %v1165
      %v1493 = vunpack.c.h.b16 %v1165
      %v1494 = vunpack.c.l.b16 %v1166
      %v1495 = vunpack.c.l.b16 %v1167
      %v1496 = vunpack.c.h.b16 %v1167
      %v1497 = vunpack.c.l.b16 %v1168
      %v1498 = vunpack.c.h.b16 %v1168
      %v1499 = vunpack.c.l.b16 %v1169
      %v1500 = vunpack.c.l.b16 %v1170
      %v1501 = vunpack.c.h.b16 %v1170
      %v1502 = vunpack.c.l.b16 %v1171
      %v1503 = vunpack.c.h.b16 %v1171
      %v1504 = vunpack.c.l.b16 %v1172
      %v1505 = vunpack.c.l.b16 %v1173
      %v1506 = vunpack.c.h.b16 %v1173
      %v1507 = vunpack.c.l.b16 %v1174
      %v1508 = vunpack.c.h.b16 %v1174
      %v1509 = vunpack.c.l.b16 %v1175
      %v1510 = vunpack.c.l.b16 %v1176
      %v1511 = vunpack.c.h.b16 %v1176
      %v1512 = vunpack.c.l.b16 %v1177
      %v1513 = vunpack.c.h.b16 %v1177
      %v1514 = vunpack.c.l.b16 %v1178
      %v1515 = vunpack.c.l.b16 %v1179
      %v1516 = vunpack.c.h.b16 %v1179
      %v1517 = vunpack.c.l.b16 %v1180
      %v1518 = vunpack.c.h.b16 %v1180
      %v1519 = vunpack.c.l.b16 %v1181
      %v1520 = vpack.c.b16 %v1345, %v1340
      %v1521 = vpack.c.b16 %v1346, %v1341
      %v1522 = vpack.c.b16 %v1347, %v1342
      %v1523 = vpack.c.b16 %v1348, %v1343
      %v1524 = vpack.c.b16 %v1349, %v1344
      %v1525 = vpack.c.b16 %v1355, %v1350
      %v1526 = vpack.c.b16 %v1356, %v1351
      %v1527 = vpack.c.b16 %v1357, %v1352
      %v1528 = vpack.c.b16 %v1358, %v1353
      %v1529 = vpack.c.b16 %v1359, %v1354
      %v1530 = vpack.c.b16 %v1365, %v1360
      %v1531 = vpack.c.b16 %v1366, %v1361
      %v1532 = vpack.c.b16 %v1367, %v1362
      %v1533 = vpack.c.b16 %v1368, %v1363
      %v1534 = vpack.c.b16 %v1369, %v1364
      %v1535 = vpack.c.b16 %v1375, %v1370
      %v1536 = vpack.c.b16 %v1376, %v1371
      %v1537 = vpack.c.b16 %v1377, %v1372
      %v1538 = vpack.c.b16 %v1378, %v1373
      %v1539 = vpack.c.b16 %v1379, %v1374
      %v1540 = vpack.c.b16 %v1385, %v1380
      %v1541 = vpack.c.b16 %v1386, %v1381
      %v1542 = vpack.c.b16 %v1387, %v1382
      %v1543 = vpack.c.b16 %v1388, %v1383
      %v1544 = vpack.c.b16 %v1389, %v1384
      %v1545 = vpack.c.b16 %v1395, %v1390
      %v1546 = vpack.c.b16 %v1396, %v1391
      %v1547 = vpack.c.b16 %v1397, %v1392
      %v1548 = vpack.c.b16 %v1398, %v1393
      %v1549 = vpack.c.b16 %v1399, %v1394
      %v1550 = vpack.c.b16 %v1405, %v1400
      %v1551 = vpack.c.b16 %v1406, %v1401
      %v1552 = vpack.c.b16 %v1407, %v1402
      %v1553 = vpack.c.b16 %v1408, %v1403
      %v1554 = vpack.c.b16 %v1409, %v1404
      %v1555 = vpack.c.b16 %v1415, %v1410
      %v1556 = vpack.c.b16 %v1416, %v1411
      %v1557 = vpack.c.b16 %v1417, %v1412
      %v1558 = vpack.c.b16 %v1418, %v1413
      %v1559 = vpack.c.b16 %v1419, %v1414
      %v1560 = vpack.c.b16 %v1425, %v1420
      %v1561 = vpack.c.b16 %v1426, %v1421
      %v1562 = vpack.c.b16 %v1427, %v1422
      %v1563 = vpack.c.b16 %v1428, %v1423
      %v1564 = vpack.c.b16 %v1429, %v1424
      %v1565 = vpack.c.b16 %v1435, %v1430
      %v1566 = vpack.c.b16 %v1436, %v1431
      %v1567 = vpack.c.b16 %v1437, %v1432
      %v1568 = vpack.c.b16 %v1438, %v1433
      %v1569 = vpack.c.b16 %v1439, %v1434
      %v1570 = vpack.c.b16 %v1445, %v1440
      %v1571 = vpack.c.b16 %v1446, %v1441
      %v1572 = vpack.c.b16 %v1447, %v1442
      %v1573 = vpack.c.b16 %v1448, %v1443
      %v1574 = vpack.c.b16 %v1449, %v1444
      %v1575 = vpack.c.b16 %v1455, %v1450
      %v1576 = vpack.c.b16 %v1456, %v1451
      %v1577 = vpack.c.b16 %v1457, %v1452
      %v1578 = vpack.c.b16 %v1458, %v1453
      %v1579 = vpack.c.b16 %v1459, %v1454
      %v1580 = vpack.c.b16 %v1465, %v1460
      %v1581 = vpack.c.b16 %v1466, %v1461
      %v1582 = vpack.c.b16 %v1467, %v1462
      %v1583 = vpack.c.b16 %v1468, %v1463
      %v1584 = vpack.c.b16 %v1469, %v1464
      %v1585 = vpack.c.b16 %v1475, %v1470
      %v1586 = vpack.c.b16 %v1476, %v1471
      %v1587 = vpack.c.b16 %v1477, %v1472
      %v1588 = vpack.c.b16 %v1478, %v1473
      %v1589 = vpack.c.b16 %v1479, %v1474
      %v1590 = vpack.c.b16 %v1485, %v1480
      %v1591 = vpack.c.b16 %v1486, %v1481
      %v1592 = vpack.c.b16 %v1487, %v1482
      %v1593 = vpack.c.b16 %v1488, %v1483
      %v1594 = vpack.c.b16 %v1489, %v1484
      %v1595 = vpack.c.b16 %v1495, %v1490
      %v1596 = vpack.c.b16 %v1496, %v1491
      %v1597 = vpack.c.b16 %v1497, %v1492
      %v1598 = vpack.c.b16 %v1498, %v1493
      %v1599 = vpack.c.b16 %v1499, %v1494
      %v1600 = vpack.c.b16 %v1505, %v1500
      %v1601 = vpack.c.b16 %v1506, %v1501
      %v1602 = vpack.c.b16 %v1507, %v1502
      %v1603 = vpack.c.b16 %v1508, %v1503
      %v1604 = vpack.c.b16 %v1509, %v1504
      %v1605 = vpack.c.b16 %v1515, %v1510
      %v1606 = vpack.c.b16 %v1516, %v1511
      %v1607 = vpack.c.b16 %v1517, %v1512
      %v1608 = vpack.c.b16 %v1518, %v1513
      %v1609 = vpack.c.b16 %v1519, %v1514
      %vm1700 = vcmask 261120
      %v1702 = vsel %vm1700, %v1224, 0
      %v1705 = vsel %vm1700, %v1227, 0
      %1707 = vmatpush.bf16.msra.mxu0 %v1555
      %1708 = vmatpush.bf16.msra.mxu0 %v1550
      %1709 = vmatpush.bf16.msra.mxu0 %v1545
      %1710 = vmatpush.bf16.msra.mxu0 %v1540
      %1711 = vmatpush.bf16.msra.mxu0 %v1535
      %1712 = vmatpush.bf16.msra.mxu0 %v1530
      %1713 = vmatpush.bf16.msra.mxu0 %v1525
      %1714 = vmatpush.bf16.msra.mxu0 %v1520
      %1715 = vmatmul.bf16.gmra.mxu0 %v1222
      %v1716 = vpop.f32.mrf.mxu0
      %v1717 = vadd.f32 %v1185, %v1716
      %v1718 = vpop.f32.mrf.mxu0
      %v1719 = vadd.f32 %v1190, %v1718
      %1720 = vmatmul.bf16.gmra.mxu0 %v1225
      %v1721 = vpop.f32.mrf.mxu0
      %v1722 = vadd.f32 %v1195, %v1721
      %v1723 = vpop.f32.mrf.mxu0
      %v1724 = vadd.f32 %v1200, %v1723
      %1725 = vdwg.mxu0
      %1726 = vmatpush.bf16.msra.mxu0 %v1595
      %1727 = vmatpush.bf16.msra.mxu0 %v1590
      %1728 = vmatpush.bf16.msra.mxu0 %v1585
      %1729 = vmatpush.bf16.msra.mxu0 %v1580
      %1730 = vmatpush.bf16.msra.mxu0 %v1575
      %1731 = vmatpush.bf16.msra.mxu0 %v1570
      %1732 = vmatpush.bf16.msra.mxu0 %v1565
      %1733 = vmatpush.bf16.msra.mxu0 %v1560
      %1734 = vmatmul.bf16.gmra.mxu0 %v1223
      %v1735 = vpop.f32.mrf.mxu0
      %v1736 = vadd.f32 %v1717, %v1735
      %v1737 = vpop.f32.mrf.mxu0
      %v1738 = vadd.f32 %v1719, %v1737
      %1739 = vmatmul.bf16.gmra.mxu0 %v1226
      %v1740 = vpop.f32.mrf.mxu0
      %v1741 = vadd.f32 %v1722, %v1740
      %v1742 = vpop.f32.mrf.mxu0
      %v1743 = vadd.f32 %v1724, %v1742
      %1744 = vdwg.mxu0
      %1745 = vmatpush.bf16.msra.mxu0 0
      %1746 = vmatpush.bf16.msra.mxu0 0
      %1747 = vmatpush.bf16.msra.mxu0 0
      %1748 = vmatpush.bf16.msra.mxu0 0
      %1749 = vmatpush.bf16.msra.mxu0 0
      %1750 = vmatpush.bf16.msra.mxu0 0
      %1751 = vmatpush.bf16.msra.mxu0 %v1605
      %1752 = vmatpush.bf16.msra.mxu0 %v1600
      %1753 = vmatmul.bf16.gmra.mxu0 %v1702
      %v1754 = vpop.f32.mrf.mxu0
      %v1755 = vadd.f32 %v1736, %v1754
      %v1756 = vpop.f32.mrf.mxu0
      %v1757 = vadd.f32 %v1738, %v1756
      %1758 = vmatmul.bf16.gmra.mxu0 %v1705
      %v1759 = vpop.f32.mrf.mxu0
      %v1760 = vadd.f32 %v1741, %v1759
      %v1761 = vpop.f32.mrf.mxu0
      %v1762 = vadd.f32 %v1743, %v1761
      %1763 = vdwg.mxu0
      %1764 = vmatpush.bf16.msra.mxu0 %v1556
      %1765 = vmatpush.bf16.msra.mxu0 %v1551
      %1766 = vmatpush.bf16.msra.mxu0 %v1546
      %1767 = vmatpush.bf16.msra.mxu0 %v1541
      %1768 = vmatpush.bf16.msra.mxu0 %v1536
      %1769 = vmatpush.bf16.msra.mxu0 %v1531
      %1770 = vmatpush.bf16.msra.mxu0 %v1526
      %1771 = vmatpush.bf16.msra.mxu0 %v1521
      %1772 = vmatmul.bf16.gmra.mxu0 %v1222
      %v1773 = vpop.f32.mrf.mxu0
      %v1774 = vadd.f32 %v1185, %v1773
      %v1775 = vpop.f32.mrf.mxu0
      %v1776 = vadd.f32 %v1190, %v1775
      %1777 = vmatmul.bf16.gmra.mxu0 %v1225
      %v1778 = vpop.f32.mrf.mxu0
      %v1779 = vadd.f32 %v1195, %v1778
      %v1780 = vpop.f32.mrf.mxu0
      %v1781 = vadd.f32 %v1200, %v1780
      %1782 = vdwg.mxu0
      %1783 = vmatpush.bf16.msra.mxu0 %v1596
      %1784 = vmatpush.bf16.msra.mxu0 %v1591
      %1785 = vmatpush.bf16.msra.mxu0 %v1586
      %1786 = vmatpush.bf16.msra.mxu0 %v1581
      %1787 = vmatpush.bf16.msra.mxu0 %v1576
      %1788 = vmatpush.bf16.msra.mxu0 %v1571
      %1789 = vmatpush.bf16.msra.mxu0 %v1566
      %1790 = vmatpush.bf16.msra.mxu0 %v1561
      %1791 = vmatmul.bf16.gmra.mxu0 %v1223
      %v1792 = vpop.f32.mrf.mxu0
      %v1793 = vadd.f32 %v1774, %v1792
      %v1794 = vpop.f32.mrf.mxu0
      %v1795 = vadd.f32 %v1776, %v1794
      %1796 = vmatmul.bf16.gmra.mxu0 %v1226
      %v1797 = vpop.f32.mrf.mxu0
      %v1798 = vadd.f32 %v1779, %v1797
      %v1799 = vpop.f32.mrf.mxu0
      %v1800 = vadd.f32 %v1781, %v1799
      %1801 = vdwg.mxu0
      %1802 = vmatpush.bf16.msra.mxu0 0
      %1803 = vmatpush.bf16.msra.mxu0 0
      %1804 = vmatpush.bf16.msra.mxu0 0
      %1805 = vmatpush.bf16.msra.mxu0 0
      %1806 = vmatpush.bf16.msra.mxu0 0
      %1807 = vmatpush.bf16.msra.mxu0 0
      %1808 = vmatpush.bf16.msra.mxu0 %v1606
      %1809 = vmatpush.bf16.msra.mxu0 %v1601
      %1810 = vmatmul.bf16.gmra.mxu0 %v1702
      %v1811 = vpop.f32.mrf.mxu0
      %v1812 = vadd.f32 %v1793, %v1811
      %v1813 = vpop.f32.mrf.mxu0
      %v1814 = vadd.f32 %v1795, %v1813
      %1815 = vmatmul.bf16.gmra.mxu0 %v1705
      %v1816 = vpop.f32.mrf.mxu0
      %v1817 = vadd.f32 %v1798, %v1816
      %v1818 = vpop.f32.mrf.mxu0
      %v1819 = vadd.f32 %v1800, %v1818
      %1820 = vdwg.mxu0
      %1821 = vmatpush.bf16.msra.mxu0 %v1557
      %1822 = vmatpush.bf16.msra.mxu0 %v1552
      %1823 = vmatpush.bf16.msra.mxu0 %v1547
      %1824 = vmatpush.bf16.msra.mxu0 %v1542
      %1825 = vmatpush.bf16.msra.mxu0 %v1537
      %1826 = vmatpush.bf16.msra.mxu0 %v1532
      %1827 = vmatpush.bf16.msra.mxu0 %v1527
      %1828 = vmatpush.bf16.msra.mxu0 %v1522
      %1829 = vmatmul.bf16.gmra.mxu0 %v1222
      %v1830 = vpop.f32.mrf.mxu0
      %v1831 = vadd.f32 %v1185, %v1830
      %v1832 = vpop.f32.mrf.mxu0
      %v1833 = vadd.f32 %v1190, %v1832
      %1834 = vmatmul.bf16.gmra.mxu0 %v1225
      %v1835 = vpop.f32.mrf.mxu0
      %v1836 = vadd.f32 %v1195, %v1835
      %v1837 = vpop.f32.mrf.mxu0
      %v1838 = vadd.f32 %v1200, %v1837
      %1839 = vdwg.mxu0
      %1840 = vmatpush.bf16.msra.mxu0 %v1597
      %1841 = vmatpush.bf16.msra.mxu0 %v1592
      %1842 = vmatpush.bf16.msra.mxu0 %v1587
      %1843 = vmatpush.bf16.msra.mxu0 %v1582
      %1844 = vmatpush.bf16.msra.mxu0 %v1577
      %1845 = vmatpush.bf16.msra.mxu0 %v1572
      %1846 = vmatpush.bf16.msra.mxu0 %v1567
      %1847 = vmatpush.bf16.msra.mxu0 %v1562
      %1848 = vmatmul.bf16.gmra.mxu0 %v1223
      %v1849 = vpop.f32.mrf.mxu0
      %v1850 = vadd.f32 %v1831, %v1849
      %v1851 = vpop.f32.mrf.mxu0
      %v1852 = vadd.f32 %v1833, %v1851
      %1853 = vmatmul.bf16.gmra.mxu0 %v1226
      %v1854 = vpop.f32.mrf.mxu0
      %v1855 = vadd.f32 %v1836, %v1854
      %v1856 = vpop.f32.mrf.mxu0
      %v1857 = vadd.f32 %v1838, %v1856
      %1858 = vdwg.mxu0
      %1859 = vmatpush.bf16.msra.mxu0 0
      %1860 = vmatpush.bf16.msra.mxu0 0
      %1861 = vmatpush.bf16.msra.mxu0 0
      %1862 = vmatpush.bf16.msra.mxu0 0
      %1863 = vmatpush.bf16.msra.mxu0 0
      %1864 = vmatpush.bf16.msra.mxu0 0
      %1865 = vmatpush.bf16.msra.mxu0 %v1607
      %1866 = vmatpush.bf16.msra.mxu0 %v1602
      %1867 = vmatmul.bf16.gmra.mxu0 %v1702
      %v1868 = vpop.f32.mrf.mxu0
      %v1869 = vadd.f32 %v1850, %v1868
      %v1870 = vpop.f32.mrf.mxu0
      %v1871 = vadd.f32 %v1852, %v1870
      %1872 = vmatmul.bf16.gmra.mxu0 %v1705
      %v1873 = vpop.f32.mrf.mxu0
      %v1874 = vadd.f32 %v1855, %v1873
      %v1875 = vpop.f32.mrf.mxu0
      %v1876 = vadd.f32 %v1857, %v1875
      %1877 = vdwg.mxu0
      %1878 = vmatpush.bf16.msra.mxu0 %v1558
      %1879 = vmatpush.bf16.msra.mxu0 %v1553
      %1880 = vmatpush.bf16.msra.mxu0 %v1548
      %1881 = vmatpush.bf16.msra.mxu0 %v1543
      %1882 = vmatpush.bf16.msra.mxu0 %v1538
      %1883 = vmatpush.bf16.msra.mxu0 %v1533
      %1884 = vmatpush.bf16.msra.mxu0 %v1528
      %1885 = vmatpush.bf16.msra.mxu0 %v1523
      %1886 = vmatmul.bf16.gmra.mxu0 %v1222
      %v1887 = vpop.f32.mrf.mxu0
      %v1888 = vadd.f32 %v1185, %v1887
      %v1889 = vpop.f32.mrf.mxu0
      %v1890 = vadd.f32 %v1190, %v1889
      %1891 = vmatmul.bf16.gmra.mxu0 %v1225
      %v1892 = vpop.f32.mrf.mxu0
      %v1893 = vadd.f32 %v1195, %v1892
      %v1894 = vpop.f32.mrf.mxu0
      %v1895 = vadd.f32 %v1200, %v1894
      %1896 = vdwg.mxu0
      %1897 = vmatpush.bf16.msra.mxu0 %v1598
      %1898 = vmatpush.bf16.msra.mxu0 %v1593
      %1899 = vmatpush.bf16.msra.mxu0 %v1588
      %1900 = vmatpush.bf16.msra.mxu0 %v1583
      %1901 = vmatpush.bf16.msra.mxu0 %v1578
      %1902 = vmatpush.bf16.msra.mxu0 %v1573
      %1903 = vmatpush.bf16.msra.mxu0 %v1568
      %1904 = vmatpush.bf16.msra.mxu0 %v1563
      %1905 = vmatmul.bf16.gmra.mxu0 %v1223
      %v1906 = vpop.f32.mrf.mxu0
      %v1907 = vadd.f32 %v1888, %v1906
      %v1908 = vpop.f32.mrf.mxu0
      %v1909 = vadd.f32 %v1890, %v1908
      %1910 = vmatmul.bf16.gmra.mxu0 %v1226
      %v1911 = vpop.f32.mrf.mxu0
      %v1912 = vadd.f32 %v1893, %v1911
      %v1913 = vpop.f32.mrf.mxu0
      %v1914 = vadd.f32 %v1895, %v1913
      %1915 = vdwg.mxu0
      %1916 = vmatpush.bf16.msra.mxu0 0
      %1917 = vmatpush.bf16.msra.mxu0 0
      %1918 = vmatpush.bf16.msra.mxu0 0
      %1919 = vmatpush.bf16.msra.mxu0 0
      %1920 = vmatpush.bf16.msra.mxu0 0
      %1921 = vmatpush.bf16.msra.mxu0 0
      %1922 = vmatpush.bf16.msra.mxu0 %v1608
      %1923 = vmatpush.bf16.msra.mxu0 %v1603
      %1924 = vmatmul.bf16.gmra.mxu0 %v1702
      %v1925 = vpop.f32.mrf.mxu0
      %v1926 = vadd.f32 %v1907, %v1925
      %v1927 = vpop.f32.mrf.mxu0
      %v1928 = vadd.f32 %v1909, %v1927
      %1929 = vmatmul.bf16.gmra.mxu0 %v1705
      %v1930 = vpop.f32.mrf.mxu0
      %v1931 = vadd.f32 %v1912, %v1930
      %v1932 = vpop.f32.mrf.mxu0
      %v1933 = vadd.f32 %v1914, %v1932
      %1934 = vdwg.mxu0
      %1935 = vmatpush.bf16.msra.mxu0 %v1559
      %1936 = vmatpush.bf16.msra.mxu0 %v1554
      %1937 = vmatpush.bf16.msra.mxu0 %v1549
      %1938 = vmatpush.bf16.msra.mxu0 %v1544
      %1939 = vmatpush.bf16.msra.mxu0 %v1539
      %1940 = vmatpush.bf16.msra.mxu0 %v1534
      %1941 = vmatpush.bf16.msra.mxu0 %v1529
      %1942 = vmatpush.bf16.msra.mxu0 %v1524
      %1943 = vmatmul.bf16.gmra.mxu0 %v1222
      %v1944 = vpop.f32.mrf.mxu0
      %v1945 = vadd.f32 %v1185, %v1944
      %v1946 = vpop.f32.mrf.mxu0
      %v1947 = vadd.f32 %v1190, %v1946
      %1948 = vmatmul.bf16.gmra.mxu0 %v1225
      %v1949 = vpop.f32.mrf.mxu0
      %v1950 = vadd.f32 %v1195, %v1949
      %v1951 = vpop.f32.mrf.mxu0
      %v1952 = vadd.f32 %v1200, %v1951
      %1953 = vdwg.mxu0
      %1954 = vmatpush.bf16.msra.mxu0 %v1599
      %1955 = vmatpush.bf16.msra.mxu0 %v1594
      %1956 = vmatpush.bf16.msra.mxu0 %v1589
      %1957 = vmatpush.bf16.msra.mxu0 %v1584
      %1958 = vmatpush.bf16.msra.mxu0 %v1579
      %1959 = vmatpush.bf16.msra.mxu0 %v1574
      %1960 = vmatpush.bf16.msra.mxu0 %v1569
      %1961 = vmatpush.bf16.msra.mxu0 %v1564
      %1962 = vmatmul.bf16.gmra.mxu0 %v1223
      %v1963 = vpop.f32.mrf.mxu0
      %v1964 = vadd.f32 %v1945, %v1963
      %v1965 = vpop.f32.mrf.mxu0
      %v1966 = vadd.f32 %v1947, %v1965
      %1967 = vmatmul.bf16.gmra.mxu0 %v1226
      %v1968 = vpop.f32.mrf.mxu0
      %v1969 = vadd.f32 %v1950, %v1968
      %v1970 = vpop.f32.mrf.mxu0
      %v1971 = vadd.f32 %v1952, %v1970
      %1972 = vdwg.mxu0
      %1973 = vmatpush.bf16.msra.mxu0 0
      %1974 = vmatpush.bf16.msra.mxu0 0
      %1975 = vmatpush.bf16.msra.mxu0 0
      %1976 = vmatpush.bf16.msra.mxu0 0
      %1977 = vmatpush.bf16.msra.mxu0 0
      %1978 = vmatpush.bf16.msra.mxu0 0
      %1979 = vmatpush.bf16.msra.mxu0 %v1609
      %1980 = vmatpush.bf16.msra.mxu0 %v1604
      %1981 = vmatmul.bf16.gmra.mxu0 %v1702
      %v1982 = vpop.f32.mrf.mxu0
      %v1983 = vadd.f32 %v1964, %v1982
      %v1984 = vpop.f32.mrf.mxu0
      %v1985 = vadd.f32 %v1966, %v1984
      %1986 = vmatmul.bf16.gmra.mxu0 %v1705
      %v1987 = vpop.f32.mrf.mxu0
      %v1988 = vadd.f32 %v1969, %v1987
      %v1989 = vpop.f32.mrf.mxu0
      %v1990 = vadd.f32 %v1971, %v1989
      %1991 = vdwg.mxu0
      %v1994 = vperm.slane %v230, 0
      %v1995 = vperm.slane %v230, 2
      %v1996 = vperm.slane %v230, 4
      %v1997 = vperm.slane %v230, 6
      %v1998 = vperm.slane %v231, 0
      %v2004 = vperm.slane %v1994, 0
      %v2005 = vperm.slane %v1995, 0
      %v2006 = vperm.slane %v1996, 0
      %v2007 = vperm.slane %v1997, 0
      %v2008 = vperm.slane %v1998, 0
      %v2009 = vmul.f32 %v1755, %v2004
      %v2010 = vmul.f32 %v1812, %v2005
      %v2011 = vmul.f32 %v1869, %v2006
      %v2012 = vmul.f32 %v1926, %v2007
      %v2013 = vmul.f32 %v1983, %v2008
      %v2014 = vmul.f32 %v1757, %v2004
      %v2015 = vmul.f32 %v1814, %v2005
      %v2016 = vmul.f32 %v1871, %v2006
      %v2017 = vmul.f32 %v1928, %v2007
      %v2018 = vmul.f32 %v1985, %v2008
      %v2019 = vmul.f32 %v1760, %v2004
      %v2020 = vmul.f32 %v1817, %v2005
      %v2021 = vmul.f32 %v1874, %v2006
      %v2022 = vmul.f32 %v1931, %v2007
      %v2023 = vmul.f32 %v1988, %v2008
      %v2024 = vmul.f32 %v1762, %v2004
      %v2025 = vmul.f32 %v1819, %v2005
      %v2026 = vmul.f32 %v1876, %v2006
      %v2027 = vmul.f32 %v1933, %v2007
      %v2028 = vmul.f32 %v1990, %v2008
      %v2029 = vadd.f32 %v2009, %v2010
      %v2030 = vadd.f32 %v2029, %v2011
      %v2031 = vadd.f32 %v2030, %v2012
      %vm2032 = vcmask 523264
      %v2033 = vsel %vm2032, %v2013, 0.0
      %v2034 = vadd.f32 %v2031, %v2033
      %2035 = vadd.xlane.f32.xlu0 %v2034
      %v2036 = vpop.xlane.xlu0 %2035
      %v2037 = vadd.f32 %v2014, %v2015
      %v2038 = vadd.f32 %v2037, %v2016
      %v2039 = vadd.f32 %v2038, %v2017
      %v2040 = vsel %vm2032, %v2018, 0.0
      %v2041 = vadd.f32 %v2039, %v2040
      %2042 = vadd.xlane.f32.xlu0 %v2041
      %v2043 = vpop.xlane.xlu0 %2042
      %v2044 = vadd.f32 %v2019, %v2020
      %v2045 = vadd.f32 %v2044, %v2021
      %v2046 = vadd.f32 %v2045, %v2022
      %v2047 = vsel %vm2032, %v2023, 0.0
      %v2048 = vadd.f32 %v2046, %v2047
      %2049 = vadd.xlane.f32.xlu0 %v2048
      %v2050 = vpop.xlane.xlu0 %2049
      %v2051 = vadd.f32 %v2024, %v2025
      %v2052 = vadd.f32 %v2051, %v2026
      %v2053 = vadd.f32 %v2052, %v2027
      %v2054 = vsel %vm2032, %v2028, 0.0
      %v2055 = vadd.f32 %v2053, %v2054
      %2056 = vadd.xlane.f32.xlu0 %v2055
      %v2057 = vpop.xlane.xlu0 %2056
      %v2058 = vmul.f32 %v2036, 0.0020661156
      %v2059 = vmul.f32 %v2043, 0.0020661156
      %v2060 = vmul.f32 %v2050, 0.0020661156
      %v2061 = vmul.f32 %v2057, 0.0020661156
      %v2062 = vmul.f32 %v2009, %v1755
      %v2063 = vmul.f32 %v2010, %v1812
      %v2064 = vmul.f32 %v2011, %v1869
      %v2065 = vmul.f32 %v2012, %v1926
      %v2066 = vmul.f32 %v2013, %v1983
      %v2067 = vmul.f32 %v2014, %v1757
      %v2068 = vmul.f32 %v2015, %v1814
      %v2069 = vmul.f32 %v2016, %v1871
      %v2070 = vmul.f32 %v2017, %v1928
      %v2071 = vmul.f32 %v2018, %v1985
      %v2072 = vmul.f32 %v2019, %v1760
      %v2073 = vmul.f32 %v2020, %v1817
      %v2074 = vmul.f32 %v2021, %v1874
      %v2075 = vmul.f32 %v2022, %v1931
      %v2076 = vmul.f32 %v2023, %v1988
      %v2077 = vmul.f32 %v2024, %v1762
      %v2078 = vmul.f32 %v2025, %v1819
      %v2079 = vmul.f32 %v2026, %v1876
      %v2080 = vmul.f32 %v2027, %v1933
      %v2081 = vmul.f32 %v2028, %v1990
      %v2082 = vadd.f32 %v2062, %v2063
      %v2083 = vadd.f32 %v2082, %v2064
      %v2084 = vadd.f32 %v2083, %v2065
      %v2085 = vsel %vm2032, %v2066, 0.0
      %v2086 = vadd.f32 %v2084, %v2085
      %2087 = vadd.xlane.f32.xlu0 %v2086
      %v2088 = vpop.xlane.xlu0 %2087
      %v2089 = vadd.f32 %v2067, %v2068
      %v2090 = vadd.f32 %v2089, %v2069
      %v2091 = vadd.f32 %v2090, %v2070
      %v2092 = vsel %vm2032, %v2071, 0.0
      %v2093 = vadd.f32 %v2091, %v2092
      %2094 = vadd.xlane.f32.xlu0 %v2093
      %v2095 = vpop.xlane.xlu0 %2094
      %v2096 = vadd.f32 %v2072, %v2073
      %v2097 = vadd.f32 %v2096, %v2074
      %v2098 = vadd.f32 %v2097, %v2075
      %v2099 = vsel %vm2032, %v2076, 0.0
      %v2100 = vadd.f32 %v2098, %v2099
      %2101 = vadd.xlane.f32.xlu0 %v2100
      %v2102 = vpop.xlane.xlu0 %2101
      %v2103 = vadd.f32 %v2077, %v2078
      %v2104 = vadd.f32 %v2103, %v2079
      %v2105 = vadd.f32 %v2104, %v2080
      %v2106 = vsel %vm2032, %v2081, 0.0
      %v2107 = vadd.f32 %v2105, %v2106
      %2108 = vadd.xlane.f32.xlu0 %v2107
      %v2109 = vpop.xlane.xlu0 %2108
      %v2110 = vmul.f32 %v2088, 0.0020661156
      %v2111 = vmul.f32 %v2095, 0.0020661156
      %v2112 = vmul.f32 %v2102, 0.0020661156
      %v2113 = vmul.f32 %v2109, 0.0020661156
      %v2114 = vmul.f32 %v2058, %v2058
      %v2115 = vmul.f32 %v2059, %v2059
      %v2116 = vmul.f32 %v2060, %v2060
      %v2117 = vmul.f32 %v2061, %v2061
      %v2118 = vsub.f32 %v2110, %v2114
      %v2119 = vsub.f32 %v2111, %v2115
      %v2120 = vsub.f32 %v2112, %v2116
      %v2121 = vsub.f32 %v2113, %v2117
      %v2122 = vmax.f32 %v2118, 0.0
      %v2123 = vmax.f32 %v2119, 0.0
      %v2124 = vmax.f32 %v2120, 0.0
      %v2125 = vmax.f32 %v2121, 0.0
      %v2126 = vadd.f32 %v2122, 1e-05
      %v2127 = vadd.f32 %v2123, 1e-05
      %v2128 = vadd.f32 %v2124, 1e-05
      %v2129 = vadd.f32 %v2125, 1e-05
      %v2130 = vrsqrt.pop %v2126
      %v2131 = vmul.f32 %v2130, %v2126
      %v2132 = vmul.f32 %v2131, %v2130
      %v2133 = vmul.f32 0.5, %v2132
      %v2134 = vsub.f32 1.5, %v2133
      %v2135 = vmul.f32 %v2130, %v2134
      %vm2136 = vweird.f32 %v2126
      %vm2137 = vweird.f32 %v2130
      %vm2138 = vmor %vm2136, %vm2137
      %v2139 = vsel %vm2138, %v2130, %v2135
      %v2140 = vrsqrt.pop %v2127
      %v2141 = vmul.f32 %v2140, %v2127
      %v2142 = vmul.f32 %v2141, %v2140
      %v2143 = vmul.f32 0.5, %v2142
      %v2144 = vsub.f32 1.5, %v2143
      %v2145 = vmul.f32 %v2140, %v2144
      %vm2146 = vweird.f32 %v2127
      %vm2147 = vweird.f32 %v2140
      %vm2148 = vmor %vm2146, %vm2147
      %v2149 = vsel %vm2148, %v2140, %v2145
      %v2150 = vrsqrt.pop %v2128
      %v2151 = vmul.f32 %v2150, %v2128
      %v2152 = vmul.f32 %v2151, %v2150
      %v2153 = vmul.f32 0.5, %v2152
      %v2154 = vsub.f32 1.5, %v2153
      %v2155 = vmul.f32 %v2150, %v2154
      %vm2156 = vweird.f32 %v2128
      %vm2157 = vweird.f32 %v2150
      %vm2158 = vmor %vm2156, %vm2157
      %v2159 = vsel %vm2158, %v2150, %v2155
      %v2160 = vrsqrt.pop %v2129
      %v2161 = vmul.f32 %v2160, %v2129
      %v2162 = vmul.f32 %v2161, %v2160
      %v2163 = vmul.f32 0.5, %v2162
      %v2164 = vsub.f32 1.5, %v2163
      %v2165 = vmul.f32 %v2160, %v2164
      %vm2166 = vweird.f32 %v2129
      %vm2167 = vweird.f32 %v2160
      %vm2168 = vmor %vm2166, %vm2167
      %v2169 = vsel %vm2168, %v2160, %v2165
      %v2170 = vsub.f32 %v1755, %v2058
      %v2171 = vsub.f32 %v1812, %v2058
      %v2172 = vsub.f32 %v1869, %v2058
      %v2173 = vsub.f32 %v1926, %v2058
      %v2174 = vsub.f32 %v1983, %v2058
      %v2175 = vsub.f32 %v1757, %v2059
      %v2176 = vsub.f32 %v1814, %v2059
      %v2177 = vsub.f32 %v1871, %v2059
      %v2178 = vsub.f32 %v1928, %v2059
      %v2179 = vsub.f32 %v1985, %v2059
      %v2180 = vsub.f32 %v1760, %v2060
      %v2181 = vsub.f32 %v1817, %v2060
      %v2182 = vsub.f32 %v1874, %v2060
      %v2183 = vsub.f32 %v1931, %v2060
      %v2184 = vsub.f32 %v1988, %v2060
      %v2185 = vsub.f32 %v1762, %v2061
      %v2186 = vsub.f32 %v1819, %v2061
      %v2187 = vsub.f32 %v1876, %v2061
      %v2188 = vsub.f32 %v1933, %v2061
      %v2189 = vsub.f32 %v1990, %v2061
      %v2190 = vmul.f32 %v2139, %v226
      %v2191 = vmul.f32 %v2149, %v227
      %v2192 = vmul.f32 %v2159, %v228
      %v2193 = vmul.f32 %v2169, %v229
      %2195 = vset.pattern.permute.xlu0 1
      %2196 = vperm.xlu0 %2195, %v2190
      %v2197 = vpop.permute.xlu0 %2196
      %2200 = vset.pattern.permute.xlu0 1
      %2201 = vperm.xlu0 %2200, %v2191
      %v2202 = vpop.permute.xlu0 %2201
      %2205 = vset.pattern.permute.xlu0 1
      %2206 = vperm.xlu0 %2205, %v2192
      %v2207 = vpop.permute.xlu0 %2206
      %2210 = vset.pattern.permute.xlu0 1
      %2211 = vperm.xlu0 %2210, %v2193
      %v2212 = vpop.permute.xlu0 %2211
      %v2214 = vmul.f32 %v2170, %v2197
      %v2215 = vmul.f32 %v2171, %v2197
      %v2216 = vmul.f32 %v2172, %v2197
      %v2217 = vmul.f32 %v2173, %v2197
      %v2218 = vmul.f32 %v2174, %v2197
      %v2219 = vmul.f32 %v2175, %v2202
      %v2220 = vmul.f32 %v2176, %v2202
      %v2221 = vmul.f32 %v2177, %v2202
      %v2222 = vmul.f32 %v2178, %v2202
      %v2223 = vmul.f32 %v2179, %v2202
      %v2224 = vmul.f32 %v2180, %v2207
      %v2225 = vmul.f32 %v2181, %v2207
      %v2226 = vmul.f32 %v2182, %v2207
      %v2227 = vmul.f32 %v2183, %v2207
      %v2228 = vmul.f32 %v2184, %v2207
      %v2229 = vmul.f32 %v2185, %v2212
      %v2230 = vmul.f32 %v2186, %v2212
      %v2231 = vmul.f32 %v2187, %v2212
      %v2232 = vmul.f32 %v2188, %v2212
      %v2233 = vmul.f32 %v2189, %v2212
      %2234 = vset.pattern.permute.xlu0 2
      %2235 = vperm.xlu0 %2234, %v226
      %v2236 = vpop.permute.xlu0 %2235
      %2238 = vset.pattern.permute.xlu0 2
      %2239 = vperm.xlu0 %2238, %v227
      %v2240 = vpop.permute.xlu0 %2239
      %2242 = vset.pattern.permute.xlu0 2
      %2243 = vperm.xlu0 %2242, %v228
      %v2244 = vpop.permute.xlu0 %2243
      %2246 = vset.pattern.permute.xlu0 2
      %2247 = vperm.xlu0 %2246, %v229
      %v2248 = vpop.permute.xlu0 %2247
      %v2250 = vadd.f32 %v2214, %v2236
      %v2251 = vadd.f32 %v2215, %v2236
      %v2252 = vadd.f32 %v2216, %v2236
      %v2253 = vadd.f32 %v2217, %v2236
      %v2254 = vadd.f32 %v2218, %v2236
      %v2255 = vadd.f32 %v2219, %v2240
      %v2256 = vadd.f32 %v2220, %v2240
      %v2257 = vadd.f32 %v2221, %v2240
      %v2258 = vadd.f32 %v2222, %v2240
      %v2259 = vadd.f32 %v2223, %v2240
      %v2260 = vadd.f32 %v2224, %v2244
      %v2261 = vadd.f32 %v2225, %v2244
      %v2262 = vadd.f32 %v2226, %v2244
      %v2263 = vadd.f32 %v2227, %v2244
      %v2264 = vadd.f32 %v2228, %v2244
      %v2265 = vadd.f32 %v2229, %v2248
      %v2266 = vadd.f32 %v2230, %v2248
      %v2267 = vadd.f32 %v2231, %v2248
      %v2268 = vadd.f32 %v2232, %v2248
      %v2269 = vadd.f32 %v2233, %v2248
      %v2270 = vmax.f32 %v2250, 0.0
      %v2271 = vmax.f32 %v2251, 0.0
      %v2272 = vmax.f32 %v2252, 0.0
      %v2273 = vmax.f32 %v2253, 0.0
      %v2274 = vmax.f32 %v2254, 0.0
      %v2275 = vmax.f32 %v2255, 0.0
      %v2276 = vmax.f32 %v2256, 0.0
      %v2277 = vmax.f32 %v2257, 0.0
      %v2278 = vmax.f32 %v2258, 0.0
      %v2279 = vmax.f32 %v2259, 0.0
      %v2280 = vmax.f32 %v2260, 0.0
      %v2281 = vmax.f32 %v2261, 0.0
      %v2282 = vmax.f32 %v2262, 0.0
      %v2283 = vmax.f32 %v2263, 0.0
      %v2284 = vmax.f32 %v2264, 0.0
      %v2285 = vmax.f32 %v2265, 0.0
      %v2286 = vmax.f32 %v2266, 0.0
      %v2287 = vmax.f32 %v2267, 0.0
      %v2288 = vmax.f32 %v2268, 0.0
      %v2289 = vmax.f32 %v2269, 0.0
      %v2290 = vpack.c.bf16 %v2271, %v2270
      %v2291 = vpack.c.bf16 %v2273, %v2272
      %v2292 = vpack.c.bf16 %v2274, %v2274
      %v2293 = vpack.c.bf16 %v2276, %v2275
      %v2294 = vpack.c.bf16 %v2278, %v2277
      %v2295 = vpack.c.bf16 %v2279, %v2279
      %v2296 = vpack.c.bf16 %v2281, %v2280
      %v2297 = vpack.c.bf16 %v2283, %v2282
      %v2298 = vpack.c.bf16 %v2284, %v2284
      %v2299 = vpack.c.bf16 %v2286, %v2285
      %v2300 = vpack.c.bf16 %v2288, %v2287
      %v2301 = vpack.c.bf16 %v2289, %v2289
      %2302 = vst [vmem:[#allocation3] sm:$0xff] %v2290
      %2303 = vst [vmem:[#allocation3 + $0x8] sm:$0xff] %v2291
      %2304 = vst.msk [vmem:[#allocation3 + $0x10] sm:$0xf] %vm246, %v2292
      %2305 = vst [vmem:[#allocation3 + $0x14] sm:$0xff] %v2293
      %2306 = vst [vmem:[#allocation3 + $0x1c] sm:$0xff] %v2294
      %2307 = vst.msk [vmem:[#allocation3 + $0x24] sm:$0xf] %vm246, %v2295
      %2308 = vst [vmem:[#allocation3 + $0x28] sm:$0xff] %v2296
      %2309 = vst [vmem:[#allocation3 + $0x30] sm:$0xff] %v2297
      %2310 = vst.msk [vmem:[#allocation3 + $0x38] sm:$0xf] %vm246, %v2298
      %2311 = vst [vmem:[#allocation3 + $0x3c] sm:$0xff] %v2299
      %2312 = vst [vmem:[#allocation3 + $0x44] sm:$0xff] %v2300
      %2313 = vst.msk [vmem:[#allocation3 + $0x4c] sm:$0xf] %vm246, %v2301
      %vm2314 = vcmask 1043968
      %2315 = vst.msk [vmem:[#allocation3 + $0x10] sm:$0xf] %vm2314, 0
      %2316 = vst.msk [vmem:[#allocation3 + $0x24] sm:$0xf] %vm2314, 0
      %2317 = vst.msk [vmem:[#allocation3 + $0x38] sm:$0xf] %vm2314, 0
      %2318 = vst.msk [vmem:[#allocation3 + $0x4c] sm:$0xf] %vm2314, 0
      %v2319 = vld [vmem:[#allocation3] sm:$0xff]
      %v2320 = vld [vmem:[#allocation3 + $0x8] sm:$0xff]
      %v2321 = vld [vmem:[#allocation3 + $0x10] sm:$0xf]
      %v2322 = vld [vmem:[#allocation3 + $0x14] sm:$0xff]
      %v2323 = vld [vmem:[#allocation3 + $0x1c] sm:$0xff]
      %v2324 = vld [vmem:[#allocation3 + $0x24] sm:$0xf]
      %v2325 = vld [vmem:[#allocation3 + $0x28] sm:$0xff]
      %v2326 = vld [vmem:[#allocation3 + $0x30] sm:$0xff]
      %v2327 = vld [vmem:[#allocation3 + $0x38] sm:$0xf]
      %v2328 = vld [vmem:[#allocation3 + $0x3c] sm:$0xff]
      %v2329 = vld [vmem:[#allocation3 + $0x44] sm:$0xff]
      %v2330 = vld [vmem:[#allocation3 + $0x4c] sm:$0xf]
      %2331 = vst [vmem:[#allocation2] sm:$0xff] %v2319
      %2332 = vst [vmem:[#allocation2 + $0x8] sm:$0xff] %v2320
      %2333 = vst.msk [vmem:[#allocation2 + $0x10] sm:$0xf] %vm246, %v2321
      %2334 = vst [vmem:[#allocation2 + $0x14] sm:$0xff] %v2322
      %2335 = vst [vmem:[#allocation2 + $0x1c] sm:$0xff] %v2323
      %2336 = vst.msk [vmem:[#allocation2 + $0x24] sm:$0xf] %vm246, %v2324
      %2337 = vst [vmem:[#allocation2 + $0x28] sm:$0xff] %v2325
      %2338 = vst [vmem:[#allocation2 + $0x30] sm:$0xff] %v2326
      %2339 = vst.msk [vmem:[#allocation2 + $0x38] sm:$0xf] %vm246, %v2327
      %2340 = vst [vmem:[#allocation2 + $0x3c] sm:$0xff] %v2328
      %2341 = vst [vmem:[#allocation2 + $0x44] sm:$0xff] %v2329
      %2342 = vst.msk [vmem:[#allocation2 + $0x4c] sm:$0xf] %vm246, %v2330
      %v2343 = vld [vmem:[#allocation3] sm:$0xff]
      %v2344 = vld [vmem:[#allocation3 + $0x8] sm:$0xff]
      %v2345 = vld [vmem:[#allocation3 + $0x10] sm:$0xf]
      %v2346 = vld [vmem:[#allocation3 + $0x14] sm:$0xff]
      %v2347 = vld [vmem:[#allocation3 + $0x1c] sm:$0xff]
      %v2348 = vld [vmem:[#allocation3 + $0x24] sm:$0xf]
      %v2349 = vld [vmem:[#allocation3 + $0x28] sm:$0xff]
      %v2350 = vld [vmem:[#allocation3 + $0x30] sm:$0xff]
      %v2351 = vld [vmem:[#allocation3 + $0x38] sm:$0xf]
      %v2352 = vld [vmem:[#allocation3 + $0x3c] sm:$0xff]
      %v2353 = vld [vmem:[#allocation3 + $0x44] sm:$0xff]
      %v2354 = vld [vmem:[#allocation3 + $0x4c] sm:$0xf]
      %2367 = vrot.lane.b32.xlu0 %v2343, 127
      %v2368 = vpop.permute.xlu0 %2367
      %2369 = vrot.lane.b32.xlu0 %v2344, 127
      %v2370 = vpop.permute.xlu0 %2369
      %2371 = vrot.lane.b32.xlu0 %v2345, 127
      %v2372 = vpop.permute.xlu0 %2371
      %2373 = vrot.lane.b32.xlu0 %v2346, 127
      %v2374 = vpop.permute.xlu0 %2373
      %2375 = vrot.lane.b32.xlu0 %v2347, 127
      %v2376 = vpop.permute.xlu0 %2375
      %2377 = vrot.lane.b32.xlu0 %v2348, 127
      %v2378 = vpop.permute.xlu0 %2377
      %2379 = vrot.lane.b32.xlu0 %v2349, 127
      %v2380 = vpop.permute.xlu0 %2379
      %2381 = vrot.lane.b32.xlu0 %v2350, 127
      %v2382 = vpop.permute.xlu0 %2381
      %2383 = vrot.lane.b32.xlu0 %v2351, 127
      %v2384 = vpop.permute.xlu0 %2383
      %2385 = vrot.lane.b32.xlu0 %v2352, 127
      %v2386 = vpop.permute.xlu0 %2385
      %2387 = vrot.lane.b32.xlu0 %v2353, 127
      %v2388 = vpop.permute.xlu0 %2387
      %2389 = vrot.lane.b32.xlu0 %v2354, 127
      %v2390 = vpop.permute.xlu0 %2389
      %v2391 = vrot.slane %v2368, 4
      %v2392 = vrot.slane %v2370, 4
      %v2393 = vrot.slane %v2372, 4
      %v2394 = vrot.slane %v2374, 4
      %v2395 = vrot.slane %v2376, 4
      %v2396 = vrot.slane %v2378, 4
      %v2397 = vrot.slane %v2380, 4
      %v2398 = vrot.slane %v2382, 4
      %v2399 = vrot.slane %v2384, 4
      %v2400 = vrot.slane %v2386, 4
      %v2401 = vrot.slane %v2388, 4
      %v2402 = vrot.slane %v2390, 4
      %v2403 = vsel %vm317, %v2391, %v2392
      %v2404 = vsel %vm319, %v2368, %v2403
      %v2405 = vsel %vm317, %v2392, %v2393
      %v2406 = vsel %vm319, %v2370, %v2405
      %v2407 = vsel %vm317, %v2394, %v2395
      %v2408 = vsel %vm319, %v2374, %v2407
      %v2409 = vsel %vm317, %v2395, %v2396
      %v2410 = vsel %vm319, %v2376, %v2409
      %v2411 = vsel %vm317, %v2397, %v2398
      %v2412 = vsel %vm319, %v2380, %v2411
      %v2413 = vsel %vm317, %v2398, %v2399
      %v2414 = vsel %vm319, %v2382, %v2413
      %v2415 = vsel %vm317, %v2400, %v2401
      %v2416 = vsel %vm319, %v2386, %v2415
      %v2417 = vsel %vm317, %v2401, %v2402
      %v2418 = vsel %vm319, %v2388, %v2417
      %2431 = vst [vmem:[#allocation2 + $0x50] sm:$0xff] %v2404
      %2432 = vst [vmem:[#allocation2 + $0x58] sm:$0xff] %v2406
      %2433 = vst.msk [vmem:[#allocation2 + $0x60] sm:$0xf] %vm246, %v2372
      %2434 = vst [vmem:[#allocation2 + $0x64] sm:$0xff] %v2408
      %2435 = vst [vmem:[#allocation2 + $0x6c] sm:$0xff] %v2410
      %2436 = vst.msk [vmem:[#allocation2 + $0x74] sm:$0xf] %vm246, %v2378
      %2437 = vst [vmem:[#allocation2 + $0x78] sm:$0xff] %v2412
      %2438 = vst [vmem:[#allocation2 + $0x80] sm:$0xff] %v2414
      %2439 = vst.msk [vmem:[#allocation2 + $0x88] sm:$0xf] %vm246, %v2384
      %2440 = vst [vmem:[#allocation2 + $0x8c] sm:$0xff] %v2416
      %2441 = vst [vmem:[#allocation2 + $0x94] sm:$0xff] %v2418
      %2442 = vst.msk [vmem:[#allocation2 + $0x9c] sm:$0xf] %vm246, %v2390
      %v2443 = vld [vmem:[#allocation3] sm:$0xff]
      %v2444 = vld [vmem:[#allocation3 + $0x8] sm:$0xff]
      %v2445 = vld [vmem:[#allocation3 + $0x10] sm:$0xf]
      %v2446 = vld [vmem:[#allocation3 + $0x14] sm:$0xff]
      %v2447 = vld [vmem:[#allocation3 + $0x1c] sm:$0xff]
      %v2448 = vld [vmem:[#allocation3 + $0x24] sm:$0xf]
      %v2449 = vld [vmem:[#allocation3 + $0x28] sm:$0xff]
      %v2450 = vld [vmem:[#allocation3 + $0x30] sm:$0xff]
      %v2451 = vld [vmem:[#allocation3 + $0x38] sm:$0xf]
      %v2452 = vld [vmem:[#allocation3 + $0x3c] sm:$0xff]
      %v2453 = vld [vmem:[#allocation3 + $0x44] sm:$0xff]
      %v2454 = vld [vmem:[#allocation3 + $0x4c] sm:$0xf]
      %2467 = vrot.lane.b32.xlu0 %v2443, 126
      %v2468 = vpop.permute.xlu0 %2467
      %2469 = vrot.lane.b32.xlu0 %v2444, 126
      %v2470 = vpop.permute.xlu0 %2469
      %2471 = vrot.lane.b32.xlu0 %v2445, 126
      %v2472 = vpop.permute.xlu0 %2471
      %2473 = vrot.lane.b32.xlu0 %v2446, 126
      %v2474 = vpop.permute.xlu0 %2473
      %2475 = vrot.lane.b32.xlu0 %v2447, 126
      %v2476 = vpop.permute.xlu0 %2475
      %2477 = vrot.lane.b32.xlu0 %v2448, 126
      %v2478 = vpop.permute.xlu0 %2477
      %2479 = vrot.lane.b32.xlu0 %v2449, 126
      %v2480 = vpop.permute.xlu0 %2479
      %2481 = vrot.lane.b32.xlu0 %v2450, 126
      %v2482 = vpop.permute.xlu0 %2481
      %2483 = vrot.lane.b32.xlu0 %v2451, 126
      %v2484 = vpop.permute.xlu0 %2483
      %2485 = vrot.lane.b32.xlu0 %v2452, 126
      %v2486 = vpop.permute.xlu0 %2485
      %2487 = vrot.lane.b32.xlu0 %v2453, 126
      %v2488 = vpop.permute.xlu0 %2487
      %2489 = vrot.lane.b32.xlu0 %v2454, 126
      %v2490 = vpop.permute.xlu0 %2489
      %v2491 = vrot.slane %v2468, 4
      %v2492 = vrot.slane %v2470, 4
      %v2493 = vrot.slane %v2472, 4
      %v2494 = vrot.slane %v2474, 4
      %v2495 = vrot.slane %v2476, 4
      %v2496 = vrot.slane %v2478, 4
      %v2497 = vrot.slane %v2480, 4
      %v2498 = vrot.slane %v2482, 4
      %v2499 = vrot.slane %v2484, 4
      %v2500 = vrot.slane %v2486, 4
      %v2501 = vrot.slane %v2488, 4
      %v2502 = vrot.slane %v2490, 4
      %v2503 = vsel %vm317, %v2491, %v2492
      %v2504 = vsel %vm420, %v2468, %v2503
      %v2505 = vsel %vm317, %v2492, %v2493
      %v2506 = vsel %vm420, %v2470, %v2505
      %v2507 = vsel %vm317, %v2494, %v2495
      %v2508 = vsel %vm420, %v2474, %v2507
      %v2509 = vsel %vm317, %v2495, %v2496
      %v2510 = vsel %vm420, %v2476, %v2509
      %v2511 = vsel %vm317, %v2497, %v2498
      %v2512 = vsel %vm420, %v2480, %v2511
      %v2513 = vsel %vm317, %v2498, %v2499
      %v2514 = vsel %vm420, %v2482, %v2513
      %v2515 = vsel %vm317, %v2500, %v2501
      %v2516 = vsel %vm420, %v2486, %v2515
      %v2517 = vsel %vm317, %v2501, %v2502
      %v2518 = vsel %vm420, %v2488, %v2517
      %2531 = vst [vmem:[#allocation2 + $0xa0] sm:$0xff] %v2504
      %2532 = vst [vmem:[#allocation2 + $0xa8] sm:$0xff] %v2506
      %2533 = vst.msk [vmem:[#allocation2 + $0xb0] sm:$0xf] %vm246, %v2472
      %2534 = vst [vmem:[#allocation2 + $0xb4] sm:$0xff] %v2508
      %2535 = vst [vmem:[#allocation2 + $0xbc] sm:$0xff] %v2510
      %2536 = vst.msk [vmem:[#allocation2 + $0xc4] sm:$0xf] %vm246, %v2478
      %2537 = vst [vmem:[#allocation2 + $0xc8] sm:$0xff] %v2512
      %2538 = vst [vmem:[#allocation2 + $0xd0] sm:$0xff] %v2514
      %2539 = vst.msk [vmem:[#allocation2 + $0xd8] sm:$0xf] %vm246, %v2484
      %2540 = vst [vmem:[#allocation2 + $0xdc] sm:$0xff] %v2516
      %2541 = vst [vmem:[#allocation2 + $0xe4] sm:$0xff] %v2518
      %2542 = vst.msk [vmem:[#allocation2 + $0xec] sm:$0xf] %vm246, %v2490
      %v2543 = vld [vmem:[#allocation3] sm:$0xff]
      %v2544 = vld [vmem:[#allocation3 + $0x8] sm:$0xff]
      %v2545 = vld [vmem:[#allocation3 + $0x10] sm:$0xf]
      %v2546 = vld [vmem:[#allocation3 + $0x14] sm:$0xff]
      %v2547 = vld [vmem:[#allocation3 + $0x1c] sm:$0xff]
      %v2548 = vld [vmem:[#allocation3 + $0x24] sm:$0xf]
      %v2549 = vld [vmem:[#allocation3 + $0x28] sm:$0xff]
      %v2550 = vld [vmem:[#allocation3 + $0x30] sm:$0xff]
      %v2551 = vld [vmem:[#allocation3 + $0x38] sm:$0xf]
      %v2552 = vld [vmem:[#allocation3 + $0x3c] sm:$0xff]
      %v2553 = vld [vmem:[#allocation3 + $0x44] sm:$0xff]
      %v2554 = vld [vmem:[#allocation3 + $0x4c] sm:$0xf]
      %2567 = vrot.lane.b32.xlu0 %v2543, 104
      %v2568 = vpop.permute.xlu0 %2567
      %2569 = vrot.lane.b32.xlu0 %v2544, 104
      %v2570 = vpop.permute.xlu0 %2569
      %2571 = vrot.lane.b32.xlu0 %v2545, 104
      %v2572 = vpop.permute.xlu0 %2571
      %2573 = vrot.lane.b32.xlu0 %v2546, 104
      %v2574 = vpop.permute.xlu0 %2573
      %2575 = vrot.lane.b32.xlu0 %v2547, 104
      %v2576 = vpop.permute.xlu0 %2575
      %2577 = vrot.lane.b32.xlu0 %v2548, 104
      %v2578 = vpop.permute.xlu0 %2577
      %2579 = vrot.lane.b32.xlu0 %v2549, 104
      %v2580 = vpop.permute.xlu0 %2579
      %2581 = vrot.lane.b32.xlu0 %v2550, 104
      %v2582 = vpop.permute.xlu0 %2581
      %2583 = vrot.lane.b32.xlu0 %v2551, 104
      %v2584 = vpop.permute.xlu0 %2583
      %2585 = vrot.lane.b32.xlu0 %v2552, 104
      %v2586 = vpop.permute.xlu0 %2585
      %2587 = vrot.lane.b32.xlu0 %v2553, 104
      %v2588 = vpop.permute.xlu0 %2587
      %2589 = vrot.lane.b32.xlu0 %v2554, 104
      %v2590 = vpop.permute.xlu0 %2589
      %v2591 = vrot.slane %v2568, 4
      %v2592 = vrot.slane %v2570, 4
      %v2593 = vrot.slane %v2572, 4
      %v2594 = vrot.slane %v2574, 4
      %v2595 = vrot.slane %v2576, 4
      %v2596 = vrot.slane %v2578, 4
      %v2597 = vrot.slane %v2580, 4
      %v2598 = vrot.slane %v2582, 4
      %v2599 = vrot.slane %v2584, 4
      %v2600 = vrot.slane %v2586, 4
      %v2601 = vrot.slane %v2588, 4
      %v2602 = vrot.slane %v2590, 4
      %v2603 = vsel %vm317, %v2591, %v2592
      %v2604 = vsel %vm521, %v2568, %v2603
      %v2605 = vsel %vm317, %v2592, %v2593
      %v2606 = vsel %vm521, %v2570, %v2605
      %v2607 = vsel %vm317, %v2594, %v2595
      %v2608 = vsel %vm521, %v2574, %v2607
      %v2609 = vsel %vm317, %v2595, %v2596
      %v2610 = vsel %vm521, %v2576, %v2609
      %v2611 = vsel %vm317, %v2597, %v2598
      %v2612 = vsel %vm521, %v2580, %v2611
      %v2613 = vsel %vm317, %v2598, %v2599
      %v2614 = vsel %vm521, %v2582, %v2613
      %v2615 = vsel %vm317, %v2600, %v2601
      %v2616 = vsel %vm521, %v2586, %v2615
      %v2617 = vsel %vm317, %v2601, %v2602
      %v2618 = vsel %vm521, %v2588, %v2617
      %2631 = vst [vmem:[#allocation2 + $0xf0] sm:$0xff] %v2604
      %2632 = vst [vmem:[#allocation2 + $0xf8] sm:$0xff] %v2606
      %2633 = vst.msk [vmem:[#allocation2 + $0x100] sm:$0xf] %vm246, %v2572
      %2634 = vst [vmem:[#allocation2 + $0x104] sm:$0xff] %v2608
      %2635 = vst [vmem:[#allocation2 + $0x10c] sm:$0xff] %v2610
      %2636 = vst.msk [vmem:[#allocation2 + $0x114] sm:$0xf] %vm246, %v2578
      %2637 = vst [vmem:[#allocation2 + $0x118] sm:$0xff] %v2612
      %2638 = vst [vmem:[#allocation2 + $0x120] sm:$0xff] %v2614
      %2639 = vst.msk [vmem:[#allocation2 + $0x128] sm:$0xf] %vm246, %v2584
      %2640 = vst [vmem:[#allocation2 + $0x12c] sm:$0xff] %v2616
      %2641 = vst [vmem:[#allocation2 + $0x134] sm:$0xff] %v2618
      %2642 = vst.msk [vmem:[#allocation2 + $0x13c] sm:$0xf] %vm246, %v2590
      %v2643 = vld [vmem:[#allocation3] sm:$0xff]
      %v2644 = vld [vmem:[#allocation3 + $0x8] sm:$0xff]
      %v2645 = vld [vmem:[#allocation3 + $0x10] sm:$0xf]
      %v2646 = vld [vmem:[#allocation3 + $0x14] sm:$0xff]
      %v2647 = vld [vmem:[#allocation3 + $0x1c] sm:$0xff]
      %v2648 = vld [vmem:[#allocation3 + $0x24] sm:$0xf]
      %v2649 = vld [vmem:[#allocation3 + $0x28] sm:$0xff]
      %v2650 = vld [vmem:[#allocation3 + $0x30] sm:$0xff]
      %v2651 = vld [vmem:[#allocation3 + $0x38] sm:$0xf]
      %v2652 = vld [vmem:[#allocation3 + $0x3c] sm:$0xff]
      %v2653 = vld [vmem:[#allocation3 + $0x44] sm:$0xff]
      %v2654 = vld [vmem:[#allocation3 + $0x4c] sm:$0xf]
      %2667 = vrot.lane.b32.xlu0 %v2643, 103
      %v2668 = vpop.permute.xlu0 %2667
      %2669 = vrot.lane.b32.xlu0 %v2644, 103
      %v2670 = vpop.permute.xlu0 %2669
      %2671 = vrot.lane.b32.xlu0 %v2645, 103
      %v2672 = vpop.permute.xlu0 %2671
      %2673 = vrot.lane.b32.xlu0 %v2646, 103
      %v2674 = vpop.permute.xlu0 %2673
      %2675 = vrot.lane.b32.xlu0 %v2647, 103
      %v2676 = vpop.permute.xlu0 %2675
      %2677 = vrot.lane.b32.xlu0 %v2648, 103
      %v2678 = vpop.permute.xlu0 %2677
      %2679 = vrot.lane.b32.xlu0 %v2649, 103
      %v2680 = vpop.permute.xlu0 %2679
      %2681 = vrot.lane.b32.xlu0 %v2650, 103
      %v2682 = vpop.permute.xlu0 %2681
      %2683 = vrot.lane.b32.xlu0 %v2651, 103
      %v2684 = vpop.permute.xlu0 %2683
      %2685 = vrot.lane.b32.xlu0 %v2652, 103
      %v2686 = vpop.permute.xlu0 %2685
      %2687 = vrot.lane.b32.xlu0 %v2653, 103
      %v2688 = vpop.permute.xlu0 %2687
      %2689 = vrot.lane.b32.xlu0 %v2654, 103
      %v2690 = vpop.permute.xlu0 %2689
      %v2691 = vrot.slane %v2668, 4
      %v2692 = vrot.slane %v2670, 4
      %v2693 = vrot.slane %v2672, 4
      %v2694 = vrot.slane %v2674, 4
      %v2695 = vrot.slane %v2676, 4
      %v2696 = vrot.slane %v2678, 4
      %v2697 = vrot.slane %v2680, 4
      %v2698 = vrot.slane %v2682, 4
      %v2699 = vrot.slane %v2684, 4
      %v2700 = vrot.slane %v2686, 4
      %v2701 = vrot.slane %v2688, 4
      %v2702 = vrot.slane %v2690, 4
      %v2703 = vsel %vm317, %v2691, %v2692
      %v2704 = vsel %vm622, %v2668, %v2703
      %v2705 = vsel %vm317, %v2692, %v2693
      %v2706 = vsel %vm622, %v2670, %v2705
      %v2707 = vsel %vm317, %v2694, %v2695
      %v2708 = vsel %vm622, %v2674, %v2707
      %v2709 = vsel %vm317, %v2695, %v2696
      %v2710 = vsel %vm622, %v2676, %v2709
      %v2711 = vsel %vm317, %v2697, %v2698
      %v2712 = vsel %vm622, %v2680, %v2711
      %v2713 = vsel %vm317, %v2698, %v2699
      %v2714 = vsel %vm622, %v2682, %v2713
      %v2715 = vsel %vm317, %v2700, %v2701
      %v2716 = vsel %vm622, %v2686, %v2715
      %v2717 = vsel %vm317, %v2701, %v2702
      %v2718 = vsel %vm622, %v2688, %v2717
      %2731 = vst [vmem:[#allocation2 + $0x140] sm:$0xff] %v2704
      %2732 = vst [vmem:[#allocation2 + $0x148] sm:$0xff] %v2706
      %2733 = vst.msk [vmem:[#allocation2 + $0x150] sm:$0xf] %vm246, %v2672
      %2734 = vst [vmem:[#allocation2 + $0x154] sm:$0xff] %v2708
      %2735 = vst [vmem:[#allocation2 + $0x15c] sm:$0xff] %v2710
      %2736 = vst.msk [vmem:[#allocation2 + $0x164] sm:$0xf] %vm246, %v2678
      %2737 = vst [vmem:[#allocation2 + $0x168] sm:$0xff] %v2712
      %2738 = vst [vmem:[#allocation2 + $0x170] sm:$0xff] %v2714
      %2739 = vst.msk [vmem:[#allocation2 + $0x178] sm:$0xf] %vm246, %v2684
      %2740 = vst [vmem:[#allocation2 + $0x17c] sm:$0xff] %v2716
      %2741 = vst [vmem:[#allocation2 + $0x184] sm:$0xff] %v2718
      %2742 = vst.msk [vmem:[#allocation2 + $0x18c] sm:$0xf] %vm246, %v2690
      %v2743 = vld [vmem:[#allocation3] sm:$0xff]
      %v2744 = vld [vmem:[#allocation3 + $0x8] sm:$0xff]
      %v2745 = vld [vmem:[#allocation3 + $0x10] sm:$0xf]
      %v2746 = vld [vmem:[#allocation3 + $0x14] sm:$0xff]
      %v2747 = vld [vmem:[#allocation3 + $0x1c] sm:$0xff]
      %v2748 = vld [vmem:[#allocation3 + $0x24] sm:$0xf]
      %v2749 = vld [vmem:[#allocation3 + $0x28] sm:$0xff]
      %v2750 = vld [vmem:[#allocation3 + $0x30] sm:$0xff]
      %v2751 = vld [vmem:[#allocation3 + $0x38] sm:$0xf]
      %v2752 = vld [vmem:[#allocation3 + $0x3c] sm:$0xff]
      %v2753 = vld [vmem:[#allocation3 + $0x44] sm:$0xff]
      %v2754 = vld [vmem:[#allocation3 + $0x4c] sm:$0xf]
      %2767 = vrot.lane.b32.xlu0 %v2743, 102
      %v2768 = vpop.permute.xlu0 %2767
      %2769 = vrot.lane.b32.xlu0 %v2744, 102
      %v2770 = vpop.permute.xlu0 %2769
      %2771 = vrot.lane.b32.xlu0 %v2745, 102
      %v2772 = vpop.permute.xlu0 %2771
      %2773 = vrot.lane.b32.xlu0 %v2746, 102
      %v2774 = vpop.permute.xlu0 %2773
      %2775 = vrot.lane.b32.xlu0 %v2747, 102
      %v2776 = vpop.permute.xlu0 %2775
      %2777 = vrot.lane.b32.xlu0 %v2748, 102
      %v2778 = vpop.permute.xlu0 %2777
      %2779 = vrot.lane.b32.xlu0 %v2749, 102
      %v2780 = vpop.permute.xlu0 %2779
      %2781 = vrot.lane.b32.xlu0 %v2750, 102
      %v2782 = vpop.permute.xlu0 %2781
      %2783 = vrot.lane.b32.xlu0 %v2751, 102
      %v2784 = vpop.permute.xlu0 %2783
      %2785 = vrot.lane.b32.xlu0 %v2752, 102
      %v2786 = vpop.permute.xlu0 %2785
      %2787 = vrot.lane.b32.xlu0 %v2753, 102
      %v2788 = vpop.permute.xlu0 %2787
      %2789 = vrot.lane.b32.xlu0 %v2754, 102
      %v2790 = vpop.permute.xlu0 %2789
      %v2791 = vrot.slane %v2768, 4
      %v2792 = vrot.slane %v2770, 4
      %v2793 = vrot.slane %v2772, 4
      %v2794 = vrot.slane %v2774, 4
      %v2795 = vrot.slane %v2776, 4
      %v2796 = vrot.slane %v2778, 4
      %v2797 = vrot.slane %v2780, 4
      %v2798 = vrot.slane %v2782, 4
      %v2799 = vrot.slane %v2784, 4
      %v2800 = vrot.slane %v2786, 4
      %v2801 = vrot.slane %v2788, 4
      %v2802 = vrot.slane %v2790, 4
      %v2803 = vsel %vm317, %v2791, %v2792
      %v2804 = vsel %vm723, %v2768, %v2803
      %v2805 = vsel %vm317, %v2792, %v2793
      %v2806 = vsel %vm723, %v2770, %v2805
      %v2807 = vsel %vm317, %v2794, %v2795
      %v2808 = vsel %vm723, %v2774, %v2807
      %v2809 = vsel %vm317, %v2795, %v2796
      %v2810 = vsel %vm723, %v2776, %v2809
      %v2811 = vsel %vm317, %v2797, %v2798
      %v2812 = vsel %vm723, %v2780, %v2811
      %v2813 = vsel %vm317, %v2798, %v2799
      %v2814 = vsel %vm723, %v2782, %v2813
      %v2815 = vsel %vm317, %v2800, %v2801
      %v2816 = vsel %vm723, %v2786, %v2815
      %v2817 = vsel %vm317, %v2801, %v2802
      %v2818 = vsel %vm723, %v2788, %v2817
      %2831 = vst [vmem:[#allocation2 + $0x190] sm:$0xff] %v2804
      %2832 = vst [vmem:[#allocation2 + $0x198] sm:$0xff] %v2806
      %2833 = vst.msk [vmem:[#allocation2 + $0x1a0] sm:$0xf] %vm246, %v2772
      %2834 = vst [vmem:[#allocation2 + $0x1a4] sm:$0xff] %v2808
      %2835 = vst [vmem:[#allocation2 + $0x1ac] sm:$0xff] %v2810
      %2836 = vst.msk [vmem:[#allocation2 + $0x1b4] sm:$0xf] %vm246, %v2778
      %2837 = vst [vmem:[#allocation2 + $0x1b8] sm:$0xff] %v2812
      %2838 = vst [vmem:[#allocation2 + $0x1c0] sm:$0xff] %v2814
      %2839 = vst.msk [vmem:[#allocation2 + $0x1c8] sm:$0xf] %vm246, %v2784
      %2840 = vst [vmem:[#allocation2 + $0x1cc] sm:$0xff] %v2816
      %2841 = vst [vmem:[#allocation2 + $0x1d4] sm:$0xff] %v2818
      %2842 = vst.msk [vmem:[#allocation2 + $0x1dc] sm:$0xf] %vm246, %v2790
      %v2843 = vld [vmem:[#allocation3] sm:$0xff]
      %v2844 = vld [vmem:[#allocation3 + $0x8] sm:$0xff]
      %v2845 = vld [vmem:[#allocation3 + $0x10] sm:$0xf]
      %v2846 = vld [vmem:[#allocation3 + $0x14] sm:$0xff]
      %v2847 = vld [vmem:[#allocation3 + $0x1c] sm:$0xff]
      %v2848 = vld [vmem:[#allocation3 + $0x24] sm:$0xf]
      %v2849 = vld [vmem:[#allocation3 + $0x28] sm:$0xff]
      %v2850 = vld [vmem:[#allocation3 + $0x30] sm:$0xff]
      %v2851 = vld [vmem:[#allocation3 + $0x38] sm:$0xf]
      %v2852 = vld [vmem:[#allocation3 + $0x3c] sm:$0xff]
      %v2853 = vld [vmem:[#allocation3 + $0x44] sm:$0xff]
      %v2854 = vld [vmem:[#allocation3 + $0x4c] sm:$0xf]
      %2867 = vrot.lane.b32.xlu0 %v2843, 80
      %v2868 = vpop.permute.xlu0 %2867
      %2869 = vrot.lane.b32.xlu0 %v2844, 80
      %v2870 = vpop.permute.xlu0 %2869
      %2871 = vrot.lane.b32.xlu0 %v2845, 80
      %v2872 = vpop.permute.xlu0 %2871
      %2873 = vrot.lane.b32.xlu0 %v2846, 80
      %v2874 = vpop.permute.xlu0 %2873
      %2875 = vrot.lane.b32.xlu0 %v2847, 80
      %v2876 = vpop.permute.xlu0 %2875
      %2877 = vrot.lane.b32.xlu0 %v2848, 80
      %v2878 = vpop.permute.xlu0 %2877
      %2879 = vrot.lane.b32.xlu0 %v2849, 80
      %v2880 = vpop.permute.xlu0 %2879
      %2881 = vrot.lane.b32.xlu0 %v2850, 80
      %v2882 = vpop.permute.xlu0 %2881
      %2883 = vrot.lane.b32.xlu0 %v2851, 80
      %v2884 = vpop.permute.xlu0 %2883
      %2885 = vrot.lane.b32.xlu0 %v2852, 80
      %v2886 = vpop.permute.xlu0 %2885
      %2887 = vrot.lane.b32.xlu0 %v2853, 80
      %v2888 = vpop.permute.xlu0 %2887
      %2889 = vrot.lane.b32.xlu0 %v2854, 80
      %v2890 = vpop.permute.xlu0 %2889
      %v2891 = vrot.slane %v2868, 4
      %v2892 = vrot.slane %v2870, 4
      %v2893 = vrot.slane %v2872, 4
      %v2894 = vrot.slane %v2874, 4
      %v2895 = vrot.slane %v2876, 4
      %v2896 = vrot.slane %v2878, 4
      %v2897 = vrot.slane %v2880, 4
      %v2898 = vrot.slane %v2882, 4
      %v2899 = vrot.slane %v2884, 4
      %v2900 = vrot.slane %v2886, 4
      %v2901 = vrot.slane %v2888, 4
      %v2902 = vrot.slane %v2890, 4
      %v2903 = vsel %vm317, %v2891, %v2892
      %v2904 = vsel %vm824, %v2868, %v2903
      %v2905 = vsel %vm317, %v2892, %v2893
      %v2906 = vsel %vm824, %v2870, %v2905
      %v2907 = vsel %vm317, %v2894, %v2895
      %v2908 = vsel %vm824, %v2874, %v2907
      %v2909 = vsel %vm317, %v2895, %v2896
      %v2910 = vsel %vm824, %v2876, %v2909
      %v2911 = vsel %vm317, %v2897, %v2898
      %v2912 = vsel %vm824, %v2880, %v2911
      %v2913 = vsel %vm317, %v2898, %v2899
      %v2914 = vsel %vm824, %v2882, %v2913
      %v2915 = vsel %vm317, %v2900, %v2901
      %v2916 = vsel %vm824, %v2886, %v2915
      %v2917 = vsel %vm317, %v2901, %v2902
      %v2918 = vsel %vm824, %v2888, %v2917
      %2931 = vst [vmem:[#allocation2 + $0x1e0] sm:$0xff] %v2904
      %2932 = vst [vmem:[#allocation2 + $0x1e8] sm:$0xff] %v2906
      %2933 = vst.msk [vmem:[#allocation2 + $0x1f0] sm:$0xf] %vm246, %v2872
      %2934 = vst [vmem:[#allocation2 + $0x1f4] sm:$0xff] %v2908
      %2935 = vst [vmem:[#allocation2 + $0x1fc] sm:$0xff] %v2910
      %2936 = vst.msk [vmem:[#allocation2 + $0x204] sm:$0xf] %vm246, %v2878
      %2937 = vst [vmem:[#allocation2 + $0x208] sm:$0xff] %v2912
      %2938 = vst [vmem:[#allocation2 + $0x210] sm:$0xff] %v2914
      %2939 = vst.msk [vmem:[#allocation2 + $0x218] sm:$0xf] %vm246, %v2884
      %2940 = vst [vmem:[#allocation2 + $0x21c] sm:$0xff] %v2916
      %2941 = vst [vmem:[#allocation2 + $0x224] sm:$0xff] %v2918
      %2942 = vst.msk [vmem:[#allocation2 + $0x22c] sm:$0xf] %vm246, %v2890
      %v2943 = vld [vmem:[#allocation3] sm:$0xff]
      %v2944 = vld [vmem:[#allocation3 + $0x8] sm:$0xff]
      %v2945 = vld [vmem:[#allocation3 + $0x10] sm:$0xf]
      %v2946 = vld [vmem:[#allocation3 + $0x14] sm:$0xff]
      %v2947 = vld [vmem:[#allocation3 + $0x1c] sm:$0xff]
      %v2948 = vld [vmem:[#allocation3 + $0x24] sm:$0xf]
      %v2949 = vld [vmem:[#allocation3 + $0x28] sm:$0xff]
      %v2950 = vld [vmem:[#allocation3 + $0x30] sm:$0xff]
      %v2951 = vld [vmem:[#allocation3 + $0x38] sm:$0xf]
      %v2952 = vld [vmem:[#allocation3 + $0x3c] sm:$0xff]
      %v2953 = vld [vmem:[#allocation3 + $0x44] sm:$0xff]
      %v2954 = vld [vmem:[#allocation3 + $0x4c] sm:$0xf]
      %2967 = vrot.lane.b32.xlu0 %v2943, 79
      %v2968 = vpop.permute.xlu0 %2967
      %2969 = vrot.lane.b32.xlu0 %v2944, 79
      %v2970 = vpop.permute.xlu0 %2969
      %2971 = vrot.lane.b32.xlu0 %v2945, 79
      %v2972 = vpop.permute.xlu0 %2971
      %2973 = vrot.lane.b32.xlu0 %v2946, 79
      %v2974 = vpop.permute.xlu0 %2973
      %2975 = vrot.lane.b32.xlu0 %v2947, 79
      %v2976 = vpop.permute.xlu0 %2975
      %2977 = vrot.lane.b32.xlu0 %v2948, 79
      %v2978 = vpop.permute.xlu0 %2977
      %2979 = vrot.lane.b32.xlu0 %v2949, 79
      %v2980 = vpop.permute.xlu0 %2979
      %2981 = vrot.lane.b32.xlu0 %v2950, 79
      %v2982 = vpop.permute.xlu0 %2981
      %2983 = vrot.lane.b32.xlu0 %v2951, 79
      %v2984 = vpop.permute.xlu0 %2983
      %2985 = vrot.lane.b32.xlu0 %v2952, 79
      %v2986 = vpop.permute.xlu0 %2985
      %2987 = vrot.lane.b32.xlu0 %v2953, 79
      %v2988 = vpop.permute.xlu0 %2987
      %2989 = vrot.lane.b32.xlu0 %v2954, 79
      %v2990 = vpop.permute.xlu0 %2989
      %v2991 = vrot.slane %v2968, 4
      %v2992 = vrot.slane %v2970, 4
      %v2993 = vrot.slane %v2972, 4
      %v2994 = vrot.slane %v2974, 4
      %v2995 = vrot.slane %v2976, 4
      %v2996 = vrot.slane %v2978, 4
      %v2997 = vrot.slane %v2980, 4
      %v2998 = vrot.slane %v2982, 4
      %v2999 = vrot.slane %v2984, 4
      %v3000 = vrot.slane %v2986, 4
      %v3001 = vrot.slane %v2988, 4
      %v3002 = vrot.slane %v2990, 4
      %v3003 = vsel %vm317, %v2991, %v2992
      %v3004 = vsel %vm925, %v2968, %v3003
      %v3005 = vsel %vm317, %v2992, %v2993
      %v3006 = vsel %vm925, %v2970, %v3005
      %v3007 = vsel %vm317, %v2994, %v2995
      %v3008 = vsel %vm925, %v2974, %v3007
      %v3009 = vsel %vm317, %v2995, %v2996
      %v3010 = vsel %vm925, %v2976, %v3009
      %v3011 = vsel %vm317, %v2997, %v2998
      %v3012 = vsel %vm925, %v2980, %v3011
      %v3013 = vsel %vm317, %v2998, %v2999
      %v3014 = vsel %vm925, %v2982, %v3013
      %v3015 = vsel %vm317, %v3000, %v3001
      %v3016 = vsel %vm925, %v2986, %v3015
      %v3017 = vsel %vm317, %v3001, %v3002
      %v3018 = vsel %vm925, %v2988, %v3017
      %3031 = vst [vmem:[#allocation2 + $0x230] sm:$0xff] %v3004
      %3032 = vst [vmem:[#allocation2 + $0x238] sm:$0xff] %v3006
      %3033 = vst.msk [vmem:[#allocation2 + $0x240] sm:$0xf] %vm246, %v2972
      %3034 = vst [vmem:[#allocation2 + $0x244] sm:$0xff] %v3008
      %3035 = vst [vmem:[#allocation2 + $0x24c] sm:$0xff] %v3010
      %3036 = vst.msk [vmem:[#allocation2 + $0x254] sm:$0xf] %vm246, %v2978
      %3037 = vst [vmem:[#allocation2 + $0x258] sm:$0xff] %v3012
      %3038 = vst [vmem:[#allocation2 + $0x260] sm:$0xff] %v3014
      %3039 = vst.msk [vmem:[#allocation2 + $0x268] sm:$0xf] %vm246, %v2984
      %3040 = vst [vmem:[#allocation2 + $0x26c] sm:$0xff] %v3016
      %3041 = vst [vmem:[#allocation2 + $0x274] sm:$0xff] %v3018
      %3042 = vst.msk [vmem:[#allocation2 + $0x27c] sm:$0xf] %vm246, %v2990
      %v3043 = vld [vmem:[#allocation3] sm:$0xff]
      %v3044 = vld [vmem:[#allocation3 + $0x8] sm:$0xff]
      %v3045 = vld [vmem:[#allocation3 + $0x10] sm:$0xf]
      %v3046 = vld [vmem:[#allocation3 + $0x14] sm:$0xff]
      %v3047 = vld [vmem:[#allocation3 + $0x1c] sm:$0xff]
      %v3048 = vld [vmem:[#allocation3 + $0x24] sm:$0xf]
      %v3049 = vld [vmem:[#allocation3 + $0x28] sm:$0xff]
      %v3050 = vld [vmem:[#allocation3 + $0x30] sm:$0xff]
      %v3051 = vld [vmem:[#allocation3 + $0x38] sm:$0xf]
      %v3052 = vld [vmem:[#allocation3 + $0x3c] sm:$0xff]
      %v3053 = vld [vmem:[#allocation3 + $0x44] sm:$0xff]
      %v3054 = vld [vmem:[#allocation3 + $0x4c] sm:$0xf]
      %3067 = vrot.lane.b32.xlu0 %v3043, 78
      %v3068 = vpop.permute.xlu0 %3067
      %3069 = vrot.lane.b32.xlu0 %v3044, 78
      %v3070 = vpop.permute.xlu0 %3069
      %3071 = vrot.lane.b32.xlu0 %v3045, 78
      %v3072 = vpop.permute.xlu0 %3071
      %3073 = vrot.lane.b32.xlu0 %v3046, 78
      %v3074 = vpop.permute.xlu0 %3073
      %3075 = vrot.lane.b32.xlu0 %v3047, 78
      %v3076 = vpop.permute.xlu0 %3075
      %3077 = vrot.lane.b32.xlu0 %v3048, 78
      %v3078 = vpop.permute.xlu0 %3077
      %3079 = vrot.lane.b32.xlu0 %v3049, 78
      %v3080 = vpop.permute.xlu0 %3079
      %3081 = vrot.lane.b32.xlu0 %v3050, 78
      %v3082 = vpop.permute.xlu0 %3081
      %3083 = vrot.lane.b32.xlu0 %v3051, 78
      %v3084 = vpop.permute.xlu0 %3083
      %3085 = vrot.lane.b32.xlu0 %v3052, 78
      %v3086 = vpop.permute.xlu0 %3085
      %3087 = vrot.lane.b32.xlu0 %v3053, 78
      %v3088 = vpop.permute.xlu0 %3087
      %3089 = vrot.lane.b32.xlu0 %v3054, 78
      %v3090 = vpop.permute.xlu0 %3089
      %v3091 = vrot.slane %v3068, 4
      %v3092 = vrot.slane %v3070, 4
      %v3093 = vrot.slane %v3072, 4
      %v3094 = vrot.slane %v3074, 4
      %v3095 = vrot.slane %v3076, 4
      %v3096 = vrot.slane %v3078, 4
      %v3097 = vrot.slane %v3080, 4
      %v3098 = vrot.slane %v3082, 4
      %v3099 = vrot.slane %v3084, 4
      %v3100 = vrot.slane %v3086, 4
      %v3101 = vrot.slane %v3088, 4
      %v3102 = vrot.slane %v3090, 4
      %v3103 = vsel %vm317, %v3091, %v3092
      %v3104 = vsel %vm1026, %v3068, %v3103
      %v3105 = vsel %vm317, %v3092, %v3093
      %v3106 = vsel %vm1026, %v3070, %v3105
      %v3107 = vsel %vm317, %v3094, %v3095
      %v3108 = vsel %vm1026, %v3074, %v3107
      %v3109 = vsel %vm317, %v3095, %v3096
      %v3110 = vsel %vm1026, %v3076, %v3109
      %v3111 = vsel %vm317, %v3097, %v3098
      %v3112 = vsel %vm1026, %v3080, %v3111
      %v3113 = vsel %vm317, %v3098, %v3099
      %v3114 = vsel %vm1026, %v3082, %v3113
      %v3115 = vsel %vm317, %v3100, %v3101
      %v3116 = vsel %vm1026, %v3086, %v3115
      %v3117 = vsel %vm317, %v3101, %v3102
      %v3118 = vsel %vm1026, %v3088, %v3117
      %3131 = vst [vmem:[#allocation2 + $0x280] sm:$0xff] %v3104
      %3132 = vst [vmem:[#allocation2 + $0x288] sm:$0xff] %v3106
      %3133 = vst.msk [vmem:[#allocation2 + $0x290] sm:$0xf] %vm246, %v3072
      %3134 = vst [vmem:[#allocation2 + $0x294] sm:$0xff] %v3108
      %3135 = vst [vmem:[#allocation2 + $0x29c] sm:$0xff] %v3110
      %3136 = vst.msk [vmem:[#allocation2 + $0x2a4] sm:$0xf] %vm246, %v3078
      %3137 = vst [vmem:[#allocation2 + $0x2a8] sm:$0xff] %v3112
      %3138 = vst [vmem:[#allocation2 + $0x2b0] sm:$0xff] %v3114
      %3139 = vst.msk [vmem:[#allocation2 + $0x2b8] sm:$0xf] %vm246, %v3084
      %3140 = vst [vmem:[#allocation2 + $0x2bc] sm:$0xff] %v3116
      %3141 = vst [vmem:[#allocation2 + $0x2c4] sm:$0xff] %v3118
      %3142 = vst.msk [vmem:[#allocation2 + $0x2cc] sm:$0xf] %vm246, %v3090
      %v3143 = vld [vmem:[%s2] sm:$0xff]
      %v3144 = vld [vmem:[%s2 + $0x8] sm:$0xf]
      %v3145 = vld [vmem:[%s2 + $0xc] sm:$0xff]
      %v3146 = vld [vmem:[%s2 + $0x14] sm:$0xf]
      %v3147 = vld [vmem:[%s2 + $0x18] sm:$0xff]
      %v3148 = vld [vmem:[%s2 + $0x20] sm:$0xf]
      %v3149 = vld [vmem:[%s2 + $0x24] sm:$0xff]
      %v3150 = vld [vmem:[%s2 + $0x2c] sm:$0xf]
      %v3151 = vld [vmem:[#allocation2] sm:$0xff]
      %v3152 = vld [vmem:[#allocation2 + $0x8] sm:$0xff]
      %v3153 = vld [vmem:[#allocation2 + $0x10] sm:$0xf]
      %v3154 = vld [vmem:[#allocation2 + $0x14] sm:$0xff]
      %v3155 = vld [vmem:[#allocation2 + $0x1c] sm:$0xff]
      %v3156 = vld [vmem:[#allocation2 + $0x24] sm:$0xf]
      %v3157 = vld [vmem:[#allocation2 + $0x28] sm:$0xff]
      %v3158 = vld [vmem:[#allocation2 + $0x30] sm:$0xff]
      %v3159 = vld [vmem:[#allocation2 + $0x38] sm:$0xf]
      %v3160 = vld [vmem:[#allocation2 + $0x3c] sm:$0xff]
      %v3161 = vld [vmem:[#allocation2 + $0x44] sm:$0xff]
      %v3162 = vld [vmem:[#allocation2 + $0x4c] sm:$0xf]
      %v3163 = vld [vmem:[#allocation2 + $0x50] sm:$0xff]
      %v3164 = vld [vmem:[#allocation2 + $0x58] sm:$0xff]
      %v3165 = vld [vmem:[#allocation2 + $0x60] sm:$0xf]
      %v3166 = vld [vmem:[#allocation2 + $0x64] sm:$0xff]
      %v3167 = vld [vmem:[#allocation2 + $0x6c] sm:$0xff]
      %v3168 = vld [vmem:[#allocation2 + $0x74] sm:$0xf]
      %v3169 = vld [vmem:[#allocation2 + $0x78] sm:$0xff]
      %v3170 = vld [vmem:[#allocation2 + $0x80] sm:$0xff]
      %v3171 = vld [vmem:[#allocation2 + $0x88] sm:$0xf]
      %v3172 = vld [vmem:[#allocation2 + $0x8c] sm:$0xff]
      %v3173 = vld [vmem:[#allocation2 + $0x94] sm:$0xff]
      %v3174 = vld [vmem:[#allocation2 + $0x9c] sm:$0xf]
      %v3175 = vld [vmem:[#allocation2 + $0xa0] sm:$0xff]
      %v3176 = vld [vmem:[#allocation2 + $0xa8] sm:$0xff]
      %v3177 = vld [vmem:[#allocation2 + $0xb0] sm:$0xf]
      %v3178 = vld [vmem:[#allocation2 + $0xb4] sm:$0xff]
      %v3179 = vld [vmem:[#allocation2 + $0xbc] sm:$0xff]
      %v3180 = vld [vmem:[#allocation2 + $0xc4] sm:$0xf]
      %v3181 = vld [vmem:[#allocation2 + $0xc8] sm:$0xff]
      %v3182 = vld [vmem:[#allocation2 + $0xd0] sm:$0xff]
      %v3183 = vld [vmem:[#allocation2 + $0xd8] sm:$0xf]
      %v3184 = vld [vmem:[#allocation2 + $0xdc] sm:$0xff]
      %v3185 = vld [vmem:[#allocation2 + $0xe4] sm:$0xff]
      %v3186 = vld [vmem:[#allocation2 + $0xec] sm:$0xf]
      %v3187 = vld [vmem:[#allocation2 + $0xf0] sm:$0xff]
      %v3188 = vld [vmem:[#allocation2 + $0xf8] sm:$0xff]
      %v3189 = vld [vmem:[#allocation2 + $0x100] sm:$0xf]
      %v3190 = vld [vmem:[#allocation2 + $0x104] sm:$0xff]
      %v3191 = vld [vmem:[#allocation2 + $0x10c] sm:$0xff]
      %v3192 = vld [vmem:[#allocation2 + $0x114] sm:$0xf]
      %v3193 = vld [vmem:[#allocation2 + $0x118] sm:$0xff]
      %v3194 = vld [vmem:[#allocation2 + $0x120] sm:$0xff]
      %v3195 = vld [vmem:[#allocation2 + $0x128] sm:$0xf]
      %v3196 = vld [vmem:[#allocation2 + $0x12c] sm:$0xff]
      %v3197 = vld [vmem:[#allocation2 + $0x134] sm:$0xff]
      %v3198 = vld [vmem:[#allocation2 + $0x13c] sm:$0xf]
      %v3199 = vld [vmem:[#allocation2 + $0x140] sm:$0xff]
      %v3200 = vld [vmem:[#allocation2 + $0x148] sm:$0xff]
      %v3201 = vld [vmem:[#allocation2 + $0x150] sm:$0xf]
      %v3202 = vld [vmem:[#allocation2 + $0x154] sm:$0xff]
      %v3203 = vld [vmem:[#allocation2 + $0x15c] sm:$0xff]
      %v3204 = vld [vmem:[#allocation2 + $0x164] sm:$0xf]
      %v3205 = vld [vmem:[#allocation2 + $0x168] sm:$0xff]
      %v3206 = vld [vmem:[#allocation2 + $0x170] sm:$0xff]
      %v3207 = vld [vmem:[#allocation2 + $0x178] sm:$0xf]
      %v3208 = vld [vmem:[#allocation2 + $0x17c] sm:$0xff]
      %v3209 = vld [vmem:[#allocation2 + $0x184] sm:$0xff]
      %v3210 = vld [vmem:[#allocation2 + $0x18c] sm:$0xf]
      %v3211 = vld [vmem:[#allocation2 + $0x190] sm:$0xff]
      %v3212 = vld [vmem:[#allocation2 + $0x198] sm:$0xff]
      %v3213 = vld [vmem:[#allocation2 + $0x1a0] sm:$0xf]
      %v3214 = vld [vmem:[#allocation2 + $0x1a4] sm:$0xff]
      %v3215 = vld [vmem:[#allocation2 + $0x1ac] sm:$0xff]
      %v3216 = vld [vmem:[#allocation2 + $0x1b4] sm:$0xf]
      %v3217 = vld [vmem:[#allocation2 + $0x1b8] sm:$0xff]
      %v3218 = vld [vmem:[#allocation2 + $0x1c0] sm:$0xff]
      %v3219 = vld [vmem:[#allocation2 + $0x1c8] sm:$0xf]
      %v3220 = vld [vmem:[#allocation2 + $0x1cc] sm:$0xff]
      %v3221 = vld [vmem:[#allocation2 + $0x1d4] sm:$0xff]
      %v3222 = vld [vmem:[#allocation2 + $0x1dc] sm:$0xf]
      %v3223 = vld [vmem:[#allocation2 + $0x1e0] sm:$0xff]
      %v3224 = vld [vmem:[#allocation2 + $0x1e8] sm:$0xff]
      %v3225 = vld [vmem:[#allocation2 + $0x1f0] sm:$0xf]
      %v3226 = vld [vmem:[#allocation2 + $0x1f4] sm:$0xff]
      %v3227 = vld [vmem:[#allocation2 + $0x1fc] sm:$0xff]
      %v3228 = vld [vmem:[#allocation2 + $0x204] sm:$0xf]
      %v3229 = vld [vmem:[#allocation2 + $0x208] sm:$0xff]
      %v3230 = vld [vmem:[#allocation2 + $0x210] sm:$0xff]
      %v3231 = vld [vmem:[#allocation2 + $0x218] sm:$0xf]
      %v3232 = vld [vmem:[#allocation2 + $0x21c] sm:$0xff]
      %v3233 = vld [vmem:[#allocation2 + $0x224] sm:$0xff]
      %v3234 = vld [vmem:[#allocation2 + $0x22c] sm:$0xf]
      %v3235 = vld [vmem:[#allocation2 + $0x230] sm:$0xff]
      %v3236 = vld [vmem:[#allocation2 + $0x238] sm:$0xff]
      %v3237 = vld [vmem:[#allocation2 + $0x240] sm:$0xf]
      %v3238 = vld [vmem:[#allocation2 + $0x244] sm:$0xff]
      %v3239 = vld [vmem:[#allocation2 + $0x24c] sm:$0xff]
      %v3240 = vld [vmem:[#allocation2 + $0x254] sm:$0xf]
      %v3241 = vld [vmem:[#allocation2 + $0x258] sm:$0xff]
      %v3242 = vld [vmem:[#allocation2 + $0x260] sm:$0xff]
      %v3243 = vld [vmem:[#allocation2 + $0x268] sm:$0xf]
      %v3244 = vld [vmem:[#allocation2 + $0x26c] sm:$0xff]
      %v3245 = vld [vmem:[#allocation2 + $0x274] sm:$0xff]
      %v3246 = vld [vmem:[#allocation2 + $0x27c] sm:$0xf]
      %v3247 = vld [vmem:[#allocation2 + $0x280] sm:$0xff]
      %v3248 = vld [vmem:[#allocation2 + $0x288] sm:$0xff]
      %v3249 = vld [vmem:[#allocation2 + $0x290] sm:$0xf]
      %v3250 = vld [vmem:[#allocation2 + $0x294] sm:$0xff]
      %v3251 = vld [vmem:[#allocation2 + $0x29c] sm:$0xff]
      %v3252 = vld [vmem:[#allocation2 + $0x2a4] sm:$0xf]
      %v3253 = vld [vmem:[#allocation2 + $0x2a8] sm:$0xff]
      %v3254 = vld [vmem:[#allocation2 + $0x2b0] sm:$0xff]
      %v3255 = vld [vmem:[#allocation2 + $0x2b8] sm:$0xf]
      %v3256 = vld [vmem:[#allocation2 + $0x2bc] sm:$0xff]
      %v3257 = vld [vmem:[#allocation2 + $0x2c4] sm:$0xff]
      %v3258 = vld [vmem:[#allocation2 + $0x2cc] sm:$0xf]
      %3259 = vset.pattern.permute.xlu0 3
      %3260 = vperm.xlu0 %3259, %v226
      %v3261 = vpop.permute.xlu0 %3260
      %3263 = vset.pattern.permute.xlu0 3
      %3264 = vperm.xlu0 %3263, %v227
      %v3265 = vpop.permute.xlu0 %3264
      %3267 = vset.pattern.permute.xlu0 3
      %3268 = vperm.xlu0 %3267, %v228
      %v3269 = vpop.permute.xlu0 %3268
      %3271 = vset.pattern.permute.xlu0 3
      %3272 = vperm.xlu0 %3271, %v229
      %v3273 = vpop.permute.xlu0 %3272
      %v3283 = vunpack.c.l.b16 %v3143
      %v3284 = vunpack.c.h.b16 %v3143
      %v3285 = vunpack.c.l.b16 %v3144
      %v3286 = vunpack.c.l.b16 %v3145
      %v3287 = vunpack.c.h.b16 %v3145
      %v3288 = vunpack.c.l.b16 %v3146
      %v3289 = vunpack.c.l.b16 %v3147
      %v3290 = vunpack.c.h.b16 %v3147
      %v3291 = vunpack.c.l.b16 %v3148
      %v3292 = vunpack.c.l.b16 %v3149
      %v3293 = vunpack.c.h.b16 %v3149
      %v3294 = vunpack.c.l.b16 %v3150
      %v3295 = vpack.c.b16 %v3286, %v3283
      %v3296 = vpack.c.b16 %v3287, %v3284
      %v3297 = vpack.c.b16 %v3288, %v3285
      %v3298 = vpack.c.b16 %v3292, %v3289
      %v3299 = vpack.c.b16 %v3293, %v3290
      %v3300 = vpack.c.b16 %v3294, %v3291
      %v3413 = vunpack.c.l.b16 %v3151
      %v3414 = vunpack.c.h.b16 %v3151
      %v3415 = vunpack.c.l.b16 %v3152
      %v3416 = vunpack.c.h.b16 %v3152
      %v3417 = vunpack.c.l.b16 %v3153
      %v3418 = vunpack.c.l.b16 %v3154
      %v3419 = vunpack.c.h.b16 %v3154
      %v3420 = vunpack.c.l.b16 %v3155
      %v3421 = vunpack.c.h.b16 %v3155
      %v3422 = vunpack.c.l.b16 %v3156
      %v3423 = vunpack.c.l.b16 %v3157
      %v3424 = vunpack.c.h.b16 %v3157
      %v3425 = vunpack.c.l.b16 %v3158
      %v3426 = vunpack.c.h.b16 %v3158
      %v3427 = vunpack.c.l.b16 %v3159
      %v3428 = vunpack.c.l.b16 %v3160
      %v3429 = vunpack.c.h.b16 %v3160
      %v3430 = vunpack.c.l.b16 %v3161
      %v3431 = vunpack.c.h.b16 %v3161
      %v3432 = vunpack.c.l.b16 %v3162
      %v3433 = vunpack.c.l.b16 %v3163
      %v3434 = vunpack.c.h.b16 %v3163
      %v3435 = vunpack.c.l.b16 %v3164
      %v3436 = vunpack.c.h.b16 %v3164
      %v3437 = vunpack.c.l.b16 %v3165
      %v3438 = vunpack.c.l.b16 %v3166
      %v3439 = vunpack.c.h.b16 %v3166
      %v3440 = vunpack.c.l.b16 %v3167
      %v3441 = vunpack.c.h.b16 %v3167
      %v3442 = vunpack.c.l.b16 %v3168
      %v3443 = vunpack.c.l.b16 %v3169
      %v3444 = vunpack.c.h.b16 %v3169
      %v3445 = vunpack.c.l.b16 %v3170
      %v3446 = vunpack.c.h.b16 %v3170
      %v3447 = vunpack.c.l.b16 %v3171
      %v3448 = vunpack.c.l.b16 %v3172
      %v3449 = vunpack.c.h.b16 %v3172
      %v3450 = vunpack.c.l.b16 %v3173
      %v3451 = vunpack.c.h.b16 %v3173
      %v3452 = vunpack.c.l.b16 %v3174
      %v3453 = vunpack.c.l.b16 %v3175
      %v3454 = vunpack.c.h.b16 %v3175
      %v3455 = vunpack.c.l.b16 %v3176
      %v3456 = vunpack.c.h.b16 %v3176
      %v3457 = vunpack.c.l.b16 %v3177
      %v3458 = vunpack.c.l.b16 %v3178
      %v3459 = vunpack.c.h.b16 %v3178
      %v3460 = vunpack.c.l.b16 %v3179
      %v3461 = vunpack.c.h.b16 %v3179
      %v3462 = vunpack.c.l.b16 %v3180
      %v3463 = vunpack.c.l.b16 %v3181
      %v3464 = vunpack.c.h.b16 %v3181
      %v3465 = vunpack.c.l.b16 %v3182
      %v3466 = vunpack.c.h.b16 %v3182
      %v3467 = vunpack.c.l.b16 %v3183
      %v3468 = vunpack.c.l.b16 %v3184
      %v3469 = vunpack.c.h.b16 %v3184
      %v3470 = vunpack.c.l.b16 %v3185
      %v3471 = vunpack.c.h.b16 %v3185
      %v3472 = vunpack.c.l.b16 %v3186
      %v3473 = vunpack.c.l.b16 %v3187
      %v3474 = vunpack.c.h.b16 %v3187
      %v3475 = vunpack.c.l.b16 %v3188
      %v3476 = vunpack.c.h.b16 %v3188
      %v3477 = vunpack.c.l.b16 %v3189
      %v3478 = vunpack.c.l.b16 %v3190
      %v3479 = vunpack.c.h.b16 %v3190
      %v3480 = vunpack.c.l.b16 %v3191
      %v3481 = vunpack.c.h.b16 %v3191
      %v3482 = vunpack.c.l.b16 %v3192
      %v3483 = vunpack.c.l.b16 %v3193
      %v3484 = vunpack.c.h.b16 %v3193
      %v3485 = vunpack.c.l.b16 %v3194
      %v3486 = vunpack.c.h.b16 %v3194
      %v3487 = vunpack.c.l.b16 %v3195
      %v3488 = vunpack.c.l.b16 %v3196
      %v3489 = vunpack.c.h.b16 %v3196
      %v3490 = vunpack.c.l.b16 %v3197
      %v3491 = vunpack.c.h.b16 %v3197
      %v3492 = vunpack.c.l.b16 %v3198
      %v3493 = vunpack.c.l.b16 %v3199
      %v3494 = vunpack.c.h.b16 %v3199
      %v3495 = vunpack.c.l.b16 %v3200
      %v3496 = vunpack.c.h.b16 %v3200
      %v3497 = vunpack.c.l.b16 %v3201
      %v3498 = vunpack.c.l.b16 %v3202
      %v3499 = vunpack.c.h.b16 %v3202
      %v3500 = vunpack.c.l.b16 %v3203
      %v3501 = vunpack.c.h.b16 %v3203
      %v3502 = vunpack.c.l.b16 %v3204
      %v3503 = vunpack.c.l.b16 %v3205
      %v3504 = vunpack.c.h.b16 %v3205
      %v3505 = vunpack.c.l.b16 %v3206
      %v3506 = vunpack.c.h.b16 %v3206
      %v3507 = vunpack.c.l.b16 %v3207
      %v3508 = vunpack.c.l.b16 %v3208
      %v3509 = vunpack.c.h.b16 %v3208
      %v3510 = vunpack.c.l.b16 %v3209
      %v3511 = vunpack.c.h.b16 %v3209
      %v3512 = vunpack.c.l.b16 %v3210
      %v3513 = vunpack.c.l.b16 %v3211
      %v3514 = vunpack.c.h.b16 %v3211
      %v3515 = vunpack.c.l.b16 %v3212
      %v3516 = vunpack.c.h.b16 %v3212
      %v3517 = vunpack.c.l.b16 %v3213
      %v3518 = vunpack.c.l.b16 %v3214
      %v3519 = vunpack.c.h.b16 %v3214
      %v3520 = vunpack.c.l.b16 %v3215
      %v3521 = vunpack.c.h.b16 %v3215
      %v3522 = vunpack.c.l.b16 %v3216
      %v3523 = vunpack.c.l.b16 %v3217
      %v3524 = vunpack.c.h.b16 %v3217
      %v3525 = vunpack.c.l.b16 %v3218
      %v3526 = vunpack.c.h.b16 %v3218
      %v3527 = vunpack.c.l.b16 %v3219
      %v3528 = vunpack.c.l.b16 %v3220
      %v3529 = vunpack.c.h.b16 %v3220
      %v3530 = vunpack.c.l.b16 %v3221
      %v3531 = vunpack.c.h.b16 %v3221
      %v3532 = vunpack.c.l.b16 %v3222
      %v3533 = vunpack.c.l.b16 %v3223
      %v3534 = vunpack.c.h.b16 %v3223
      %v3535 = vunpack.c.l.b16 %v3224
      %v3536 = vunpack.c.h.b16 %v3224
      %v3537 = vunpack.c.l.b16 %v3225
      %v3538 = vunpack.c.l.b16 %v3226
      %v3539 = vunpack.c.h.b16 %v3226
      %v3540 = vunpack.c.l.b16 %v3227
      %v3541 = vunpack.c.h.b16 %v3227
      %v3542 = vunpack.c.l.b16 %v3228
      %v3543 = vunpack.c.l.b16 %v3229
      %v3544 = vunpack.c.h.b16 %v3229
      %v3545 = vunpack.c.l.b16 %v3230
      %v3546 = vunpack.c.h.b16 %v3230
      %v3547 = vunpack.c.l.b16 %v3231
      %v3548 = vunpack.c.l.b16 %v3232
      %v3549 = vunpack.c.h.b16 %v3232
      %v3550 = vunpack.c.l.b16 %v3233
      %v3551 = vunpack.c.h.b16 %v3233
      %v3552 = vunpack.c.l.b16 %v3234
      %v3553 = vunpack.c.l.b16 %v3235
      %v3554 = vunpack.c.h.b16 %v3235
      %v3555 = vunpack.c.l.b16 %v3236
      %v3556 = vunpack.c.h.b16 %v3236
      %v3557 = vunpack.c.l.b16 %v3237
      %v3558 = vunpack.c.l.b16 %v3238
      %v3559 = vunpack.c.h.b16 %v3238
      %v3560 = vunpack.c.l.b16 %v3239
      %v3561 = vunpack.c.h.b16 %v3239
      %v3562 = vunpack.c.l.b16 %v3240
      %v3563 = vunpack.c.l.b16 %v3241
      %v3564 = vunpack.c.h.b16 %v3241
      %v3565 = vunpack.c.l.b16 %v3242
      %v3566 = vunpack.c.h.b16 %v3242
      %v3567 = vunpack.c.l.b16 %v3243
      %v3568 = vunpack.c.l.b16 %v3244
      %v3569 = vunpack.c.h.b16 %v3244
      %v3570 = vunpack.c.l.b16 %v3245
      %v3571 = vunpack.c.h.b16 %v3245
      %v3572 = vunpack.c.l.b16 %v3246
      %v3573 = vunpack.c.l.b16 %v3247
      %v3574 = vunpack.c.h.b16 %v3247
      %v3575 = vunpack.c.l.b16 %v3248
      %v3576 = vunpack.c.h.b16 %v3248
      %v3577 = vunpack.c.l.b16 %v3249
      %v3578 = vunpack.c.l.b16 %v3250
      %v3579 = vunpack.c.h.b16 %v3250
      %v3580 = vunpack.c.l.b16 %v3251
      %v3581 = vunpack.c.h.b16 %v3251
      %v3582 = vunpack.c.l.b16 %v3252
      %v3583 = vunpack.c.l.b16 %v3253
      %v3584 = vunpack.c.h.b16 %v3253
      %v3585 = vunpack.c.l.b16 %v3254
      %v3586 = vunpack.c.h.b16 %v3254
      %v3587 = vunpack.c.l.b16 %v3255
      %v3588 = vunpack.c.l.b16 %v3256
      %v3589 = vunpack.c.h.b16 %v3256
      %v3590 = vunpack.c.l.b16 %v3257
      %v3591 = vunpack.c.h.b16 %v3257
      %v3592 = vunpack.c.l.b16 %v3258
      %v3593 = vpack.c.b16 %v3418, %v3413
      %v3594 = vpack.c.b16 %v3419, %v3414
      %v3595 = vpack.c.b16 %v3420, %v3415
      %v3596 = vpack.c.b16 %v3421, %v3416
      %v3597 = vpack.c.b16 %v3422, %v3417
      %v3598 = vpack.c.b16 %v3428, %v3423
      %v3599 = vpack.c.b16 %v3429, %v3424
      %v3600 = vpack.c.b16 %v3430, %v3425
      %v3601 = vpack.c.b16 %v3431, %v3426
      %v3602 = vpack.c.b16 %v3432, %v3427
      %v3603 = vpack.c.b16 %v3438, %v3433
      %v3604 = vpack.c.b16 %v3439, %v3434
      %v3605 = vpack.c.b16 %v3440, %v3435
      %v3606 = vpack.c.b16 %v3441, %v3436
      %v3607 = vpack.c.b16 %v3442, %v3437
      %v3608 = vpack.c.b16 %v3448, %v3443
      %v3609 = vpack.c.b16 %v3449, %v3444
      %v3610 = vpack.c.b16 %v3450, %v3445
      %v3611 = vpack.c.b16 %v3451, %v3446
      %v3612 = vpack.c.b16 %v3452, %v3447
      %v3613 = vpack.c.b16 %v3458, %v3453
      %v3614 = vpack.c.b16 %v3459, %v3454
      %v3615 = vpack.c.b16 %v3460, %v3455
      %v3616 = vpack.c.b16 %v3461, %v3456
      %v3617 = vpack.c.b16 %v3462, %v3457
      %v3618 = vpack.c.b16 %v3468, %v3463
      %v3619 = vpack.c.b16 %v3469, %v3464
      %v3620 = vpack.c.b16 %v3470, %v3465
      %v3621 = vpack.c.b16 %v3471, %v3466
      %v3622 = vpack.c.b16 %v3472, %v3467
      %v3623 = vpack.c.b16 %v3478, %v3473
      %v3624 = vpack.c.b16 %v3479, %v3474
      %v3625 = vpack.c.b16 %v3480, %v3475
      %v3626 = vpack.c.b16 %v3481, %v3476
      %v3627 = vpack.c.b16 %v3482, %v3477
      %v3628 = vpack.c.b16 %v3488, %v3483
      %v3629 = vpack.c.b16 %v3489, %v3484
      %v3630 = vpack.c.b16 %v3490, %v3485
      %v3631 = vpack.c.b16 %v3491, %v3486
      %v3632 = vpack.c.b16 %v3492, %v3487
      %v3633 = vpack.c.b16 %v3498, %v3493
      %v3634 = vpack.c.b16 %v3499, %v3494
      %v3635 = vpack.c.b16 %v3500, %v3495
      %v3636 = vpack.c.b16 %v3501, %v3496
      %v3637 = vpack.c.b16 %v3502, %v3497
      %v3638 = vpack.c.b16 %v3508, %v3503
      %v3639 = vpack.c.b16 %v3509, %v3504
      %v3640 = vpack.c.b16 %v3510, %v3505
      %v3641 = vpack.c.b16 %v3511, %v3506
      %v3642 = vpack.c.b16 %v3512, %v3507
      %v3643 = vpack.c.b16 %v3518, %v3513
      %v3644 = vpack.c.b16 %v3519, %v3514
      %v3645 = vpack.c.b16 %v3520, %v3515
      %v3646 = vpack.c.b16 %v3521, %v3516
      %v3647 = vpack.c.b16 %v3522, %v3517
      %v3648 = vpack.c.b16 %v3528, %v3523
      %v3649 = vpack.c.b16 %v3529, %v3524
      %v3650 = vpack.c.b16 %v3530, %v3525
      %v3651 = vpack.c.b16 %v3531, %v3526
      %v3652 = vpack.c.b16 %v3532, %v3527
      %v3653 = vpack.c.b16 %v3538, %v3533
      %v3654 = vpack.c.b16 %v3539, %v3534
      %v3655 = vpack.c.b16 %v3540, %v3535
      %v3656 = vpack.c.b16 %v3541, %v3536
      %v3657 = vpack.c.b16 %v3542, %v3537
      %v3658 = vpack.c.b16 %v3548, %v3543
      %v3659 = vpack.c.b16 %v3549, %v3544
      %v3660 = vpack.c.b16 %v3550, %v3545
      %v3661 = vpack.c.b16 %v3551, %v3546
      %v3662 = vpack.c.b16 %v3552, %v3547
      %v3663 = vpack.c.b16 %v3558, %v3553
      %v3664 = vpack.c.b16 %v3559, %v3554
      %v3665 = vpack.c.b16 %v3560, %v3555
      %v3666 = vpack.c.b16 %v3561, %v3556
      %v3667 = vpack.c.b16 %v3562, %v3557
      %v3668 = vpack.c.b16 %v3568, %v3563
      %v3669 = vpack.c.b16 %v3569, %v3564
      %v3670 = vpack.c.b16 %v3570, %v3565
      %v3671 = vpack.c.b16 %v3571, %v3566
      %v3672 = vpack.c.b16 %v3572, %v3567
      %v3673 = vpack.c.b16 %v3578, %v3573
      %v3674 = vpack.c.b16 %v3579, %v3574
      %v3675 = vpack.c.b16 %v3580, %v3575
      %v3676 = vpack.c.b16 %v3581, %v3576
      %v3677 = vpack.c.b16 %v3582, %v3577
      %v3678 = vpack.c.b16 %v3588, %v3583
      %v3679 = vpack.c.b16 %v3589, %v3584
      %v3680 = vpack.c.b16 %v3590, %v3585
      %v3681 = vpack.c.b16 %v3591, %v3586
      %v3682 = vpack.c.b16 %v3592, %v3587
      %v3774 = vsel %vm1700, %v3297, 0
      %v3777 = vsel %vm1700, %v3300, 0
      %3779 = vmatpush.bf16.msra.mxu0 %v3628
      %3780 = vmatpush.bf16.msra.mxu0 %v3623
      %3781 = vmatpush.bf16.msra.mxu0 %v3618
      %3782 = vmatpush.bf16.msra.mxu0 %v3613
      %3783 = vmatpush.bf16.msra.mxu0 %v3608
      %3784 = vmatpush.bf16.msra.mxu0 %v3603
      %3785 = vmatpush.bf16.msra.mxu0 %v3598
      %3786 = vmatpush.bf16.msra.mxu0 %v3593
      %3787 = vmatmul.bf16.gmra.mxu0 %v3295
      %v3788 = vpop.f32.mrf.mxu0
      %v3789 = vadd.f32 %v3261, %v3788
      %v3790 = vpop.f32.mrf.mxu0
      %v3791 = vadd.f32 %v3265, %v3790
      %3792 = vmatmul.bf16.gmra.mxu0 %v3298
      %v3793 = vpop.f32.mrf.mxu0
      %v3794 = vadd.f32 %v3269, %v3793
      %v3795 = vpop.f32.mrf.mxu0
      %v3796 = vadd.f32 %v3273, %v3795
      %3797 = vdwg.mxu0
      %3798 = vmatpush.bf16.msra.mxu0 %v3668
      %3799 = vmatpush.bf16.msra.mxu0 %v3663
      %3800 = vmatpush.bf16.msra.mxu0 %v3658
      %3801 = vmatpush.bf16.msra.mxu0 %v3653
      %3802 = vmatpush.bf16.msra.mxu0 %v3648
      %3803 = vmatpush.bf16.msra.mxu0 %v3643
      %3804 = vmatpush.bf16.msra.mxu0 %v3638
      %3805 = vmatpush.bf16.msra.mxu0 %v3633
      %3806 = vmatmul.bf16.gmra.mxu0 %v3296
      %v3807 = vpop.f32.mrf.mxu0
      %v3808 = vadd.f32 %v3789, %v3807
      %v3809 = vpop.f32.mrf.mxu0
      %v3810 = vadd.f32 %v3791, %v3809
      %3811 = vmatmul.bf16.gmra.mxu0 %v3299
      %v3812 = vpop.f32.mrf.mxu0
      %v3813 = vadd.f32 %v3794, %v3812
      %v3814 = vpop.f32.mrf.mxu0
      %v3815 = vadd.f32 %v3796, %v3814
      %3816 = vdwg.mxu0
      %3817 = vmatpush.bf16.msra.mxu0 0
      %3818 = vmatpush.bf16.msra.mxu0 0
      %3819 = vmatpush.bf16.msra.mxu0 0
      %3820 = vmatpush.bf16.msra.mxu0 0
      %3821 = vmatpush.bf16.msra.mxu0 0
      %3822 = vmatpush.bf16.msra.mxu0 0
      %3823 = vmatpush.bf16.msra.mxu0 %v3678
      %3824 = vmatpush.bf16.msra.mxu0 %v3673
      %3825 = vmatmul.bf16.gmra.mxu0 %v3774
      %v3826 = vpop.f32.mrf.mxu0
      %v3827 = vadd.f32 %v3808, %v3826
      %v3828 = vpop.f32.mrf.mxu0
      %v3829 = vadd.f32 %v3810, %v3828
      %3830 = vmatmul.bf16.gmra.mxu0 %v3777
      %v3831 = vpop.f32.mrf.mxu0
      %v3832 = vadd.f32 %v3813, %v3831
      %v3833 = vpop.f32.mrf.mxu0
      %v3834 = vadd.f32 %v3815, %v3833
      %3835 = vdwg.mxu0
      %3836 = vmatpush.bf16.msra.mxu0 %v3629
      %3837 = vmatpush.bf16.msra.mxu0 %v3624
      %3838 = vmatpush.bf16.msra.mxu0 %v3619
      %3839 = vmatpush.bf16.msra.mxu0 %v3614
      %3840 = vmatpush.bf16.msra.mxu0 %v3609
      %3841 = vmatpush.bf16.msra.mxu0 %v3604
      %3842 = vmatpush.bf16.msra.mxu0 %v3599
      %3843 = vmatpush.bf16.msra.mxu0 %v3594
      %3844 = vmatmul.bf16.gmra.mxu0 %v3295
      %v3845 = vpop.f32.mrf.mxu0
      %v3846 = vadd.f32 %v3261, %v3845
      %v3847 = vpop.f32.mrf.mxu0
      %v3848 = vadd.f32 %v3265, %v3847
      %3849 = vmatmul.bf16.gmra.mxu0 %v3298
      %v3850 = vpop.f32.mrf.mxu0
      %v3851 = vadd.f32 %v3269, %v3850
      %v3852 = vpop.f32.mrf.mxu0
      %v3853 = vadd.f32 %v3273, %v3852
      %3854 = vdwg.mxu0
      %3855 = vmatpush.bf16.msra.mxu0 %v3669
      %3856 = vmatpush.bf16.msra.mxu0 %v3664
      %3857 = vmatpush.bf16.msra.mxu0 %v3659
      %3858 = vmatpush.bf16.msra.mxu0 %v3654
      %3859 = vmatpush.bf16.msra.mxu0 %v3649
      %3860 = vmatpush.bf16.msra.mxu0 %v3644
      %3861 = vmatpush.bf16.msra.mxu0 %v3639
      %3862 = vmatpush.bf16.msra.mxu0 %v3634
      %3863 = vmatmul.bf16.gmra.mxu0 %v3296
      %v3864 = vpop.f32.mrf.mxu0
      %v3865 = vadd.f32 %v3846, %v3864
      %v3866 = vpop.f32.mrf.mxu0
      %v3867 = vadd.f32 %v3848, %v3866
      %3868 = vmatmul.bf16.gmra.mxu0 %v3299
      %v3869 = vpop.f32.mrf.mxu0
      %v3870 = vadd.f32 %v3851, %v3869
      %v3871 = vpop.f32.mrf.mxu0
      %v3872 = vadd.f32 %v3853, %v3871
      %3873 = vdwg.mxu0
      %3874 = vmatpush.bf16.msra.mxu0 0
      %3875 = vmatpush.bf16.msra.mxu0 0
      %3876 = vmatpush.bf16.msra.mxu0 0
      %3877 = vmatpush.bf16.msra.mxu0 0
      %3878 = vmatpush.bf16.msra.mxu0 0
      %3879 = vmatpush.bf16.msra.mxu0 0
      %3880 = vmatpush.bf16.msra.mxu0 %v3679
      %3881 = vmatpush.bf16.msra.mxu0 %v3674
      %3882 = vmatmul.bf16.gmra.mxu0 %v3774
      %v3883 = vpop.f32.mrf.mxu0
      %v3884 = vadd.f32 %v3865, %v3883
      %v3885 = vpop.f32.mrf.mxu0
      %v3886 = vadd.f32 %v3867, %v3885
      %3887 = vmatmul.bf16.gmra.mxu0 %v3777
      %v3888 = vpop.f32.mrf.mxu0
      %v3889 = vadd.f32 %v3870, %v3888
      %v3890 = vpop.f32.mrf.mxu0
      %v3891 = vadd.f32 %v3872, %v3890
      %3892 = vdwg.mxu0
      %3893 = vmatpush.bf16.msra.mxu0 %v3630
      %3894 = vmatpush.bf16.msra.mxu0 %v3625
      %3895 = vmatpush.bf16.msra.mxu0 %v3620
      %3896 = vmatpush.bf16.msra.mxu0 %v3615
      %3897 = vmatpush.bf16.msra.mxu0 %v3610
      %3898 = vmatpush.bf16.msra.mxu0 %v3605
      %3899 = vmatpush.bf16.msra.mxu0 %v3600
      %3900 = vmatpush.bf16.msra.mxu0 %v3595
      %3901 = vmatmul.bf16.gmra.mxu0 %v3295
      %v3902 = vpop.f32.mrf.mxu0
      %v3903 = vadd.f32 %v3261, %v3902
      %v3904 = vpop.f32.mrf.mxu0
      %v3905 = vadd.f32 %v3265, %v3904
      %3906 = vmatmul.bf16.gmra.mxu0 %v3298
      %v3907 = vpop.f32.mrf.mxu0
      %v3908 = vadd.f32 %v3269, %v3907
      %v3909 = vpop.f32.mrf.mxu0
      %v3910 = vadd.f32 %v3273, %v3909
      %3911 = vdwg.mxu0
      %3912 = vmatpush.bf16.msra.mxu0 %v3670
      %3913 = vmatpush.bf16.msra.mxu0 %v3665
      %3914 = vmatpush.bf16.msra.mxu0 %v3660
      %3915 = vmatpush.bf16.msra.mxu0 %v3655
      %3916 = vmatpush.bf16.msra.mxu0 %v3650
      %3917 = vmatpush.bf16.msra.mxu0 %v3645
      %3918 = vmatpush.bf16.msra.mxu0 %v3640
      %3919 = vmatpush.bf16.msra.mxu0 %v3635
      %3920 = vmatmul.bf16.gmra.mxu0 %v3296
      %v3921 = vpop.f32.mrf.mxu0
      %v3922 = vadd.f32 %v3903, %v3921
      %v3923 = vpop.f32.mrf.mxu0
      %v3924 = vadd.f32 %v3905, %v3923
      %3925 = vmatmul.bf16.gmra.mxu0 %v3299
      %v3926 = vpop.f32.mrf.mxu0
      %v3927 = vadd.f32 %v3908, %v3926
      %v3928 = vpop.f32.mrf.mxu0
      %v3929 = vadd.f32 %v3910, %v3928
      %3930 = vdwg.mxu0
      %3931 = vmatpush.bf16.msra.mxu0 0
      %3932 = vmatpush.bf16.msra.mxu0 0
      %3933 = vmatpush.bf16.msra.mxu0 0
      %3934 = vmatpush.bf16.msra.mxu0 0
      %3935 = vmatpush.bf16.msra.mxu0 0
      %3936 = vmatpush.bf16.msra.mxu0 0
      %3937 = vmatpush.bf16.msra.mxu0 %v3680
      %3938 = vmatpush.bf16.msra.mxu0 %v3675
      %3939 = vmatmul.bf16.gmra.mxu0 %v3774
      %v3940 = vpop.f32.mrf.mxu0
      %v3941 = vadd.f32 %v3922, %v3940
      %v3942 = vpop.f32.mrf.mxu0
      %v3943 = vadd.f32 %v3924, %v3942
      %3944 = vmatmul.bf16.gmra.mxu0 %v3777
      %v3945 = vpop.f32.mrf.mxu0
      %v3946 = vadd.f32 %v3927, %v3945
      %v3947 = vpop.f32.mrf.mxu0
      %v3948 = vadd.f32 %v3929, %v3947
      %3949 = vdwg.mxu0
      %3950 = vmatpush.bf16.msra.mxu0 %v3631
      %3951 = vmatpush.bf16.msra.mxu0 %v3626
      %3952 = vmatpush.bf16.msra.mxu0 %v3621
      %3953 = vmatpush.bf16.msra.mxu0 %v3616
      %3954 = vmatpush.bf16.msra.mxu0 %v3611
      %3955 = vmatpush.bf16.msra.mxu0 %v3606
      %3956 = vmatpush.bf16.msra.mxu0 %v3601
      %3957 = vmatpush.bf16.msra.mxu0 %v3596
      %3958 = vmatmul.bf16.gmra.mxu0 %v3295
      %v3959 = vpop.f32.mrf.mxu0
      %v3960 = vadd.f32 %v3261, %v3959
      %v3961 = vpop.f32.mrf.mxu0
      %v3962 = vadd.f32 %v3265, %v3961
      %3963 = vmatmul.bf16.gmra.mxu0 %v3298
      %v3964 = vpop.f32.mrf.mxu0
      %v3965 = vadd.f32 %v3269, %v3964
      %v3966 = vpop.f32.mrf.mxu0
      %v3967 = vadd.f32 %v3273, %v3966
      %3968 = vdwg.mxu0
      %3969 = vmatpush.bf16.msra.mxu0 %v3671
      %3970 = vmatpush.bf16.msra.mxu0 %v3666
      %3971 = vmatpush.bf16.msra.mxu0 %v3661
      %3972 = vmatpush.bf16.msra.mxu0 %v3656
      %3973 = vmatpush.bf16.msra.mxu0 %v3651
      %3974 = vmatpush.bf16.msra.mxu0 %v3646
      %3975 = vmatpush.bf16.msra.mxu0 %v3641
      %3976 = vmatpush.bf16.msra.mxu0 %v3636
      %3977 = vmatmul.bf16.gmra.mxu0 %v3296
      %v3978 = vpop.f32.mrf.mxu0
      %v3979 = vadd.f32 %v3960, %v3978
      %v3980 = vpop.f32.mrf.mxu0
      %v3981 = vadd.f32 %v3962, %v3980
      %3982 = vmatmul.bf16.gmra.mxu0 %v3299
      %v3983 = vpop.f32.mrf.mxu0
      %v3984 = vadd.f32 %v3965, %v3983
      %v3985 = vpop.f32.mrf.mxu0
      %v3986 = vadd.f32 %v3967, %v3985
      %3987 = vdwg.mxu0
      %3988 = vmatpush.bf16.msra.mxu0 0
      %3989 = vmatpush.bf16.msra.mxu0 0
      %3990 = vmatpush.bf16.msra.mxu0 0
      %3991 = vmatpush.bf16.msra.mxu0 0
      %3992 = vmatpush.bf16.msra.mxu0 0
      %3993 = vmatpush.bf16.msra.mxu0 0
      %3994 = vmatpush.bf16.msra.mxu0 %v3681
      %3995 = vmatpush.bf16.msra.mxu0 %v3676
      %3996 = vmatmul.bf16.gmra.mxu0 %v3774
      %v3997 = vpop.f32.mrf.mxu0
      %v3998 = vadd.f32 %v3979, %v3997
      %v3999 = vpop.f32.mrf.mxu0
      %v4000 = vadd.f32 %v3981, %v3999
      %4001 = vmatmul.bf16.gmra.mxu0 %v3777
      %v4002 = vpop.f32.mrf.mxu0
      %v4003 = vadd.f32 %v3984, %v4002
      %v4004 = vpop.f32.mrf.mxu0
      %v4005 = vadd.f32 %v3986, %v4004
      %4006 = vdwg.mxu0
      %4007 = vmatpush.bf16.msra.mxu0 %v3632
      %4008 = vmatpush.bf16.msra.mxu0 %v3627
      %4009 = vmatpush.bf16.msra.mxu0 %v3622
      %4010 = vmatpush.bf16.msra.mxu0 %v3617
      %4011 = vmatpush.bf16.msra.mxu0 %v3612
      %4012 = vmatpush.bf16.msra.mxu0 %v3607
      %4013 = vmatpush.bf16.msra.mxu0 %v3602
      %4014 = vmatpush.bf16.msra.mxu0 %v3597
      %4015 = vmatmul.bf16.gmra.mxu0 %v3295
      %v4016 = vpop.f32.mrf.mxu0
      %v4017 = vadd.f32 %v3261, %v4016
      %v4018 = vpop.f32.mrf.mxu0
      %v4019 = vadd.f32 %v3265, %v4018
      %4020 = vmatmul.bf16.gmra.mxu0 %v3298
      %v4021 = vpop.f32.mrf.mxu0
      %v4022 = vadd.f32 %v3269, %v4021
      %v4023 = vpop.f32.mrf.mxu0
      %v4024 = vadd.f32 %v3273, %v4023
      %4025 = vdwg.mxu0
      %4026 = vmatpush.bf16.msra.mxu0 %v3672
      %4027 = vmatpush.bf16.msra.mxu0 %v3667
      %4028 = vmatpush.bf16.msra.mxu0 %v3662
      %4029 = vmatpush.bf16.msra.mxu0 %v3657
      %4030 = vmatpush.bf16.msra.mxu0 %v3652
      %4031 = vmatpush.bf16.msra.mxu0 %v3647
      %4032 = vmatpush.bf16.msra.mxu0 %v3642
      %4033 = vmatpush.bf16.msra.mxu0 %v3637
      %4034 = vmatmul.bf16.gmra.mxu0 %v3296
      %v4035 = vpop.f32.mrf.mxu0
      %v4036 = vadd.f32 %v4017, %v4035
      %v4037 = vpop.f32.mrf.mxu0
      %v4038 = vadd.f32 %v4019, %v4037
      %4039 = vmatmul.bf16.gmra.mxu0 %v3299
      %v4040 = vpop.f32.mrf.mxu0
      %v4041 = vadd.f32 %v4022, %v4040
      %v4042 = vpop.f32.mrf.mxu0
      %v4043 = vadd.f32 %v4024, %v4042
      %4044 = vdwg.mxu0
      %4045 = vmatpush.bf16.msra.mxu0 0
      %4046 = vmatpush.bf16.msra.mxu0 0
      %4047 = vmatpush.bf16.msra.mxu0 0
      %4048 = vmatpush.bf16.msra.mxu0 0
      %4049 = vmatpush.bf16.msra.mxu0 0
      %4050 = vmatpush.bf16.msra.mxu0 0
      %4051 = vmatpush.bf16.msra.mxu0 %v3682
      %4052 = vmatpush.bf16.msra.mxu0 %v3677
      %4053 = vmatmul.bf16.gmra.mxu0 %v3774
      %v4054 = vpop.f32.mrf.mxu0
      %v4055 = vadd.f32 %v4036, %v4054
      %v4056 = vpop.f32.mrf.mxu0
      %v4057 = vadd.f32 %v4038, %v4056
      %4058 = vmatmul.bf16.gmra.mxu0 %v3777
      %v4059 = vpop.f32.mrf.mxu0
      %v4060 = vadd.f32 %v4041, %v4059
      %v4061 = vpop.f32.mrf.mxu0
      %v4062 = vadd.f32 %v4043, %v4061
      %4063 = vdwg.mxu0
      %v4064 = vperm.slane %v230, 1
      %v4065 = vperm.slane %v230, 3
      %v4066 = vperm.slane %v230, 5
      %v4067 = vperm.slane %v230, 7
      %v4068 = vperm.slane %v231, 1
      %v4074 = vperm.slane %v4064, 1
      %v4075 = vperm.slane %v4065, 1
      %v4076 = vperm.slane %v4066, 1
      %v4077 = vperm.slane %v4067, 1
      %v4078 = vperm.slane %v4068, 1
      %v4079 = vmul.f32 %v3827, %v4074
      %v4080 = vmul.f32 %v3884, %v4075
      %v4081 = vmul.f32 %v3941, %v4076
      %v4082 = vmul.f32 %v3998, %v4077
      %v4083 = vmul.f32 %v4055, %v4078
      %v4084 = vmul.f32 %v3829, %v4074
      %v4085 = vmul.f32 %v3886, %v4075
      %v4086 = vmul.f32 %v3943, %v4076
      %v4087 = vmul.f32 %v4000, %v4077
      %v4088 = vmul.f32 %v4057, %v4078
      %v4089 = vmul.f32 %v3832, %v4074
      %v4090 = vmul.f32 %v3889, %v4075
      %v4091 = vmul.f32 %v3946, %v4076
      %v4092 = vmul.f32 %v4003, %v4077
      %v4093 = vmul.f32 %v4060, %v4078
      %v4094 = vmul.f32 %v3834, %v4074
      %v4095 = vmul.f32 %v3891, %v4075
      %v4096 = vmul.f32 %v3948, %v4076
      %v4097 = vmul.f32 %v4005, %v4077
      %v4098 = vmul.f32 %v4062, %v4078
      %v4099 = vadd.f32 %v4079, %v4080
      %v4100 = vadd.f32 %v4099, %v4081
      %v4101 = vadd.f32 %v4100, %v4082
      %v4102 = vsel %vm2032, %v4083, 0.0
      %v4103 = vadd.f32 %v4101, %v4102
      %4104 = vadd.xlane.f32.xlu0 %v4103
      %v4105 = vpop.xlane.xlu0 %4104
      %v4106 = vadd.f32 %v4084, %v4085
      %v4107 = vadd.f32 %v4106, %v4086
      %v4108 = vadd.f32 %v4107, %v4087
      %v4109 = vsel %vm2032, %v4088, 0.0
      %v4110 = vadd.f32 %v4108, %v4109
      %4111 = vadd.xlane.f32.xlu0 %v4110
      %v4112 = vpop.xlane.xlu0 %4111
      %v4113 = vadd.f32 %v4089, %v4090
      %v4114 = vadd.f32 %v4113, %v4091
      %v4115 = vadd.f32 %v4114, %v4092
      %v4116 = vsel %vm2032, %v4093, 0.0
      %v4117 = vadd.f32 %v4115, %v4116
      %4118 = vadd.xlane.f32.xlu0 %v4117
      %v4119 = vpop.xlane.xlu0 %4118
      %v4120 = vadd.f32 %v4094, %v4095
      %v4121 = vadd.f32 %v4120, %v4096
      %v4122 = vadd.f32 %v4121, %v4097
      %v4123 = vsel %vm2032, %v4098, 0.0
      %v4124 = vadd.f32 %v4122, %v4123
      %4125 = vadd.xlane.f32.xlu0 %v4124
      %v4126 = vpop.xlane.xlu0 %4125
      %v4127 = vmul.f32 %v4105, 0.0025
      %v4128 = vmul.f32 %v4112, 0.0025
      %v4129 = vmul.f32 %v4119, 0.0025
      %v4130 = vmul.f32 %v4126, 0.0025
      %v4131 = vmul.f32 %v4079, %v3827
      %v4132 = vmul.f32 %v4080, %v3884
      %v4133 = vmul.f32 %v4081, %v3941
      %v4134 = vmul.f32 %v4082, %v3998
      %v4135 = vmul.f32 %v4083, %v4055
      %v4136 = vmul.f32 %v4084, %v3829
      %v4137 = vmul.f32 %v4085, %v3886
      %v4138 = vmul.f32 %v4086, %v3943
      %v4139 = vmul.f32 %v4087, %v4000
      %v4140 = vmul.f32 %v4088, %v4057
      %v4141 = vmul.f32 %v4089, %v3832
      %v4142 = vmul.f32 %v4090, %v3889
      %v4143 = vmul.f32 %v4091, %v3946
      %v4144 = vmul.f32 %v4092, %v4003
      %v4145 = vmul.f32 %v4093, %v4060
      %v4146 = vmul.f32 %v4094, %v3834
      %v4147 = vmul.f32 %v4095, %v3891
      %v4148 = vmul.f32 %v4096, %v3948
      %v4149 = vmul.f32 %v4097, %v4005
      %v4150 = vmul.f32 %v4098, %v4062
      %v4151 = vadd.f32 %v4131, %v4132
      %v4152 = vadd.f32 %v4151, %v4133
      %v4153 = vadd.f32 %v4152, %v4134
      %v4154 = vsel %vm2032, %v4135, 0.0
      %v4155 = vadd.f32 %v4153, %v4154
      %4156 = vadd.xlane.f32.xlu0 %v4155
      %v4157 = vpop.xlane.xlu0 %4156
      %v4158 = vadd.f32 %v4136, %v4137
      %v4159 = vadd.f32 %v4158, %v4138
      %v4160 = vadd.f32 %v4159, %v4139
      %v4161 = vsel %vm2032, %v4140, 0.0
      %v4162 = vadd.f32 %v4160, %v4161
      %4163 = vadd.xlane.f32.xlu0 %v4162
      %v4164 = vpop.xlane.xlu0 %4163
      %v4165 = vadd.f32 %v4141, %v4142
      %v4166 = vadd.f32 %v4165, %v4143
      %v4167 = vadd.f32 %v4166, %v4144
      %v4168 = vsel %vm2032, %v4145, 0.0
      %v4169 = vadd.f32 %v4167, %v4168
      %4170 = vadd.xlane.f32.xlu0 %v4169
      %v4171 = vpop.xlane.xlu0 %4170
      %v4172 = vadd.f32 %v4146, %v4147
      %v4173 = vadd.f32 %v4172, %v4148
      %v4174 = vadd.f32 %v4173, %v4149
      %v4175 = vsel %vm2032, %v4150, 0.0
      %v4176 = vadd.f32 %v4174, %v4175
      %4177 = vadd.xlane.f32.xlu0 %v4176
      %v4178 = vpop.xlane.xlu0 %4177
      %v4179 = vmul.f32 %v4157, 0.0025
      %v4180 = vmul.f32 %v4164, 0.0025
      %v4181 = vmul.f32 %v4171, 0.0025
      %v4182 = vmul.f32 %v4178, 0.0025
      %v4183 = vmul.f32 %v4127, %v4127
      %v4184 = vmul.f32 %v4128, %v4128
      %v4185 = vmul.f32 %v4129, %v4129
      %v4186 = vmul.f32 %v4130, %v4130
      %v4187 = vsub.f32 %v4179, %v4183
      %v4188 = vsub.f32 %v4180, %v4184
      %v4189 = vsub.f32 %v4181, %v4185
      %v4190 = vsub.f32 %v4182, %v4186
      %v4191 = vmax.f32 %v4187, 0.0
      %v4192 = vmax.f32 %v4188, 0.0
      %v4193 = vmax.f32 %v4189, 0.0
      %v4194 = vmax.f32 %v4190, 0.0
      %v4195 = vadd.f32 %v4191, 1e-05
      %v4196 = vadd.f32 %v4192, 1e-05
      %v4197 = vadd.f32 %v4193, 1e-05
      %v4198 = vadd.f32 %v4194, 1e-05
      %v4199 = vrsqrt.pop %v4195
      %v4200 = vmul.f32 %v4199, %v4195
      %v4201 = vmul.f32 %v4200, %v4199
      %v4202 = vmul.f32 0.5, %v4201
      %v4203 = vsub.f32 1.5, %v4202
      %v4204 = vmul.f32 %v4199, %v4203
      %vm4205 = vweird.f32 %v4195
      %vm4206 = vweird.f32 %v4199
      %vm4207 = vmor %vm4205, %vm4206
      %v4208 = vsel %vm4207, %v4199, %v4204
      %v4209 = vrsqrt.pop %v4196
      %v4210 = vmul.f32 %v4209, %v4196
      %v4211 = vmul.f32 %v4210, %v4209
      %v4212 = vmul.f32 0.5, %v4211
      %v4213 = vsub.f32 1.5, %v4212
      %v4214 = vmul.f32 %v4209, %v4213
      %vm4215 = vweird.f32 %v4196
      %vm4216 = vweird.f32 %v4209
      %vm4217 = vmor %vm4215, %vm4216
      %v4218 = vsel %vm4217, %v4209, %v4214
      %v4219 = vrsqrt.pop %v4197
      %v4220 = vmul.f32 %v4219, %v4197
      %v4221 = vmul.f32 %v4220, %v4219
      %v4222 = vmul.f32 0.5, %v4221
      %v4223 = vsub.f32 1.5, %v4222
      %v4224 = vmul.f32 %v4219, %v4223
      %vm4225 = vweird.f32 %v4197
      %vm4226 = vweird.f32 %v4219
      %vm4227 = vmor %vm4225, %vm4226
      %v4228 = vsel %vm4227, %v4219, %v4224
      %v4229 = vrsqrt.pop %v4198
      %v4230 = vmul.f32 %v4229, %v4198
      %v4231 = vmul.f32 %v4230, %v4229
      %v4232 = vmul.f32 0.5, %v4231
      %v4233 = vsub.f32 1.5, %v4232
      %v4234 = vmul.f32 %v4229, %v4233
      %vm4235 = vweird.f32 %v4198
      %vm4236 = vweird.f32 %v4229
      %vm4237 = vmor %vm4235, %vm4236
      %v4238 = vsel %vm4237, %v4229, %v4234
      %v4239 = vsub.f32 %v3827, %v4127
      %v4240 = vsub.f32 %v3884, %v4127
      %v4241 = vsub.f32 %v3941, %v4127
      %v4242 = vsub.f32 %v3998, %v4127
      %v4243 = vsub.f32 %v4055, %v4127
      %v4244 = vsub.f32 %v3829, %v4128
      %v4245 = vsub.f32 %v3886, %v4128
      %v4246 = vsub.f32 %v3943, %v4128
      %v4247 = vsub.f32 %v4000, %v4128
      %v4248 = vsub.f32 %v4057, %v4128
      %v4249 = vsub.f32 %v3832, %v4129
      %v4250 = vsub.f32 %v3889, %v4129
      %v4251 = vsub.f32 %v3946, %v4129
      %v4252 = vsub.f32 %v4003, %v4129
      %v4253 = vsub.f32 %v4060, %v4129
      %v4254 = vsub.f32 %v3834, %v4130
      %v4255 = vsub.f32 %v3891, %v4130
      %v4256 = vsub.f32 %v3948, %v4130
      %v4257 = vsub.f32 %v4005, %v4130
      %v4258 = vsub.f32 %v4062, %v4130
      %v4259 = vmul.f32 %v4208, %v226
      %v4260 = vmul.f32 %v4218, %v227
      %v4261 = vmul.f32 %v4228, %v228
      %v4262 = vmul.f32 %v4238, %v229
      %4264 = vset.pattern.permute.xlu0 4
      %4265 = vperm.xlu0 %4264, %v4259
      %v4266 = vpop.permute.xlu0 %4265
      %4269 = vset.pattern.permute.xlu0 4
      %4270 = vperm.xlu0 %4269, %v4260
      %v4271 = vpop.permute.xlu0 %4270
      %4274 = vset.pattern.permute.xlu0 4
      %4275 = vperm.xlu0 %4274, %v4261
      %v4276 = vpop.permute.xlu0 %4275
      %4279 = vset.pattern.permute.xlu0 4
      %4280 = vperm.xlu0 %4279, %v4262
      %v4281 = vpop.permute.xlu0 %4280
      %v4283 = vmul.f32 %v4239, %v4266
      %v4284 = vmul.f32 %v4240, %v4266
      %v4285 = vmul.f32 %v4241, %v4266
      %v4286 = vmul.f32 %v4242, %v4266
      %v4287 = vmul.f32 %v4243, %v4266
      %v4288 = vmul.f32 %v4244, %v4271
      %v4289 = vmul.f32 %v4245, %v4271
      %v4290 = vmul.f32 %v4246, %v4271
      %v4291 = vmul.f32 %v4247, %v4271
      %v4292 = vmul.f32 %v4248, %v4271
      %v4293 = vmul.f32 %v4249, %v4276
      %v4294 = vmul.f32 %v4250, %v4276
      %v4295 = vmul.f32 %v4251, %v4276
      %v4296 = vmul.f32 %v4252, %v4276
      %v4297 = vmul.f32 %v4253, %v4276
      %v4298 = vmul.f32 %v4254, %v4281
      %v4299 = vmul.f32 %v4255, %v4281
      %v4300 = vmul.f32 %v4256, %v4281
      %v4301 = vmul.f32 %v4257, %v4281
      %v4302 = vmul.f32 %v4258, %v4281
      %4303 = vset.pattern.permute.xlu0 5
      %4304 = vperm.xlu0 %4303, %v226
      %v4305 = vpop.permute.xlu0 %4304
      %4307 = vset.pattern.permute.xlu0 5
      %4308 = vperm.xlu0 %4307, %v227
      %v4309 = vpop.permute.xlu0 %4308
      %4311 = vset.pattern.permute.xlu0 5
      %4312 = vperm.xlu0 %4311, %v228
      %v4313 = vpop.permute.xlu0 %4312
      %4315 = vset.pattern.permute.xlu0 5
      %4316 = vperm.xlu0 %4315, %v229
      %v4317 = vpop.permute.xlu0 %4316
      %v4319 = vadd.f32 %v4283, %v4305
      %v4320 = vadd.f32 %v4284, %v4305
      %v4321 = vadd.f32 %v4285, %v4305
      %v4322 = vadd.f32 %v4286, %v4305
      %v4323 = vadd.f32 %v4287, %v4305
      %v4324 = vadd.f32 %v4288, %v4309
      %v4325 = vadd.f32 %v4289, %v4309
      %v4326 = vadd.f32 %v4290, %v4309
      %v4327 = vadd.f32 %v4291, %v4309
      %v4328 = vadd.f32 %v4292, %v4309
      %v4329 = vadd.f32 %v4293, %v4313
      %v4330 = vadd.f32 %v4294, %v4313
      %v4331 = vadd.f32 %v4295, %v4313
      %v4332 = vadd.f32 %v4296, %v4313
      %v4333 = vadd.f32 %v4297, %v4313
      %v4334 = vadd.f32 %v4298, %v4317
      %v4335 = vadd.f32 %v4299, %v4317
      %v4336 = vadd.f32 %v4300, %v4317
      %v4337 = vadd.f32 %v4301, %v4317
      %v4338 = vadd.f32 %v4302, %v4317
      %4339 = vst [vmem:[%s224] sm:$0xff] %v4319
      %4340 = vst [vmem:[%s224 + $0x8] sm:$0xff] %v4320
      %4341 = vst [vmem:[%s224 + $0x10] sm:$0xff] %v4321
      %4342 = vst [vmem:[%s224 + $0x18] sm:$0xff] %v4322
      %4343 = vst.msk [vmem:[%s224 + $0x20] sm:$0xff] %vm2032, %v4323
      %4344 = vst [vmem:[%s224 + $0x28] sm:$0xff] %v4324
      %4345 = vst [vmem:[%s224 + $0x30] sm:$0xff] %v4325
      %4346 = vst [vmem:[%s224 + $0x38] sm:$0xff] %v4326
      %4347 = vst [vmem:[%s224 + $0x40] sm:$0xff] %v4327
      %4348 = vst.msk [vmem:[%s224 + $0x48] sm:$0xff] %vm2032, %v4328
      %4349 = vst [vmem:[%s224 + $0x50] sm:$0xff] %v4329
      %4350 = vst [vmem:[%s224 + $0x58] sm:$0xff] %v4330
      %4351 = vst [vmem:[%s224 + $0x60] sm:$0xff] %v4331
      %4352 = vst [vmem:[%s224 + $0x68] sm:$0xff] %v4332
      %4353 = vst.msk [vmem:[%s224 + $0x70] sm:$0xff] %vm2032, %v4333
      %4354 = vst [vmem:[%s224 + $0x78] sm:$0xff] %v4334
      %4355 = vst [vmem:[%s224 + $0x80] sm:$0xff] %v4335
      %4356 = vst [vmem:[%s224 + $0x88] sm:$0xff] %v4336
      %4357 = vst [vmem:[%s224 + $0x90] sm:$0xff] %v4337
      %4358 = vst.msk [vmem:[%s224 + $0x98] sm:$0xff] %vm2032, %v4338
      %p4359 = scmp.lt.s32.totalorder %s16, 1
      %s4360 = scalar_select %p4359, %s16, 1
      %s4361 = smul.addr %s4360, 20
      %s4362 = smul.addr %s4361, 8
      %s4363 = scalar_lea.vmem %s5, %s4362
      // Predicated region
      $region41: #{residual_layer_forward.1} parent=39 // pred_check
        %p4364 = pneg %p144
      $region42: #{residual_layer_forward.1} parent=39 // pred_check_branch
        %4366 = sbr.rel (%p4364) target = $region44
      $region43: #{residual_layer_forward.1} parent=39 // pred_region
        _
      $region44: #{residual_layer_forward.1} parent=39 // pred_fallthru
        _
    $region40: #{residual_layer_forward.1} parent=5 // pred_fallthru
      _
    %p4367 = scmp.le.s32.totalorder 2, %s11
    // Predicated region
    $region45: #{residual_layer_forward.1} parent=5 // pred_check
      %p4368 = pneg %p4367
    $region46: #{residual_layer_forward.1} parent=5 // pred_check_branch
      %4370 = sbr.rel (%p4368) target = $region48
    $region47: #{residual_layer_forward.1} parent=5 // pred_region
      %s4371 = ssub.s32 %s11, 2
      // Predicated region
      $region49: #{residual_layer_forward.1} parent=47 // pred_check
        %p4372 = pneg %p150
      $region50: #{residual_layer_forward.1} parent=47 // pred_check_branch
        %4374 = sbr.rel (%p4372) target = $region52
      $region51: #{residual_layer_forward.1} parent=47 // pred_region
        %p4375 = scmp.lt.s32.totalorder %s17, 1
        %s4376 = scalar_select %p4375, %s17, 1
        %s4377 = smul.addr %s4376, 20
        %s4378 = smul.addr %s4377, 8
        %s4379 = scalar_lea.vmem %s5, %s4378
      $region52: #{residual_layer_forward.1} parent=47 // pred_fallthru
        _
    $region48: #{residual_layer_forward.1} parent=5 // pred_fallthru
      _
  $region6: #{residual_layer_forward.1} parent=0 // loop_footer
    %s15 = sadd.s32 1, %s11
  $region7: #{residual_layer_forward.1} parent=0 // loop_footer_branch
    %10 = sbr.rel target = $region3
  $region8: #{residual_layer_forward.1} parent=0 // loop_exit
    _

</llo_original>
